<compile_context>
chip_gen: v7x
topology: tpu7x:2x2x1
jax: 0.10.0
libtpu: 0.0.40
codegen_flags: <defaults>
</compile_context>

<pallas_src>
import functools

import numpy as np

import jax
import jax.numpy as jnp
from jax import lax
from jax.experimental import pallas as pl
from jax.experimental.pallas import tpu as pltpu

_LANES = 128


# --------------------------- fused Pallas kernel ---------------------------- #
def _fused_disc_kernel(x_ref, *refs, layer_meta):
    """Entire DCGAN_disc forward for one batch block.

    x_ref : (H0, NB, W0*C0) f32   input rows (samples on sublanes)
    refs  : per-layer packed weights (4, W*Cin, Wo*Cout) bf16, then o_ref
    o_ref : (NB, 1) f32           final logits
    """
    n_layers = len(layer_meta)
    w_refs = refs[:n_layers]
    o_ref = refs[n_layers]
    nb = x_ref.shape[1]

    # Layer-0 input rows, cast to bf16 in-kernel (one leading-dim read each).
    rows = [x_ref[h].astype(jnp.bfloat16) for h in range(x_ref.shape[0])]

    for l, (h_out, stride, pad, slope) in enumerate(layer_meta):
        w_ref = w_refs[l]
        h_in = len(rows)
        d_in = rows[0].shape[-1]
        d_out = w_ref.shape[-1]
        zero_row = jnp.zeros((nb, d_in), jnp.bfloat16)

        acc = jnp.zeros((h_out * nb, d_out), jnp.float32)
        for ki in range(4):                       # kernel rows, fully unrolled
            blocks, any_real = [], False
            for ho in range(h_out):
                h = stride * ho + ki - pad
                if 0 <= h < h_in:
                    blocks.append(rows[h])
                    any_real = True
                else:
                    blocks.append(zero_row)       # spatial zero padding (rows)
            if not any_real:
                continue                          # tap lies entirely in padding
            lhs = blocks[0] if len(blocks) == 1 else jnp.concatenate(blocks, 0)
            acc = acc + jnp.dot(lhs, w_ref[ki],
                                preferred_element_type=jnp.float32)

        if slope is not None:                     # fused LeakyReLU (f32 epilogue)
            acc = jnp.where(acc > 0, acc, slope * acc)

        if l == n_layers - 1:
            # Final layer: (NB, 128) accumulator, real logit is column 0.
            o_ref[...] = acc[:, :o_ref.shape[-1]].astype(o_ref.dtype)
        else:
            nxt = acc.astype(jnp.bfloat16)
            rows = [nxt[ho * nb:(ho + 1) * nb, :] for ho in range(h_out)]


# ------------------------------ JAX wrapper --------------------------------- #
def dcgan_disc_forward(x_nchw, params, *, block_batch=8):
    """Forward pass of DCGAN_disc (input NCHW like the PyTorch module)."""
    n, c, h, w = x_nchw.shape
    nb = min(block_batch, n)
    assert n % nb == 0, "batch must be divisible by the batch block"

    # NCHW -> (H, N, W*C): one cheap layout transform; inside the kernel every
    # spatial row is then a contiguous (NB, W*C) tile (no in-kernel transposes).
    x = jnp.transpose(x_nchw, (2, 0, 3, 1)).reshape(h, n, w * c)

    w_blocks = [p["w_blocks"] for p in params]
    layer_meta = tuple((p["h_out"], p["stride"], p["pad"], p["slope"])
                       for p in params)

    # Real (un-padded) conv flops / bytes for the scheduler hint.
    flops = sum(2 * n * p["h_out"] * p["w_out"] * p["cout"] * 16 * p["cin"]
                for p in params)
    bytes_accessed = (x.size * x.dtype.itemsize
                      + sum(wb.size * wb.dtype.itemsize for wb in w_blocks)
                      + n * 4)

    kernel = functools.partial(_fused_disc_kernel, layer_meta=layer_meta)

    return pl.pallas_call(
        kernel,
        out_shape=jax.ShapeDtypeStruct((n, 1), jnp.float32),
        grid=(n // nb,),
        in_specs=[pl.BlockSpec((h, nb, w * c), lambda i: (0, i, 0))]
                 + [pl.BlockSpec(wb.shape, lambda i: (0, 0, 0))   # resident
                    for wb in w_blocks],
        out_specs=pl.BlockSpec((nb, 1), lambda i: (i, 0)),
        compiler_params=pltpu.CompilerParams(
            dimension_semantics=("parallel",),     # both TensorCores on v7x
            vmem_limit_bytes=32 * 1024 * 1024,     # ~2 MiB actually used
        ),
        cost_estimate=pl.CostEstimate(flops=flops, transcendentals=0,
                                      bytes_accessed=bytes_accessed),
    )(x, *w_blocks)


# ------------------------- weight preprocessing ------------------------------ #
def _make_block_weights(w_hwio, w_in, stride, pad, d_out_pad=None):
    """Pack a (4,4,Cin,Cout) conv weight into 4 row-tap matrices.

    Block ki maps a flattened input row (W*Cin lanes) to a flattened output
    row (Wo*Cout lanes); the kj taps, the column window and the zero padding
    are all baked into the (mostly-zero) matrix, so the kernel only ever does
    contiguous row reads + dense matmuls.
    """
    kh, kw, cin, cout = w_hwio.shape
    w_out = (w_in + 2 * pad - kw) // stride + 1
    sel = np.zeros((kw, w_in, w_out), np.float32)
    for wo in range(w_out):
        for kj in range(kw):
            wi = stride * wo + kj - pad
            if 0 <= wi < w_in:
                sel[kj, wi, wo] = 1.0
    wb = jnp.einsum("jwv,kjio->kwivo", jnp.asarray(sel), w_hwio)
    wb = wb.reshape(kh, w_in * cin, w_out * cout)
    if d_out_pad is not None and d_out_pad > wb.shape[-1]:
        wb = jnp.pad(wb, ((0, 0), (0, 0), (0, d_out_pad - wb.shape[-1])))
    return wb.astype(jnp.bfloat16), w_out


def make_dcgan_disc_params(key, in_ch, size, spatial, dataset="cifar",
                           num_layers=5):
    """Replicates the layer-config loop of DCGAN_disc.__init__ (bias=False)."""
    cfgs = []
    ic, oc = in_ch, size
    for i in range(num_layers):
        stride, padding = ((1, 0) if (i == num_layers - 1 and
                                      dataset == "celebA") else (2, 1))
        cfgs.append((ic, oc, stride, padding, i != num_layers - 1))
        ic = oc
        oc = 1 if i == num_layers - 2 else oc * 2

    params = []
    keys = jax.random.split(key, num_layers)
    h = w = spatial
    for li, (k, (ci, co, stride, padding, has_lrelu)) in enumerate(
            zip(keys, cfgs)):
        w_raw = jax.random.normal(k, (4, 4, ci, co), jnp.float32) * 0.02
        h_out = (h + 2 * padding - 4) // stride + 1
        last = li == num_layers - 1
        # Pad the last layer's output lanes to 128 so its matmul / store stay
        # lane-friendly; the kernel slices the single real logit column back.
        wb, w_out = _make_block_weights(w_raw, w_in=w, stride=stride,
                                        pad=padding,
                                        d_out_pad=_LANES if last else None)
        params.append(dict(w_raw=w_raw, w_blocks=wb, stride=stride,
                           pad=padding, slope=0.2 if has_lrelu else None,
                           cin=ci, cout=co, h_out=h_out, w_out=w_out))
        h, w = h_out, w_out
    assert h == 1 and w == 1 and params[-1]["cout"] == 1, \
        "DCGAN_disc final feature map must be 1x1x1 (use spatial=32 / 64)"
    return params


# ------------------------------ reference ------------------------------------ #
def _reference_forward(x_nchw, params):
    """Pure-XLA reference mirroring the kernel's bf16 casting policy."""
    x = jnp.transpose(x_nchw, (0, 2, 3, 1))
    for lp in params:
        xb = x.astype(jnp.bfloat16)
        wb = lp["w_raw"].astype(jnp.bfloat16)
        y = lax.conv_general_dilated(
            xb, wb, window_strides=(lp["stride"], lp["stride"]),
            padding=[(lp["pad"], lp["pad"])] * 2,
            dimension_numbers=("NHWC", "HWIO", "NHWC"),
            preferred_element_type=jnp.float32)
        if lp["slope"] is not None:
            y = jnp.where(y > 0, y, lp["slope"] * y).astype(jnp.bfloat16)
        x = y
    n = x.shape[0]
    return jnp.transpose(x, (0, 3, 1, 2)).reshape(n, -1).astype(jnp.float32)


# ---------------------------------- main ------------------------------------- #
if __name__ == "__main__":
    key = jax.random.PRNGKey(0)
    k_w, k_x = jax.random.split(key)

    # Default (non-celebA) config: config.size = 8, 3 input channels, 32x32
    # input -> spatial 32->16->8->4->2->1, channels 3->8->16->32->64->1.
    # batch=32 with an 8-sample batch block -> 4 grid steps (>=2 per TC on v7x).
    batch, in_ch, spatial, size = 32, 3, 32, 8
    params = make_dcgan_disc_params(k_w, in_ch=in_ch, size=size,
                                    spatial=spatial, dataset="cifar")

    x = jax.random.normal(k_x, (batch, in_ch, spatial, spatial), jnp.float32)

    fwd = jax.jit(lambda inp: dcgan_disc_forward(inp, params, block_batch=8))
    out = jax.block_until_ready(fwd(x))
    assert out.shape == (batch, 1), out.shape

    ref = jax.block_until_ready(_reference_forward(x, params))
    np.testing.assert_allclose(np.asarray(out), np.asarray(ref),
                               rtol=1e-1, atol=5e-4)

    print("KERNEL_OK")
</pallas_src>

<mosaic_0001>
module attributes {stable_mosaic.version = 11 : i64} {
  func.func @_fused_disc_kernel(%arg0: i32, %arg1: memref<32x8x96xf32, #tpu.memory_space<vmem>>, %arg2: memref<4x96x128xbf16, #tpu.memory_space<vmem>>, %arg3: memref<4x128x128xbf16, #tpu.memory_space<vmem>>, %arg4: memref<4x128x128xbf16, #tpu.memory_space<vmem>>, %arg5: memref<4x128x128xbf16, #tpu.memory_space<vmem>>, %arg6: memref<4x128x128xbf16, #tpu.memory_space<vmem>>, %arg7: memref<8x1xf32, #tpu.memory_space<vmem>>) attributes {dimension_semantics = [#tpu.dimension_semantics<parallel>], iteration_bounds = array<i64: 4>, scalar_prefetch = 0 : i64, scratch_operands = 0 : i64, tpu.core_type = #tpu.core_type<tc>, window_params = [{transform_indices = @transform_0, window_bounds = array<i64: 32, 8, 96>}, {pipeline_mode = #tpu.pipeline_mode<synchronous>, transform_indices = @transform_1, window_bounds = array<i64: 4, 96, 128>}, {pipeline_mode = #tpu.pipeline_mode<synchronous>, transform_indices = @transform_2, window_bounds = array<i64: 4, 128, 128>}, {pipeline_mode = #tpu.pipeline_mode<synchronous>, transform_indices = @transform_3, window_bounds = array<i64: 4, 128, 128>}, {pipeline_mode = #tpu.pipeline_mode<synchronous>, transform_indices = @transform_4, window_bounds = array<i64: 4, 128, 128>}, {pipeline_mode = #tpu.pipeline_mode<synchronous>, transform_indices = @transform_5, window_bounds = array<i64: 4, 128, 128>}, {transform_indices = @transform_6, window_bounds = array<i64: 8, 1>}]} {
    %c0 = arith.constant 0 : index
    %c0_0 = arith.constant 0 : index
    %c0_1 = arith.constant 0 : index
    %0 = vector.load %arg1[%c0, %c0_0, %c0_1] : memref<32x8x96xf32, #tpu.memory_space<vmem>>, vector<1x8x96xf32>
    %1 = vector.shape_cast %0 : vector<1x8x96xf32> to vector<8x96xf32>
    %2 = arith.truncf %1 : vector<8x96xf32> to vector<8x96xbf16>
    %c1 = arith.constant 1 : index
    %c0_2 = arith.constant 0 : index
    %c0_3 = arith.constant 0 : index
    %3 = vector.load %arg1[%c1, %c0_2, %c0_3] : memref<32x8x96xf32, #tpu.memory_space<vmem>>, vector<1x8x96xf32>
    %4 = vector.shape_cast %3 : vector<1x8x96xf32> to vector<8x96xf32>
    %5 = arith.truncf %4 : vector<8x96xf32> to vector<8x96xbf16>
    %c2 = arith.constant 2 : index
    %c0_4 = arith.constant 0 : index
    %c0_5 = arith.constant 0 : index
    %6 = vector.load %arg1[%c2, %c0_4, %c0_5] : memref<32x8x96xf32, #tpu.memory_space<vmem>>, vector<1x8x96xf32>
    %7 = vector.shape_cast %6 : vector<1x8x96xf32> to vector<8x96xf32>
    %8 = arith.truncf %7 : vector<8x96xf32> to vector<8x96xbf16>
    %c3 = arith.constant 3 : index
    %c0_6 = arith.constant 0 : index
    %c0_7 = arith.constant 0 : index
    %9 = vector.load %arg1[%c3, %c0_6, %c0_7] : memref<32x8x96xf32, #tpu.memory_space<vmem>>, vector<1x8x96xf32>
    %10 = vector.shape_cast %9 : vector<1x8x96xf32> to vector<8x96xf32>
    %11 = arith.truncf %10 : vector<8x96xf32> to vector<8x96xbf16>
    %c4 = arith.constant 4 : index
    %c0_8 = arith.constant 0 : index
    %c0_9 = arith.constant 0 : index
    %12 = vector.load %arg1[%c4, %c0_8, %c0_9] : memref<32x8x96xf32, #tpu.memory_space<vmem>>, vector<1x8x96xf32>
    %13 = vector.shape_cast %12 : vector<1x8x96xf32> to vector<8x96xf32>
    %14 = arith.truncf %13 : vector<8x96xf32> to vector<8x96xbf16>
    %c5 = arith.constant 5 : index
    %c0_10 = arith.constant 0 : index
    %c0_11 = arith.constant 0 : index
    %15 = vector.load %arg1[%c5, %c0_10, %c0_11] : memref<32x8x96xf32, #tpu.memory_space<vmem>>, vector<1x8x96xf32>
    %16 = vector.shape_cast %15 : vector<1x8x96xf32> to vector<8x96xf32>
    %17 = arith.truncf %16 : vector<8x96xf32> to vector<8x96xbf16>
    %c6 = arith.constant 6 : index
    %c0_12 = arith.constant 0 : index
    %c0_13 = arith.constant 0 : index
    %18 = vector.load %arg1[%c6, %c0_12, %c0_13] : memref<32x8x96xf32, #tpu.memory_space<vmem>>, vector<1x8x96xf32>
    %19 = vector.shape_cast %18 : vector<1x8x96xf32> to vector<8x96xf32>
    %20 = arith.truncf %19 : vector<8x96xf32> to vector<8x96xbf16>
    %c7 = arith.constant 7 : index
    %c0_14 = arith.constant 0 : index
    %c0_15 = arith.constant 0 : index
    %21 = vector.load %arg1[%c7, %c0_14, %c0_15] : memref<32x8x96xf32, #tpu.memory_space<vmem>>, vector<1x8x96xf32>
    %22 = vector.shape_cast %21 : vector<1x8x96xf32> to vector<8x96xf32>
    %23 = arith.truncf %22 : vector<8x96xf32> to vector<8x96xbf16>
    %c8 = arith.constant 8 : index
    %c0_16 = arith.constant 0 : index
    %c0_17 = arith.constant 0 : index
    %24 = vector.load %arg1[%c8, %c0_16, %c0_17] : memref<32x8x96xf32, #tpu.memory_space<vmem>>, vector<1x8x96xf32>
    %25 = vector.shape_cast %24 : vector<1x8x96xf32> to vector<8x96xf32>
    %26 = arith.truncf %25 : vector<8x96xf32> to vector<8x96xbf16>
    %c9 = arith.constant 9 : index
    %c0_18 = arith.constant 0 : index
    %c0_19 = arith.constant 0 : index
    %27 = vector.load %arg1[%c9, %c0_18, %c0_19] : memref<32x8x96xf32, #tpu.memory_space<vmem>>, vector<1x8x96xf32>
    %28 = vector.shape_cast %27 : vector<1x8x96xf32> to vector<8x96xf32>
    %29 = arith.truncf %28 : vector<8x96xf32> to vector<8x96xbf16>
    %c10 = arith.constant 10 : index
    %c0_20 = arith.constant 0 : index
    %c0_21 = arith.constant 0 : index
    %30 = vector.load %arg1[%c10, %c0_20, %c0_21] : memref<32x8x96xf32, #tpu.memory_space<vmem>>, vector<1x8x96xf32>
    %31 = vector.shape_cast %30 : vector<1x8x96xf32> to vector<8x96xf32>
    %32 = arith.truncf %31 : vector<8x96xf32> to vector<8x96xbf16>
    %c11 = arith.constant 11 : index
    %c0_22 = arith.constant 0 : index
    %c0_23 = arith.constant 0 : index
    %33 = vector.load %arg1[%c11, %c0_22, %c0_23] : memref<32x8x96xf32, #tpu.memory_space<vmem>>, vector<1x8x96xf32>
    %34 = vector.shape_cast %33 : vector<1x8x96xf32> to vector<8x96xf32>
    %35 = arith.truncf %34 : vector<8x96xf32> to vector<8x96xbf16>
    %c12 = arith.constant 12 : index
    %c0_24 = arith.constant 0 : index
    %c0_25 = arith.constant 0 : index
    %36 = vector.load %arg1[%c12, %c0_24, %c0_25] : memref<32x8x96xf32, #tpu.memory_space<vmem>>, vector<1x8x96xf32>
    %37 = vector.shape_cast %36 : vector<1x8x96xf32> to vector<8x96xf32>
    %38 = arith.truncf %37 : vector<8x96xf32> to vector<8x96xbf16>
    %c13 = arith.constant 13 : index
    %c0_26 = arith.constant 0 : index
    %c0_27 = arith.constant 0 : index
    %39 = vector.load %arg1[%c13, %c0_26, %c0_27] : memref<32x8x96xf32, #tpu.memory_space<vmem>>, vector<1x8x96xf32>
    %40 = vector.shape_cast %39 : vector<1x8x96xf32> to vector<8x96xf32>
    %41 = arith.truncf %40 : vector<8x96xf32> to vector<8x96xbf16>
    %c14 = arith.constant 14 : index
    %c0_28 = arith.constant 0 : index
    %c0_29 = arith.constant 0 : index
    %42 = vector.load %arg1[%c14, %c0_28, %c0_29] : memref<32x8x96xf32, #tpu.memory_space<vmem>>, vector<1x8x96xf32>
    %43 = vector.shape_cast %42 : vector<1x8x96xf32> to vector<8x96xf32>
    %44 = arith.truncf %43 : vector<8x96xf32> to vector<8x96xbf16>
    %c15 = arith.constant 15 : index
    %c0_30 = arith.constant 0 : index
    %c0_31 = arith.constant 0 : index
    %45 = vector.load %arg1[%c15, %c0_30, %c0_31] : memref<32x8x96xf32, #tpu.memory_space<vmem>>, vector<1x8x96xf32>
    %46 = vector.shape_cast %45 : vector<1x8x96xf32> to vector<8x96xf32>
    %47 = arith.truncf %46 : vector<8x96xf32> to vector<8x96xbf16>
    %c16 = arith.constant 16 : index
    %c0_32 = arith.constant 0 : index
    %c0_33 = arith.constant 0 : index
    %48 = vector.load %arg1[%c16, %c0_32, %c0_33] : memref<32x8x96xf32, #tpu.memory_space<vmem>>, vector<1x8x96xf32>
    %49 = vector.shape_cast %48 : vector<1x8x96xf32> to vector<8x96xf32>
    %50 = arith.truncf %49 : vector<8x96xf32> to vector<8x96xbf16>
    %c17 = arith.constant 17 : index
    %c0_34 = arith.constant 0 : index
    %c0_35 = arith.constant 0 : index
    %51 = vector.load %arg1[%c17, %c0_34, %c0_35] : memref<32x8x96xf32, #tpu.memory_space<vmem>>, vector<1x8x96xf32>
    %52 = vector.shape_cast %51 : vector<1x8x96xf32> to vector<8x96xf32>
    %53 = arith.truncf %52 : vector<8x96xf32> to vector<8x96xbf16>
    %c18 = arith.constant 18 : index
    %c0_36 = arith.constant 0 : index
    %c0_37 = arith.constant 0 : index
    %54 = vector.load %arg1[%c18, %c0_36, %c0_37] : memref<32x8x96xf32, #tpu.memory_space<vmem>>, vector<1x8x96xf32>
    %55 = vector.shape_cast %54 : vector<1x8x96xf32> to vector<8x96xf32>
    %56 = arith.truncf %55 : vector<8x96xf32> to vector<8x96xbf16>
    %c19 = arith.constant 19 : index
    %c0_38 = arith.constant 0 : index
    %c0_39 = arith.constant 0 : index
    %57 = vector.load %arg1[%c19, %c0_38, %c0_39] : memref<32x8x96xf32, #tpu.memory_space<vmem>>, vector<1x8x96xf32>
    %58 = vector.shape_cast %57 : vector<1x8x96xf32> to vector<8x96xf32>
    %59 = arith.truncf %58 : vector<8x96xf32> to vector<8x96xbf16>
    %c20 = arith.constant 20 : index
    %c0_40 = arith.constant 0 : index
    %c0_41 = arith.constant 0 : index
    %60 = vector.load %arg1[%c20, %c0_40, %c0_41] : memref<32x8x96xf32, #tpu.memory_space<vmem>>, vector<1x8x96xf32>
    %61 = vector.shape_cast %60 : vector<1x8x96xf32> to vector<8x96xf32>
    %62 = arith.truncf %61 : vector<8x96xf32> to vector<8x96xbf16>
    %c21 = arith.constant 21 : index
    %c0_42 = arith.constant 0 : index
    %c0_43 = arith.constant 0 : index
    %63 = vector.load %arg1[%c21, %c0_42, %c0_43] : memref<32x8x96xf32, #tpu.memory_space<vmem>>, vector<1x8x96xf32>
    %64 = vector.shape_cast %63 : vector<1x8x96xf32> to vector<8x96xf32>
    %65 = arith.truncf %64 : vector<8x96xf32> to vector<8x96xbf16>
    %c22 = arith.constant 22 : index
    %c0_44 = arith.constant 0 : index
    %c0_45 = arith.constant 0 : index
    %66 = vector.load %arg1[%c22, %c0_44, %c0_45] : memref<32x8x96xf32, #tpu.memory_space<vmem>>, vector<1x8x96xf32>
    %67 = vector.shape_cast %66 : vector<1x8x96xf32> to vector<8x96xf32>
    %68 = arith.truncf %67 : vector<8x96xf32> to vector<8x96xbf16>
    %c23 = arith.constant 23 : index
    %c0_46 = arith.constant 0 : index
    %c0_47 = arith.constant 0 : index
    %69 = vector.load %arg1[%c23, %c0_46, %c0_47] : memref<32x8x96xf32, #tpu.memory_space<vmem>>, vector<1x8x96xf32>
    %70 = vector.shape_cast %69 : vector<1x8x96xf32> to vector<8x96xf32>
    %71 = arith.truncf %70 : vector<8x96xf32> to vector<8x96xbf16>
    %c24 = arith.constant 24 : index
    %c0_48 = arith.constant 0 : index
    %c0_49 = arith.constant 0 : index
    %72 = vector.load %arg1[%c24, %c0_48, %c0_49] : memref<32x8x96xf32, #tpu.memory_space<vmem>>, vector<1x8x96xf32>
    %73 = vector.shape_cast %72 : vector<1x8x96xf32> to vector<8x96xf32>
    %74 = arith.truncf %73 : vector<8x96xf32> to vector<8x96xbf16>
    %c25 = arith.constant 25 : index
    %c0_50 = arith.constant 0 : index
    %c0_51 = arith.constant 0 : index
    %75 = vector.load %arg1[%c25, %c0_50, %c0_51] : memref<32x8x96xf32, #tpu.memory_space<vmem>>, vector<1x8x96xf32>
    %76 = vector.shape_cast %75 : vector<1x8x96xf32> to vector<8x96xf32>
    %77 = arith.truncf %76 : vector<8x96xf32> to vector<8x96xbf16>
    %c26 = arith.constant 26 : index
    %c0_52 = arith.constant 0 : index
    %c0_53 = arith.constant 0 : index
    %78 = vector.load %arg1[%c26, %c0_52, %c0_53] : memref<32x8x96xf32, #tpu.memory_space<vmem>>, vector<1x8x96xf32>
    %79 = vector.shape_cast %78 : vector<1x8x96xf32> to vector<8x96xf32>
    %80 = arith.truncf %79 : vector<8x96xf32> to vector<8x96xbf16>
    %c27 = arith.constant 27 : index
    %c0_54 = arith.constant 0 : index
    %c0_55 = arith.constant 0 : index
    %81 = vector.load %arg1[%c27, %c0_54, %c0_55] : memref<32x8x96xf32, #tpu.memory_space<vmem>>, vector<1x8x96xf32>
    %82 = vector.shape_cast %81 : vector<1x8x96xf32> to vector<8x96xf32>
    %83 = arith.truncf %82 : vector<8x96xf32> to vector<8x96xbf16>
    %c28 = arith.constant 28 : index
    %c0_56 = arith.constant 0 : index
    %c0_57 = arith.constant 0 : index
    %84 = vector.load %arg1[%c28, %c0_56, %c0_57] : memref<32x8x96xf32, #tpu.memory_space<vmem>>, vector<1x8x96xf32>
    %85 = vector.shape_cast %84 : vector<1x8x96xf32> to vector<8x96xf32>
    %86 = arith.truncf %85 : vector<8x96xf32> to vector<8x96xbf16>
    %c29 = arith.constant 29 : index
    %c0_58 = arith.constant 0 : index
    %c0_59 = arith.constant 0 : index
    %87 = vector.load %arg1[%c29, %c0_58, %c0_59] : memref<32x8x96xf32, #tpu.memory_space<vmem>>, vector<1x8x96xf32>
    %88 = vector.shape_cast %87 : vector<1x8x96xf32> to vector<8x96xf32>
    %89 = arith.truncf %88 : vector<8x96xf32> to vector<8x96xbf16>
    %c30 = arith.constant 30 : index
    %c0_60 = arith.constant 0 : index
    %c0_61 = arith.constant 0 : index
    %90 = vector.load %arg1[%c30, %c0_60, %c0_61] : memref<32x8x96xf32, #tpu.memory_space<vmem>>, vector<1x8x96xf32>
    %91 = vector.shape_cast %90 : vector<1x8x96xf32> to vector<8x96xf32>
    %92 = arith.truncf %91 : vector<8x96xf32> to vector<8x96xbf16>
    %c31 = arith.constant 31 : index
    %c0_62 = arith.constant 0 : index
    %c0_63 = arith.constant 0 : index
    %93 = vector.load %arg1[%c31, %c0_62, %c0_63] : memref<32x8x96xf32, #tpu.memory_space<vmem>>, vector<1x8x96xf32>
    %94 = vector.shape_cast %93 : vector<1x8x96xf32> to vector<8x96xf32>
    %95 = arith.truncf %94 : vector<8x96xf32> to vector<8x96xbf16>
    %cst = arith.constant 0.000000e+00 : bf16
    %96 = vector.broadcast %cst : bf16 to vector<8x96xbf16>
    %cst_64 = arith.constant 0.000000e+00 : f32
    %97 = vector.broadcast %cst_64 : f32 to vector<128x128xf32>
    %98 = tpu.concatenate %96, %5, %11, %17, %23, %29, %35, %41, %47, %53, %59, %65, %71, %77, %83, %89 in 0 : vector<8x96xbf16>, vector<8x96xbf16>, vector<8x96xbf16>, vector<8x96xbf16>, vector<8x96xbf16>, vector<8x96xbf16>, vector<8x96xbf16>, vector<8x96xbf16>, vector<8x96xbf16>, vector<8x96xbf16>, vector<8x96xbf16>, vector<8x96xbf16>, vector<8x96xbf16>, vector<8x96xbf16>, vector<8x96xbf16>, vector<8x96xbf16> -> vector<128x96xbf16>
    %c0_65 = arith.constant 0 : index
    %c0_66 = arith.constant 0 : index
    %c0_67 = arith.constant 0 : index
    %99 = vector.load %arg2[%c0_65, %c0_66, %c0_67] : memref<4x96x128xbf16, #tpu.memory_space<vmem>>, vector<1x96x128xbf16>
    %100 = vector.shape_cast %99 : vector<1x96x128xbf16> to vector<96x128xbf16>
    %cst_68 = arith.constant dense<0.000000e+00> : vector<128x128xf32>
    %101 = tpu.matmul %98, %100, %cst_68 {dimension_numbers = #tpu.dot_dimension_numbers<[1], [0], [0], [1], [0, 0, 1, 1], [], []>} : vector<128x96xbf16>, vector<96x128xbf16>, vector<128x128xf32> -> vector<128x128xf32>
    %102 = arith.addf %97, %101 : vector<128x128xf32>
    %103 = tpu.concatenate %2, %8, %14, %20, %26, %32, %38, %44, %50, %56, %62, %68, %74, %80, %86, %92 in 0 : vector<8x96xbf16>, vector<8x96xbf16>, vector<8x96xbf16>, vector<8x96xbf16>, vector<8x96xbf16>, vector<8x96xbf16>, vector<8x96xbf16>, vector<8x96xbf16>, vector<8x96xbf16>, vector<8x96xbf16>, vector<8x96xbf16>, vector<8x96xbf16>, vector<8x96xbf16>, vector<8x96xbf16>, vector<8x96xbf16>, vector<8x96xbf16> -> vector<128x96xbf16>
    %c1_69 = arith.constant 1 : index
    %c0_70 = arith.constant 0 : index
    %c0_71 = arith.constant 0 : index
    %104 = vector.load %arg2[%c1_69, %c0_70, %c0_71] : memref<4x96x128xbf16, #tpu.memory_space<vmem>>, vector<1x96x128xbf16>
    %105 = vector.shape_cast %104 : vector<1x96x128xbf16> to vector<96x128xbf16>
    %cst_72 = arith.constant dense<0.000000e+00> : vector<128x128xf32>
    %106 = tpu.matmul %103, %105, %cst_72 {dimension_numbers = #tpu.dot_dimension_numbers<[1], [0], [0], [1], [0, 0, 1, 1], [], []>} : vector<128x96xbf16>, vector<96x128xbf16>, vector<128x128xf32> -> vector<128x128xf32>
    %107 = arith.addf %102, %106 : vector<128x128xf32>
    %108 = tpu.concatenate %5, %11, %17, %23, %29, %35, %41, %47, %53, %59, %65, %71, %77, %83, %89, %95 in 0 : vector<8x96xbf16>, vector<8x96xbf16>, vector<8x96xbf16>, vector<8x96xbf16>, vector<8x96xbf16>, vector<8x96xbf16>, vector<8x96xbf16>, vector<8x96xbf16>, vector<8x96xbf16>, vector<8x96xbf16>, vector<8x96xbf16>, vector<8x96xbf16>, vector<8x96xbf16>, vector<8x96xbf16>, vector<8x96xbf16>, vector<8x96xbf16> -> vector<128x96xbf16>
    %c2_73 = arith.constant 2 : index
    %c0_74 = arith.constant 0 : index
    %c0_75 = arith.constant 0 : index
    %109 = vector.load %arg2[%c2_73, %c0_74, %c0_75] : memref<4x96x128xbf16, #tpu.memory_space<vmem>>, vector<1x96x128xbf16>
    %110 = vector.shape_cast %109 : vector<1x96x128xbf16> to vector<96x128xbf16>
    %cst_76 = arith.constant dense<0.000000e+00> : vector<128x128xf32>
    %111 = tpu.matmul %108, %110, %cst_76 {dimension_numbers = #tpu.dot_dimension_numbers<[1], [0], [0], [1], [0, 0, 1, 1], [], []>} : vector<128x96xbf16>, vector<96x128xbf16>, vector<128x128xf32> -> vector<128x128xf32>
    %112 = arith.addf %107, %111 : vector<128x128xf32>
    %113 = tpu.concatenate %8, %14, %20, %26, %32, %38, %44, %50, %56, %62, %68, %74, %80, %86, %92, %96 in 0 : vector<8x96xbf16>, vector<8x96xbf16>, vector<8x96xbf16>, vector<8x96xbf16>, vector<8x96xbf16>, vector<8x96xbf16>, vector<8x96xbf16>, vector<8x96xbf16>, vector<8x96xbf16>, vector<8x96xbf16>, vector<8x96xbf16>, vector<8x96xbf16>, vector<8x96xbf16>, vector<8x96xbf16>, vector<8x96xbf16>, vector<8x96xbf16> -> vector<128x96xbf16>
    %c3_77 = arith.constant 3 : index
    %c0_78 = arith.constant 0 : index
    %c0_79 = arith.constant 0 : index
    %114 = vector.load %arg2[%c3_77, %c0_78, %c0_79] : memref<4x96x128xbf16, #tpu.memory_space<vmem>>, vector<1x96x128xbf16>
    %115 = vector.shape_cast %114 : vector<1x96x128xbf16> to vector<96x128xbf16>
    %cst_80 = arith.constant dense<0.000000e+00> : vector<128x128xf32>
    %116 = tpu.matmul %113, %115, %cst_80 {dimension_numbers = #tpu.dot_dimension_numbers<[1], [0], [0], [1], [0, 0, 1, 1], [], []>} : vector<128x96xbf16>, vector<96x128xbf16>, vector<128x128xf32> -> vector<128x128xf32>
    %117 = arith.addf %112, %116 : vector<128x128xf32>
    %cst_81 = arith.constant 0.000000e+00 : f32
    %118 = vector.broadcast %cst_81 : f32 to vector<128x128xf32>
    %119 = arith.cmpf ogt, %117, %118 : vector<128x128xf32>
    %cst_82 = arith.constant 2.000000e-01 : f32
    %120 = vector.broadcast %cst_82 : f32 to vector<128x128xf32>
    %121 = arith.mulf %120, %117 : vector<128x128xf32>
    %122 = arith.select %119, %117, %121 : vector<128x128xi1>, vector<128x128xf32>
    %123 = arith.truncf %122 : vector<128x128xf32> to vector<128x128xbf16>
    %124 = vector.extract_strided_slice %123 {offsets = [0, 0], sizes = [8, 128], strides = [1, 1]} : vector<128x128xbf16> to vector<8x128xbf16>
    %125 = vector.extract_strided_slice %123 {offsets = [8, 0], sizes = [8, 128], strides = [1, 1]} : vector<128x128xbf16> to vector<8x128xbf16>
    %126 = vector.extract_strided_slice %123 {offsets = [16, 0], sizes = [8, 128], strides = [1, 1]} : vector<128x128xbf16> to vector<8x128xbf16>
    %127 = vector.extract_strided_slice %123 {offsets = [24, 0], sizes = [8, 128], strides = [1, 1]} : vector<128x128xbf16> to vector<8x128xbf16>
    %128 = vector.extract_strided_slice %123 {offsets = [32, 0], sizes = [8, 128], strides = [1, 1]} : vector<128x128xbf16> to vector<8x128xbf16>
    %129 = vector.extract_strided_slice %123 {offsets = [40, 0], sizes = [8, 128], strides = [1, 1]} : vector<128x128xbf16> to vector<8x128xbf16>
    %130 = vector.extract_strided_slice %123 {offsets = [48, 0], sizes = [8, 128], strides = [1, 1]} : vector<128x128xbf16> to vector<8x128xbf16>
    %131 = vector.extract_strided_slice %123 {offsets = [56, 0], sizes = [8, 128], strides = [1, 1]} : vector<128x128xbf16> to vector<8x128xbf16>
    %132 = vector.extract_strided_slice %123 {offsets = [64, 0], sizes = [8, 128], strides = [1, 1]} : vector<128x128xbf16> to vector<8x128xbf16>
    %133 = vector.extract_strided_slice %123 {offsets = [72, 0], sizes = [8, 128], strides = [1, 1]} : vector<128x128xbf16> to vector<8x128xbf16>
    %134 = vector.extract_strided_slice %123 {offsets = [80, 0], sizes = [8, 128], strides = [1, 1]} : vector<128x128xbf16> to vector<8x128xbf16>
    %135 = vector.extract_strided_slice %123 {offsets = [88, 0], sizes = [8, 128], strides = [1, 1]} : vector<128x128xbf16> to vector<8x128xbf16>
    %136 = vector.extract_strided_slice %123 {offsets = [96, 0], sizes = [8, 128], strides = [1, 1]} : vector<128x128xbf16> to vector<8x128xbf16>
    %137 = vector.extract_strided_slice %123 {offsets = [104, 0], sizes = [8, 128], strides = [1, 1]} : vector<128x128xbf16> to vector<8x128xbf16>
    %138 = vector.extract_strided_slice %123 {offsets = [112, 0], sizes = [8, 128], strides = [1, 1]} : vector<128x128xbf16> to vector<8x128xbf16>
    %139 = vector.extract_strided_slice %123 {offsets = [120, 0], sizes = [8, 128], strides = [1, 1]} : vector<128x128xbf16> to vector<8x128xbf16>
    %cst_83 = arith.constant 0.000000e+00 : bf16
    %140 = vector.broadcast %cst_83 : bf16 to vector<8x128xbf16>
    %cst_84 = arith.constant 0.000000e+00 : f32
    %141 = vector.broadcast %cst_84 : f32 to vector<64x128xf32>
    %142 = tpu.concatenate %140, %125, %127, %129, %131, %133, %135, %137 in 0 : vector<8x128xbf16>, vector<8x128xbf16>, vector<8x128xbf16>, vector<8x128xbf16>, vector<8x128xbf16>, vector<8x128xbf16>, vector<8x128xbf16>, vector<8x128xbf16> -> vector<64x128xbf16>
    %c0_85 = arith.constant 0 : index
    %c0_86 = arith.constant 0 : index
    %c0_87 = arith.constant 0 : index
    %143 = vector.load %arg3[%c0_85, %c0_86, %c0_87] : memref<4x128x128xbf16, #tpu.memory_space<vmem>>, vector<1x128x128xbf16>
    %144 = vector.shape_cast %143 : vector<1x128x128xbf16> to vector<128x128xbf16>
    %cst_88 = arith.constant dense<0.000000e+00> : vector<64x128xf32>
    %145 = tpu.matmul %142, %144, %cst_88 {dimension_numbers = #tpu.dot_dimension_numbers<[1], [0], [0], [1], [0, 0, 1, 1], [], []>} : vector<64x128xbf16>, vector<128x128xbf16>, vector<64x128xf32> -> vector<64x128xf32>
    %146 = arith.addf %141, %145 : vector<64x128xf32>
    %147 = tpu.concatenate %124, %126, %128, %130, %132, %134, %136, %138 in 0 : vector<8x128xbf16>, vector<8x128xbf16>, vector<8x128xbf16>, vector<8x128xbf16>, vector<8x128xbf16>, vector<8x128xbf16>, vector<8x128xbf16>, vector<8x128xbf16> -> vector<64x128xbf16>
    %c1_89 = arith.constant 1 : index
    %c0_90 = arith.constant 0 : index
    %c0_91 = arith.constant 0 : index
    %148 = vector.load %arg3[%c1_89, %c0_90, %c0_91] : memref<4x128x128xbf16, #tpu.memory_space<vmem>>, vector<1x128x128xbf16>
    %149 = vector.shape_cast %148 : vector<1x128x128xbf16> to vector<128x128xbf16>
    %cst_92 = arith.constant dense<0.000000e+00> : vector<64x128xf32>
    %150 = tpu.matmul %147, %149, %cst_92 {dimension_numbers = #tpu.dot_dimension_numbers<[1], [0], [0], [1], [0, 0, 1, 1], [], []>} : vector<64x128xbf16>, vector<128x128xbf16>, vector<64x128xf32> -> vector<64x128xf32>
    %151 = arith.addf %146, %150 : vector<64x128xf32>
    %152 = tpu.concatenate %125, %127, %129, %131, %133, %135, %137, %139 in 0 : vector<8x128xbf16>, vector<8x128xbf16>, vector<8x128xbf16>, vector<8x128xbf16>, vector<8x128xbf16>, vector<8x128xbf16>, vector<8x128xbf16>, vector<8x128xbf16> -> vector<64x128xbf16>
    %c2_93 = arith.constant 2 : index
    %c0_94 = arith.constant 0 : index
    %c0_95 = arith.constant 0 : index
    %153 = vector.load %arg3[%c2_93, %c0_94, %c0_95] : memref<4x128x128xbf16, #tpu.memory_space<vmem>>, vector<1x128x128xbf16>
    %154 = vector.shape_cast %153 : vector<1x128x128xbf16> to vector<128x128xbf16>
    %cst_96 = arith.constant dense<0.000000e+00> : vector<64x128xf32>
    %155 = tpu.matmul %152, %154, %cst_96 {dimension_numbers = #tpu.dot_dimension_numbers<[1], [0], [0], [1], [0, 0, 1, 1], [], []>} : vector<64x128xbf16>, vector<128x128xbf16>, vector<64x128xf32> -> vector<64x128xf32>
    %156 = arith.addf %151, %155 : vector<64x128xf32>
    %157 = tpu.concatenate %126, %128, %130, %132, %134, %136, %138, %140 in 0 : vector<8x128xbf16>, vector<8x128xbf16>, vector<8x128xbf16>, vector<8x128xbf16>, vector<8x128xbf16>, vector<8x128xbf16>, vector<8x128xbf16>, vector<8x128xbf16> -> vector<64x128xbf16>
    %c3_97 = arith.constant 3 : index
    %c0_98 = arith.constant 0 : index
    %c0_99 = arith.constant 0 : index
    %158 = vector.load %arg3[%c3_97, %c0_98, %c0_99] : memref<4x128x128xbf16, #tpu.memory_space<vmem>>, vector<1x128x128xbf16>
    %159 = vector.shape_cast %158 : vector<1x128x128xbf16> to vector<128x128xbf16>
    %cst_100 = arith.constant dense<0.000000e+00> : vector<64x128xf32>
    %160 = tpu.matmul %157, %159, %cst_100 {dimension_numbers = #tpu.dot_dimension_numbers<[1], [0], [0], [1], [0, 0, 1, 1], [], []>} : vector<64x128xbf16>, vector<128x128xbf16>, vector<64x128xf32> -> vector<64x128xf32>
    %161 = arith.addf %156, %160 : vector<64x128xf32>
    %cst_101 = arith.constant 0.000000e+00 : f32
    %162 = vector.broadcast %cst_101 : f32 to vector<64x128xf32>
    %163 = arith.cmpf ogt, %161, %162 : vector<64x128xf32>
    %cst_102 = arith.constant 2.000000e-01 : f32
    %164 = vector.broadcast %cst_102 : f32 to vector<64x128xf32>
    %165 = arith.mulf %164, %161 : vector<64x128xf32>
    %166 = arith.select %163, %161, %165 : vector<64x128xi1>, vector<64x128xf32>
    %167 = arith.truncf %166 : vector<64x128xf32> to vector<64x128xbf16>
    %168 = vector.extract_strided_slice %167 {offsets = [0, 0], sizes = [8, 128], strides = [1, 1]} : vector<64x128xbf16> to vector<8x128xbf16>
    %169 = vector.extract_strided_slice %167 {offsets = [8, 0], sizes = [8, 128], strides = [1, 1]} : vector<64x128xbf16> to vector<8x128xbf16>
    %170 = vector.extract_strided_slice %167 {offsets = [16, 0], sizes = [8, 128], strides = [1, 1]} : vector<64x128xbf16> to vector<8x128xbf16>
    %171 = vector.extract_strided_slice %167 {offsets = [24, 0], sizes = [8, 128], strides = [1, 1]} : vector<64x128xbf16> to vector<8x128xbf16>
    %172 = vector.extract_strided_slice %167 {offsets = [32, 0], sizes = [8, 128], strides = [1, 1]} : vector<64x128xbf16> to vector<8x128xbf16>
    %173 = vector.extract_strided_slice %167 {offsets = [40, 0], sizes = [8, 128], strides = [1, 1]} : vector<64x128xbf16> to vector<8x128xbf16>
    %174 = vector.extract_strided_slice %167 {offsets = [48, 0], sizes = [8, 128], strides = [1, 1]} : vector<64x128xbf16> to vector<8x128xbf16>
    %175 = vector.extract_strided_slice %167 {offsets = [56, 0], sizes = [8, 128], strides = [1, 1]} : vector<64x128xbf16> to vector<8x128xbf16>
    %cst_103 = arith.constant 0.000000e+00 : bf16
    %176 = vector.broadcast %cst_103 : bf16 to vector<8x128xbf16>
    %cst_104 = arith.constant 0.000000e+00 : f32
    %177 = vector.broadcast %cst_104 : f32 to vector<32x128xf32>
    %178 = tpu.concatenate %176, %169, %171, %173 in 0 : vector<8x128xbf16>, vector<8x128xbf16>, vector<8x128xbf16>, vector<8x128xbf16> -> vector<32x128xbf16>
    %c0_105 = arith.constant 0 : index
    %c0_106 = arith.constant 0 : index
    %c0_107 = arith.constant 0 : index
    %179 = vector.load %arg4[%c0_105, %c0_106, %c0_107] : memref<4x128x128xbf16, #tpu.memory_space<vmem>>, vector<1x128x128xbf16>
    %180 = vector.shape_cast %179 : vector<1x128x128xbf16> to vector<128x128xbf16>
    %cst_108 = arith.constant dense<0.000000e+00> : vector<32x128xf32>
    %181 = tpu.matmul %178, %180, %cst_108 {dimension_numbers = #tpu.dot_dimension_numbers<[1], [0], [0], [1], [0, 0, 1, 1], [], []>} : vector<32x128xbf16>, vector<128x128xbf16>, vector<32x128xf32> -> vector<32x128xf32>
    %182 = arith.addf %177, %181 : vector<32x128xf32>
    %183 = tpu.concatenate %168, %170, %172, %174 in 0 : vector<8x128xbf16>, vector<8x128xbf16>, vector<8x128xbf16>, vector<8x128xbf16> -> vector<32x128xbf16>
    %c1_109 = arith.constant 1 : index
    %c0_110 = arith.constant 0 : index
    %c0_111 = arith.constant 0 : index
    %184 = vector.load %arg4[%c1_109, %c0_110, %c0_111] : memref<4x128x128xbf16, #tpu.memory_space<vmem>>, vector<1x128x128xbf16>
    %185 = vector.shape_cast %184 : vector<1x128x128xbf16> to vector<128x128xbf16>
    %cst_112 = arith.constant dense<0.000000e+00> : vector<32x128xf32>
    %186 = tpu.matmul %183, %185, %cst_112 {dimension_numbers = #tpu.dot_dimension_numbers<[1], [0], [0], [1], [0, 0, 1, 1], [], []>} : vector<32x128xbf16>, vector<128x128xbf16>, vector<32x128xf32> -> vector<32x128xf32>
    %187 = arith.addf %182, %186 : vector<32x128xf32>
    %188 = tpu.concatenate %169, %171, %173, %175 in 0 : vector<8x128xbf16>, vector<8x128xbf16>, vector<8x128xbf16>, vector<8x128xbf16> -> vector<32x128xbf16>
    %c2_113 = arith.constant 2 : index
    %c0_114 = arith.constant 0 : index
    %c0_115 = arith.constant 0 : index
    %189 = vector.load %arg4[%c2_113, %c0_114, %c0_115] : memref<4x128x128xbf16, #tpu.memory_space<vmem>>, vector<1x128x128xbf16>
    %190 = vector.shape_cast %189 : vector<1x128x128xbf16> to vector<128x128xbf16>
    %cst_116 = arith.constant dense<0.000000e+00> : vector<32x128xf32>
    %191 = tpu.matmul %188, %190, %cst_116 {dimension_numbers = #tpu.dot_dimension_numbers<[1], [0], [0], [1], [0, 0, 1, 1], [], []>} : vector<32x128xbf16>, vector<128x128xbf16>, vector<32x128xf32> -> vector<32x128xf32>
    %192 = arith.addf %187, %191 : vector<32x128xf32>
    %193 = tpu.concatenate %170, %172, %174, %176 in 0 : vector<8x128xbf16>, vector<8x128xbf16>, vector<8x128xbf16>, vector<8x128xbf16> -> vector<32x128xbf16>
    %c3_117 = arith.constant 3 : index
    %c0_118 = arith.constant 0 : index
    %c0_119 = arith.constant 0 : index
    %194 = vector.load %arg4[%c3_117, %c0_118, %c0_119] : memref<4x128x128xbf16, #tpu.memory_space<vmem>>, vector<1x128x128xbf16>
    %195 = vector.shape_cast %194 : vector<1x128x128xbf16> to vector<128x128xbf16>
    %cst_120 = arith.constant dense<0.000000e+00> : vector<32x128xf32>
    %196 = tpu.matmul %193, %195, %cst_120 {dimension_numbers = #tpu.dot_dimension_numbers<[1], [0], [0], [1], [0, 0, 1, 1], [], []>} : vector<32x128xbf16>, vector<128x128xbf16>, vector<32x128xf32> -> vector<32x128xf32>
    %197 = arith.addf %192, %196 : vector<32x128xf32>
    %cst_121 = arith.constant 0.000000e+00 : f32
    %198 = vector.broadcast %cst_121 : f32 to vector<32x128xf32>
    %199 = arith.cmpf ogt, %197, %198 : vector<32x128xf32>
    %cst_122 = arith.constant 2.000000e-01 : f32
    %200 = vector.broadcast %cst_122 : f32 to vector<32x128xf32>
    %201 = arith.mulf %200, %197 : vector<32x128xf32>
    %202 = arith.select %199, %197, %201 : vector<32x128xi1>, vector<32x128xf32>
    %203 = arith.truncf %202 : vector<32x128xf32> to vector<32x128xbf16>
    %204 = vector.extract_strided_slice %203 {offsets = [0, 0], sizes = [8, 128], strides = [1, 1]} : vector<32x128xbf16> to vector<8x128xbf16>
    %205 = vector.extract_strided_slice %203 {offsets = [8, 0], sizes = [8, 128], strides = [1, 1]} : vector<32x128xbf16> to vector<8x128xbf16>
    %206 = vector.extract_strided_slice %203 {offsets = [16, 0], sizes = [8, 128], strides = [1, 1]} : vector<32x128xbf16> to vector<8x128xbf16>
    %207 = vector.extract_strided_slice %203 {offsets = [24, 0], sizes = [8, 128], strides = [1, 1]} : vector<32x128xbf16> to vector<8x128xbf16>
    %cst_123 = arith.constant 0.000000e+00 : bf16
    %208 = vector.broadcast %cst_123 : bf16 to vector<8x128xbf16>
    %cst_124 = arith.constant 0.000000e+00 : f32
    %209 = vector.broadcast %cst_124 : f32 to vector<16x128xf32>
    %210 = tpu.concatenate %208, %205 in 0 : vector<8x128xbf16>, vector<8x128xbf16> -> vector<16x128xbf16>
    %c0_125 = arith.constant 0 : index
    %c0_126 = arith.constant 0 : index
    %c0_127 = arith.constant 0 : index
    %211 = vector.load %arg5[%c0_125, %c0_126, %c0_127] : memref<4x128x128xbf16, #tpu.memory_space<vmem>>, vector<1x128x128xbf16>
    %212 = vector.shape_cast %211 : vector<1x128x128xbf16> to vector<128x128xbf16>
    %cst_128 = arith.constant dense<0.000000e+00> : vector<16x128xf32>
    %213 = tpu.matmul %210, %212, %cst_128 {dimension_numbers = #tpu.dot_dimension_numbers<[1], [0], [0], [1], [0, 0, 1, 1], [], []>} : vector<16x128xbf16>, vector<128x128xbf16>, vector<16x128xf32> -> vector<16x128xf32>
    %214 = arith.addf %209, %213 : vector<16x128xf32>
    %215 = tpu.concatenate %204, %206 in 0 : vector<8x128xbf16>, vector<8x128xbf16> -> vector<16x128xbf16>
    %c1_129 = arith.constant 1 : index
    %c0_130 = arith.constant 0 : index
    %c0_131 = arith.constant 0 : index
    %216 = vector.load %arg5[%c1_129, %c0_130, %c0_131] : memref<4x128x128xbf16, #tpu.memory_space<vmem>>, vector<1x128x128xbf16>
    %217 = vector.shape_cast %216 : vector<1x128x128xbf16> to vector<128x128xbf16>
    %cst_132 = arith.constant dense<0.000000e+00> : vector<16x128xf32>
    %218 = tpu.matmul %215, %217, %cst_132 {dimension_numbers = #tpu.dot_dimension_numbers<[1], [0], [0], [1], [0, 0, 1, 1], [], []>} : vector<16x128xbf16>, vector<128x128xbf16>, vector<16x128xf32> -> vector<16x128xf32>
    %219 = arith.addf %214, %218 : vector<16x128xf32>
    %220 = tpu.concatenate %205, %207 in 0 : vector<8x128xbf16>, vector<8x128xbf16> -> vector<16x128xbf16>
    %c2_133 = arith.constant 2 : index
    %c0_134 = arith.constant 0 : index
    %c0_135 = arith.constant 0 : index
    %221 = vector.load %arg5[%c2_133, %c0_134, %c0_135] : memref<4x128x128xbf16, #tpu.memory_space<vmem>>, vector<1x128x128xbf16>
    %222 = vector.shape_cast %221 : vector<1x128x128xbf16> to vector<128x128xbf16>
    %cst_136 = arith.constant dense<0.000000e+00> : vector<16x128xf32>
    %223 = tpu.matmul %220, %222, %cst_136 {dimension_numbers = #tpu.dot_dimension_numbers<[1], [0], [0], [1], [0, 0, 1, 1], [], []>} : vector<16x128xbf16>, vector<128x128xbf16>, vector<16x128xf32> -> vector<16x128xf32>
    %224 = arith.addf %219, %223 : vector<16x128xf32>
    %225 = tpu.concatenate %206, %208 in 0 : vector<8x128xbf16>, vector<8x128xbf16> -> vector<16x128xbf16>
    %c3_137 = arith.constant 3 : index
    %c0_138 = arith.constant 0 : index
    %c0_139 = arith.constant 0 : index
    %226 = vector.load %arg5[%c3_137, %c0_138, %c0_139] : memref<4x128x128xbf16, #tpu.memory_space<vmem>>, vector<1x128x128xbf16>
    %227 = vector.shape_cast %226 : vector<1x128x128xbf16> to vector<128x128xbf16>
    %cst_140 = arith.constant dense<0.000000e+00> : vector<16x128xf32>
    %228 = tpu.matmul %225, %227, %cst_140 {dimension_numbers = #tpu.dot_dimension_numbers<[1], [0], [0], [1], [0, 0, 1, 1], [], []>} : vector<16x128xbf16>, vector<128x128xbf16>, vector<16x128xf32> -> vector<16x128xf32>
    %229 = arith.addf %224, %228 : vector<16x128xf32>
    %cst_141 = arith.constant 0.000000e+00 : f32
    %230 = vector.broadcast %cst_141 : f32 to vector<16x128xf32>
    %231 = arith.cmpf ogt, %229, %230 : vector<16x128xf32>
    %cst_142 = arith.constant 2.000000e-01 : f32
    %232 = vector.broadcast %cst_142 : f32 to vector<16x128xf32>
    %233 = arith.mulf %232, %229 : vector<16x128xf32>
    %234 = arith.select %231, %229, %233 : vector<16x128xi1>, vector<16x128xf32>
    %235 = arith.truncf %234 : vector<16x128xf32> to vector<16x128xbf16>
    %236 = vector.extract_strided_slice %235 {offsets = [0, 0], sizes = [8, 128], strides = [1, 1]} : vector<16x128xbf16> to vector<8x128xbf16>
    %237 = vector.extract_strided_slice %235 {offsets = [8, 0], sizes = [8, 128], strides = [1, 1]} : vector<16x128xbf16> to vector<8x128xbf16>
    %cst_143 = arith.constant 0.000000e+00 : f32
    %238 = vector.broadcast %cst_143 : f32 to vector<8x128xf32>
    %c1_144 = arith.constant 1 : index
    %c0_145 = arith.constant 0 : index
    %c0_146 = arith.constant 0 : index
    %239 = vector.load %arg6[%c1_144, %c0_145, %c0_146] : memref<4x128x128xbf16, #tpu.memory_space<vmem>>, vector<1x128x128xbf16>
    %240 = vector.shape_cast %239 : vector<1x128x128xbf16> to vector<128x128xbf16>
    %cst_147 = arith.constant dense<0.000000e+00> : vector<8x128xf32>
    %241 = tpu.matmul %236, %240, %cst_147 {dimension_numbers = #tpu.dot_dimension_numbers<[1], [0], [0], [1], [0, 0, 1, 1], [], []>} : vector<8x128xbf16>, vector<128x128xbf16>, vector<8x128xf32> -> vector<8x128xf32>
    %242 = arith.addf %238, %241 : vector<8x128xf32>
    %c2_148 = arith.constant 2 : index
    %c0_149 = arith.constant 0 : index
    %c0_150 = arith.constant 0 : index
    %243 = vector.load %arg6[%c2_148, %c0_149, %c0_150] : memref<4x128x128xbf16, #tpu.memory_space<vmem>>, vector<1x128x128xbf16>
    %244 = vector.shape_cast %243 : vector<1x128x128xbf16> to vector<128x128xbf16>
    %cst_151 = arith.constant dense<0.000000e+00> : vector<8x128xf32>
    %245 = tpu.matmul %237, %244, %cst_151 {dimension_numbers = #tpu.dot_dimension_numbers<[1], [0], [0], [1], [0, 0, 1, 1], [], []>} : vector<8x128xbf16>, vector<128x128xbf16>, vector<8x128xf32> -> vector<8x128xf32>
    %246 = arith.addf %242, %245 : vector<8x128xf32>
    %247 = vector.extract_strided_slice %246 {offsets = [0, 0], sizes = [8, 1], strides = [1, 1]} : vector<8x128xf32> to vector<8x1xf32>
    %c0_152 = arith.constant 0 : index
    %c0_153 = arith.constant 0 : index
    %248 = vector.load %arg7[%c0_152, %c0_153] : memref<8x1xf32, #tpu.memory_space<vmem>>, vector<8x1xf32>
    tpu.vector_store %arg7[%c0_152, %c0_153], %247 {strides = array<i32>} : memref<8x1xf32, #tpu.memory_space<vmem>>, vector<8x1xf32>,
    return
  }
  func.func @transform_0(%arg0: i32) -> (i32, i32, i32) {
    %c0_i32 = arith.constant 0 : i32
    %c0_i32_0 = arith.constant 0 : i32
    %c0_i32_1 = arith.constant 0 : i32
    return %c0_i32, %arg0, %c0_i32_0 : i32, i32, i32
  }
  func.func @transform_1(%arg0: i32) -> (i32, i32, i32) {
    %c0_i32 = arith.constant 0 : i32
    %c0_i32_0 = arith.constant 0 : i32
    %c0_i32_1 = arith.constant 0 : i32
    %c0_i32_2 = arith.constant 0 : i32
    return %c0_i32, %c0_i32_0, %c0_i32_1 : i32, i32, i32
  }
  func.func @transform_2(%arg0: i32) -> (i32, i32, i32) {
    %c0_i32 = arith.constant 0 : i32
    %c0_i32_0 = arith.constant 0 : i32
    %c0_i32_1 = arith.constant 0 : i32
    %c0_i32_2 = arith.constant 0 : i32
    return %c0_i32, %c0_i32_0, %c0_i32_1 : i32, i32, i32
  }
  func.func @transform_3(%arg0: i32) -> (i32, i32, i32) {
    %c0_i32 = arith.constant 0 : i32
    %c0_i32_0 = arith.constant 0 : i32
    %c0_i32_1 = arith.constant 0 : i32
    %c0_i32_2 = arith.constant 0 : i32
    return %c0_i32, %c0_i32_0, %c0_i32_1 : i32, i32, i32
  }
  func.func @transform_4(%arg0: i32) -> (i32, i32, i32) {
    %c0_i32 = arith.constant 0 : i32
    %c0_i32_0 = arith.constant 0 : i32
    %c0_i32_1 = arith.constant 0 : i32
    %c0_i32_2 = arith.constant 0 : i32
    return %c0_i32, %c0_i32_0, %c0_i32_1 : i32, i32, i32
  }
  func.func @transform_5(%arg0: i32) -> (i32, i32, i32) {
    %c0_i32 = arith.constant 0 : i32
    %c0_i32_0 = arith.constant 0 : i32
    %c0_i32_1 = arith.constant 0 : i32
    %c0_i32_2 = arith.constant 0 : i32
    return %c0_i32, %c0_i32_0, %c0_i32_1 : i32, i32, i32
  }
  func.func @transform_6(%arg0: i32) -> (i32, i32) {
    %c0_i32 = arith.constant 0 : i32
    %c0_i32_0 = arith.constant 0 : i32
    return %arg0, %c0_i32 : i32, i32
  }
}

</mosaic_0001>

<llo_original>
// kernel: _lambda_.1
$region0: #{_lambda_.1}
  #allocation0 [shape = 'u32[]', space=smem, size = 0x4, offset = 0x4, fixed_abs, tag = 'smem constant byte address 0x4 - core index']
  #allocation1 [shape = 'u32[144,128]{1,0:T(1,128)}', space=vmem, size = 0x12000, scoped, tag = 'internal scratch']
  %s0 = inlined_call_operand.vmem [shape: f32[32,32,96], index: 0, kind: input, shape index: {}]
  %s1 = inlined_call_operand.vmem [shape: bf16[4,96,128], index: 1, kind: input, shape index: {}]
  %s2 = inlined_call_operand.vmem [shape: bf16[4,128,128], index: 2, kind: input, shape index: {}]
  %s3 = inlined_call_operand.vmem [shape: bf16[4,128,128], index: 3, kind: input, shape index: {}]
  %s4 = inlined_call_operand.vmem [shape: bf16[4,128,128], index: 4, kind: input, shape index: {}]
  %s5 = inlined_call_operand.vmem [shape: bf16[4,128,128], index: 5, kind: input, shape index: {}]
  %s6 = inlined_call_operand.vmem [shape: f32[32,1], index: 6, kind: output, shape index: {}]
  %s7 = sld [smem:[#allocation0]]
  $region95: #{_lambda_.1} parent=0
    _
  %s9 = ssub.s32 1, %s7
  %s10 = scalar_select 0, %s9, %s7
  $region1: #{_lambda_.1} parent=0
    #allocation2 [shape = 'u8[262144]{0}', space=vmem, size = 0x40000, scoped, tag = 'input window, operand 0']
    loop: start=0, step=1, limit=6
    $region2: #{_lambda_.1} parent=1 // loop_pre_header
      _
    $region3: #{_lambda_.1} parent=1 // loop_header
      %s12 = sphi 0, %s16
      %p13 = scmp.ge.s32.totalorder %s12, 6
      %s22 = sphi 0, %s24
      %s25 = sphi 0, %s22
      %s26 = sphi 0, %s25
      %s42 = sphi 0, %s26
      %s46 = sphi 0, %s46
      %s48 = sphi 0, %s46
      %s49 = sphi 0, %s48
      %s63 = sphi 0, %s49
      %s67 = sphi 0, %s67
      %s69 = sphi 0, %s67
      %s70 = sphi 0, %s69
      %s84 = sphi 0, %s70
      %s88 = sphi 0, %s88
      %s90 = sphi 0, %s88
      %s91 = sphi 0, %s90
      %s105 = sphi 0, %s91
      %s109 = sphi 0, %s109
      %s111 = sphi 0, %s109
      %s112 = sphi 0, %s111
      %s126 = sphi 0, %s112
      %s130 = sphi 0, %s130
      %s132 = sphi 0, %s130
      %s133 = sphi 0, %s132
      %s147 = sphi 0, %s133
      %s153 = sphi 0, %s155
      %s156 = sphi 0, %s153
      %s157 = sphi 0, %s156
      %s173 = sphi 0, %s157
    $region4: #{_lambda_.1} parent=1 // loop_header_branch
      %15 = sbr.rel (%p13) target = $region8
    $region5: #{_lambda_.1} parent=1 // loop_body
      %s17 = ssub.s32 %s12, 1
      %s18 = ssub.s32 %s12, 2
      %s19 = sadd.s32 %s12, 1
      %s20 = ssub.s32 %s12, %s19
      %p21 = scmp.eq.s32.totalorder %s20, 0
      %s23 = sadd.s32 %s22, 1
      %s24 = scalar_select %p21, %s22, %s23
      %p27 = pneg %p21
      %p28 = scmp.eq.s32.totalorder %s12, 3
      %p29 = por %p27, %p28
      %p30 = scmp.ne.s32.totalorder %s22, %s25
      %p31 = scmp.eq.s32.totalorder %s12, 0
      %p32 = por %p30, %p31
      %p33 = scmp.ne.s32.totalorder %s22, %s25
      %p34 = scmp.eq.s32.totalorder %s17, 3
      %p35 = por %p33, %p34
      %p36 = scmp.ne.s32.totalorder %s25, %s26
      %p37 = scmp.eq.s32.totalorder %s17, 0
      %p38 = por %p36, %p37
      %p39 = scmp.ne.s32.totalorder %s25, %s26
      %p40 = scmp.eq.s32.totalorder %s18, 3
      %p41 = por %p39, %p40
      %p43 = scmp.ne.s32.totalorder %s26, %s42
      %p44 = scmp.eq.s32.totalorder %s18, 0
      %p45 = por %p43, %p44
      %s47 = sadd.s32 %s46, 1
      %p50 = scmp.eq.s32.totalorder %s12, 3
      %p51 = scmp.ne.s32.totalorder %s46, %s48
      %p52 = scmp.eq.s32.totalorder %s12, 0
      %p53 = por %p51, %p52
      %p54 = scmp.ne.s32.totalorder %s46, %s48
      %p55 = scmp.eq.s32.totalorder %s17, 3
      %p56 = por %p54, %p55
      %p57 = scmp.ne.s32.totalorder %s48, %s49
      %p58 = scmp.eq.s32.totalorder %s17, 0
      %p59 = por %p57, %p58
      %p60 = scmp.ne.s32.totalorder %s48, %s49
      %p61 = scmp.eq.s32.totalorder %s18, 3
      %p62 = por %p60, %p61
      %p64 = scmp.ne.s32.totalorder %s49, %s63
      %p65 = scmp.eq.s32.totalorder %s18, 0
      %p66 = por %p64, %p65
      %s68 = sadd.s32 %s67, 1
      %p71 = scmp.eq.s32.totalorder %s12, 3
      %p72 = scmp.ne.s32.totalorder %s67, %s69
      %p73 = scmp.eq.s32.totalorder %s12, 0
      %p74 = por %p72, %p73
      %p75 = scmp.ne.s32.totalorder %s67, %s69
      %p76 = scmp.eq.s32.totalorder %s17, 3
      %p77 = por %p75, %p76
      %p78 = scmp.ne.s32.totalorder %s69, %s70
      %p79 = scmp.eq.s32.totalorder %s17, 0
      %p80 = por %p78, %p79
      %p81 = scmp.ne.s32.totalorder %s69, %s70
      %p82 = scmp.eq.s32.totalorder %s18, 3
      %p83 = por %p81, %p82
      %p85 = scmp.ne.s32.totalorder %s70, %s84
      %p86 = scmp.eq.s32.totalorder %s18, 0
      %p87 = por %p85, %p86
      %s89 = sadd.s32 %s88, 1
      %p92 = scmp.eq.s32.totalorder %s12, 3
      %p93 = scmp.ne.s32.totalorder %s88, %s90
      %p94 = scmp.eq.s32.totalorder %s12, 0
      %p95 = por %p93, %p94
      %p96 = scmp.ne.s32.totalorder %s88, %s90
      %p97 = scmp.eq.s32.totalorder %s17, 3
      %p98 = por %p96, %p97
      %p99 = scmp.ne.s32.totalorder %s90, %s91
      %p100 = scmp.eq.s32.totalorder %s17, 0
      %p101 = por %p99, %p100
      %p102 = scmp.ne.s32.totalorder %s90, %s91
      %p103 = scmp.eq.s32.totalorder %s18, 3
      %p104 = por %p102, %p103
      %p106 = scmp.ne.s32.totalorder %s91, %s105
      %p107 = scmp.eq.s32.totalorder %s18, 0
      %p108 = por %p106, %p107
      %s110 = sadd.s32 %s109, 1
      %p113 = scmp.eq.s32.totalorder %s12, 3
      %p114 = scmp.ne.s32.totalorder %s109, %s111
      %p115 = scmp.eq.s32.totalorder %s12, 0
      %p116 = por %p114, %p115
      %p117 = scmp.ne.s32.totalorder %s109, %s111
      %p118 = scmp.eq.s32.totalorder %s17, 3
      %p119 = por %p117, %p118
      %p120 = scmp.ne.s32.totalorder %s111, %s112
      %p121 = scmp.eq.s32.totalorder %s17, 0
      %p122 = por %p120, %p121
      %p123 = scmp.ne.s32.totalorder %s111, %s112
      %p124 = scmp.eq.s32.totalorder %s18, 3
      %p125 = por %p123, %p124
      %p127 = scmp.ne.s32.totalorder %s112, %s126
      %p128 = scmp.eq.s32.totalorder %s18, 0
      %p129 = por %p127, %p128
      %s131 = sadd.s32 %s130, 1
      %p134 = scmp.eq.s32.totalorder %s12, 3
      %p135 = scmp.ne.s32.totalorder %s130, %s132
      %p136 = scmp.eq.s32.totalorder %s12, 0
      %p137 = por %p135, %p136
      %p138 = scmp.ne.s32.totalorder %s130, %s132
      %p139 = scmp.eq.s32.totalorder %s17, 3
      %p140 = por %p138, %p139
      %p141 = scmp.ne.s32.totalorder %s132, %s133
      %p142 = scmp.eq.s32.totalorder %s17, 0
      %p143 = por %p141, %p142
      %p144 = scmp.ne.s32.totalorder %s132, %s133
      %p145 = scmp.eq.s32.totalorder %s18, 3
      %p146 = por %p144, %p145
      %p148 = scmp.ne.s32.totalorder %s133, %s147
      %p149 = scmp.eq.s32.totalorder %s18, 0
      %p150 = por %p148, %p149
      %s151 = ssub.s32 %s12, %s19
      %p152 = scmp.eq.s32.totalorder %s151, 0
      %s154 = sadd.s32 %s153, 1
      %s155 = scalar_select %p152, %s153, %s154
      %p158 = pneg %p152
      %p159 = scmp.eq.s32.totalorder %s12, 3
      %p160 = por %p158, %p159
      %p161 = scmp.ne.s32.totalorder %s153, %s156
      %p162 = scmp.eq.s32.totalorder %s12, 0
      %p163 = por %p161, %p162
      %p164 = scmp.ne.s32.totalorder %s153, %s156
      %p165 = scmp.eq.s32.totalorder %s17, 3
      %p166 = por %p164, %p165
      %p167 = scmp.ne.s32.totalorder %s156, %s157
      %p168 = scmp.eq.s32.totalorder %s17, 0
      %p169 = por %p167, %p168
      %p170 = scmp.ne.s32.totalorder %s156, %s157
      %p171 = scmp.eq.s32.totalorder %s18, 3
      %p172 = por %p170, %p171
      %p174 = scmp.ne.s32.totalorder %s157, %s173
      %p175 = scmp.eq.s32.totalorder %s18, 0
      %p176 = por %p174, %p175
      %p177 = scmp.le.s32.totalorder 1, %s12
      %p178 = scmp.lt.s32.totalorder %s12, 5
      %p179 = pnand %p177, %p178
      %p180 = pneg %p179
      // Predicated region
      $region9: #{_lambda_.1} parent=5 // pred_check
        _
      $region10: #{_lambda_.1} parent=5 // pred_check_branch
        %182 = sbr.rel (%p179) target = $region12
      $region11: #{_lambda_.1} parent=5 // pred_region
        %s183 = ssub.s32 %s12, 1
        // Predicated region
        $region13: #{_lambda_.1} parent=11 // pred_check
          %p184 = pneg %p59
        $region14: #{_lambda_.1} parent=11 // pred_check_branch
          %186 = sbr.rel (%p184) target = $region16
        $region15: #{_lambda_.1} parent=11 // pred_region
          _
        $region16: #{_lambda_.1} parent=11 // pred_fallthru
          _
        // Predicated region
        $region17: #{_lambda_.1} parent=11 // pred_check
          %p187 = pneg %p80
        $region18: #{_lambda_.1} parent=11 // pred_check_branch
          %189 = sbr.rel (%p187) target = $region20
        $region19: #{_lambda_.1} parent=11 // pred_region
          _
        $region20: #{_lambda_.1} parent=11 // pred_fallthru
          _
        // Predicated region
        $region21: #{_lambda_.1} parent=11 // pred_check
          %p190 = pneg %p101
        $region22: #{_lambda_.1} parent=11 // pred_check_branch
          %192 = sbr.rel (%p190) target = $region24
        $region23: #{_lambda_.1} parent=11 // pred_region
          _
        $region24: #{_lambda_.1} parent=11 // pred_fallthru
          _
        // Predicated region
        $region25: #{_lambda_.1} parent=11 // pred_check
          %p193 = pneg %p122
        $region26: #{_lambda_.1} parent=11 // pred_check_branch
          %195 = sbr.rel (%p193) target = $region28
        $region27: #{_lambda_.1} parent=11 // pred_region
          _
        $region28: #{_lambda_.1} parent=11 // pred_fallthru
          _
        // Predicated region
        $region29: #{_lambda_.1} parent=11 // pred_check
          %p196 = pneg %p143
        $region30: #{_lambda_.1} parent=11 // pred_check_branch
          %198 = sbr.rel (%p196) target = $region32
        $region31: #{_lambda_.1} parent=11 // pred_region
          _
        $region32: #{_lambda_.1} parent=11 // pred_fallthru
          _
      $region12: #{_lambda_.1} parent=5 // pred_fallthru
        _
      %p199 = scmp.lt.s32.totalorder %s12, 4
      // Predicated region
      $region33: #{_lambda_.1} parent=5 // pred_check
        %p200 = pneg %p199
      $region34: #{_lambda_.1} parent=5 // pred_check_branch
        %202 = sbr.rel (%p200) target = $region36
      $region35: #{_lambda_.1} parent=5 // pred_region
        // Predicated region
        $region37: #{_lambda_.1} parent=35 // pred_check
          %p203 = pneg %p32
        $region38: #{_lambda_.1} parent=35 // pred_check_branch
          %205 = sbr.rel (%p203) target = $region40
        $region39: #{_lambda_.1} parent=35 // pred_region
          %s206 = sand.u32 %s22, 1
          %s207 = sand.u32 %s22, 1
          %s208 = smul.addr %s207, 256
          %s209 = scalar_lea.vmem [#allocation2], %s208
          %s210 = smul.addr %s12, 8
          %s211 = scalar_lea.vmem %s0, %s210
          // Predicated region
          $region41: #{_lambda_.1} parent=39 // pred_check
            _
          $region42: #{_lambda_.1} parent=39 // pred_check_branch
            %213 = sbr.rel (0) target = $region44
          $region43: #{_lambda_.1} parent=39 // pred_region
            // Predicated region
            $region45: #{_lambda_.1} parent=43 // pred_check
              _
            $region46: #{_lambda_.1} parent=43 // pred_check_branch
              %215 = sbr.rel (0) target = $region48
            $region47: #{_lambda_.1} parent=43 // pred_region
              // Predicated region
              $region60: #{_lambda_.1} parent=47 // pred_check
                _
              $region61: #{_lambda_.1} parent=47 // pred_check_branch
                %292 = sbr.rel (0) target = $region63
              $region62: #{_lambda_.1} parent=47 // pred_region
                loop: start=0, step=1, limit=1
                $region64: #{_lambda_.1} parent=62 // loop_pre_header
                  _
                $region65: #{_lambda_.1} parent=62 // loop_header
                  %s294 = sphi 0, %s298
                  %p295 = scmp.ge.s32.totalorder %s294, 1
                  %s299 = sphi %s211, %s211
                  %s300 = sphi %s209, %s209
                $region66: #{_lambda_.1} parent=62 // loop_header_branch
                  %297 = sbr.rel (%p295) target = $region70
                $region67: #{_lambda_.1} parent=62 // loop_body
                  %v301 = vld [vmem:[%s299] sm:$0xff]
                  %302 = vst [vmem:[%s300] sm:$0xff] %v301
                  %v303 = vld [vmem:[%s299 + $0x20] sm:$0xff]
                  %304 = vst [vmem:[%s300 + $0x8] sm:$0xff] %v303
                  %v305 = vld [vmem:[%s299 + $0x40] sm:$0xff]
                  %306 = vst [vmem:[%s300 + $0x10] sm:$0xff] %v305
                  %v307 = vld [vmem:[%s299 + $0x60] sm:$0xff]
                  %308 = vst [vmem:[%s300 + $0x18] sm:$0xff] %v307
                  %v309 = vld [vmem:[%s299 + $0x80] sm:$0xff]
                  %310 = vst [vmem:[%s300 + $0x20] sm:$0xff] %v309
                  %v311 = vld [vmem:[%s299 + $0xa0] sm:$0xff]
                  %312 = vst [vmem:[%s300 + $0x28] sm:$0xff] %v311
                  %v313 = vld [vmem:[%s299 + $0xc0] sm:$0xff]
                  %314 = vst [vmem:[%s300 + $0x30] sm:$0xff] %v313
                  %v315 = vld [vmem:[%s299 + $0xe0] sm:$0xff]
                  %316 = vst [vmem:[%s300 + $0x38] sm:$0xff] %v315
                  %v317 = vld [vmem:[%s299 + $0x100] sm:$0xff]
                  %318 = vst [vmem:[%s300 + $0x40] sm:$0xff] %v317
                  %v319 = vld [vmem:[%s299 + $0x120] sm:$0xff]
                  %320 = vst [vmem:[%s300 + $0x48] sm:$0xff] %v319
                  %v321 = vld [vmem:[%s299 + $0x140] sm:$0xff]
                  %322 = vst [vmem:[%s300 + $0x50] sm:$0xff] %v321
                  %v323 = vld [vmem:[%s299 + $0x160] sm:$0xff]
                  %324 = vst [vmem:[%s300 + $0x58] sm:$0xff] %v323
                  %v325 = vld [vmem:[%s299 + $0x180] sm:$0xff]
                  %326 = vst [vmem:[%s300 + $0x60] sm:$0xff] %v325
                  %v327 = vld [vmem:[%s299 + $0x1a0] sm:$0xff]
                  %328 = vst [vmem:[%s300 + $0x68] sm:$0xff] %v327
                  %v329 = vld [vmem:[%s299 + $0x1c0] sm:$0xff]
                  %330 = vst [vmem:[%s300 + $0x70] sm:$0xff] %v329
                  %v331 = vld [vmem:[%s299 + $0x1e0] sm:$0xff]
                  %332 = vst [vmem:[%s300 + $0x78] sm:$0xff] %v331
                  %v333 = vld [vmem:[%s299 + $0x200] sm:$0xff]
                  %334 = vst [vmem:[%s300 + $0x80] sm:$0xff] %v333
                  %v335 = vld [vmem:[%s299 + $0x220] sm:$0xff]
                  %336 = vst [vmem:[%s300 + $0x88] sm:$0xff] %v335
                  %v337 = vld [vmem:[%s299 + $0x240] sm:$0xff]
                  %338 = vst [vmem:[%s300 + $0x90] sm:$0xff] %v337
                  %v339 = vld [vmem:[%s299 + $0x260] sm:$0xff]
                  %340 = vst [vmem:[%s300 + $0x98] sm:$0xff] %v339
                  %v341 = vld [vmem:[%s299 + $0x280] sm:$0xff]
                  %342 = vst [vmem:[%s300 + $0xa0] sm:$0xff] %v341
                  %v343 = vld [vmem:[%s299 + $0x2a0] sm:$0xff]
                  %344 = vst [vmem:[%s300 + $0xa8] sm:$0xff] %v343
                  %v345 = vld [vmem:[%s299 + $0x2c0] sm:$0xff]
                  %346 = vst [vmem:[%s300 + $0xb0] sm:$0xff] %v345
                  %v347 = vld [vmem:[%s299 + $0x2e0] sm:$0xff]
                  %348 = vst [vmem:[%s300 + $0xb8] sm:$0xff] %v347
                  %v349 = vld [vmem:[%s299 + $0x300] sm:$0xff]
                  %350 = vst [vmem:[%s300 + $0xc0] sm:$0xff] %v349
                  %v351 = vld [vmem:[%s299 + $0x320] sm:$0xff]
                  %352 = vst [vmem:[%s300 + $0xc8] sm:$0xff] %v351
                  %v353 = vld [vmem:[%s299 + $0x340] sm:$0xff]
                  %354 = vst [vmem:[%s300 + $0xd0] sm:$0xff] %v353
                  %v355 = vld [vmem:[%s299 + $0x360] sm:$0xff]
                  %356 = vst [vmem:[%s300 + $0xd8] sm:$0xff] %v355
                  %v357 = vld [vmem:[%s299 + $0x380] sm:$0xff]
                  %358 = vst [vmem:[%s300 + $0xe0] sm:$0xff] %v357
                  %v359 = vld [vmem:[%s299 + $0x3a0] sm:$0xff]
                  %360 = vst [vmem:[%s300 + $0xe8] sm:$0xff] %v359
                  %v361 = vld [vmem:[%s299 + $0x3c0] sm:$0xff]
                  %362 = vst [vmem:[%s300 + $0xf0] sm:$0xff] %v361
                  %v363 = vld [vmem:[%s299 + $0x3e0] sm:$0xff]
                  %364 = vst [vmem:[%s300 + $0xf8] sm:$0xff] %v363
                $region68: #{_lambda_.1} parent=62 // loop_footer
                  %s298 = sadd.s32 1, %s294
                $region69: #{_lambda_.1} parent=62 // loop_footer_branch
                  %293 = sbr.rel target = $region65
                $region70: #{_lambda_.1} parent=62 // loop_exit
                  _
              $region63: #{_lambda_.1} parent=47 // pred_fallthru
                _
              // Predicated region
              $region71: #{_lambda_.1} parent=47 // pred_check
                _
              $region72: #{_lambda_.1} parent=47 // pred_check_branch
                %366 = sbr.rel target = $region74
              $region73: #{_lambda_.1} parent=47 // pred_region
                _
              $region74: #{_lambda_.1} parent=47 // pred_fallthru
                _
            $region48: #{_lambda_.1} parent=43 // pred_fallthru
              _
            // Predicated region
            $region49: #{_lambda_.1} parent=43 // pred_check
              _
            $region50: #{_lambda_.1} parent=43 // pred_check_branch
              %217 = sbr.rel target = $region52
            $region51: #{_lambda_.1} parent=43 // pred_region
              loop: start=0, step=1, limit=1
              $region53: #{_lambda_.1} parent=51 // loop_pre_header
                _
              $region54: #{_lambda_.1} parent=51 // loop_header
                %s220 = sphi 0, %s224
                %p221 = scmp.ge.s32.totalorder %s220, 1
                %s225 = sphi %s211, %s211
                %s226 = sphi %s209, %s209
              $region55: #{_lambda_.1} parent=51 // loop_header_branch
                %223 = sbr.rel (%p221) target = $region59
              $region56: #{_lambda_.1} parent=51 // loop_body
                %v227 = vld [vmem:[%s225] sm:$0xff]
                %228 = vst [vmem:[%s226] sm:$0xff] %v227
                %v229 = vld [vmem:[%s225 + $0x20] sm:$0xff]
                %230 = vst [vmem:[%s226 + $0x8] sm:$0xff] %v229
                %v231 = vld [vmem:[%s225 + $0x40] sm:$0xff]
                %232 = vst [vmem:[%s226 + $0x10] sm:$0xff] %v231
                %v233 = vld [vmem:[%s225 + $0x60] sm:$0xff]
                %234 = vst [vmem:[%s226 + $0x18] sm:$0xff] %v233
                %v235 = vld [vmem:[%s225 + $0x80] sm:$0xff]
                %236 = vst [vmem:[%s226 + $0x20] sm:$0xff] %v235
                %v237 = vld [vmem:[%s225 + $0xa0] sm:$0xff]
                %238 = vst [vmem:[%s226 + $0x28] sm:$0xff] %v237
                %v239 = vld [vmem:[%s225 + $0xc0] sm:$0xff]
                %240 = vst [vmem:[%s226 + $0x30] sm:$0xff] %v239
                %v241 = vld [vmem:[%s225 + $0xe0] sm:$0xff]
                %242 = vst [vmem:[%s226 + $0x38] sm:$0xff] %v241
                %v243 = vld [vmem:[%s225 + $0x100] sm:$0xff]
                %244 = vst [vmem:[%s226 + $0x40] sm:$0xff] %v243
                %v245 = vld [vmem:[%s225 + $0x120] sm:$0xff]
                %246 = vst [vmem:[%s226 + $0x48] sm:$0xff] %v245
                %v247 = vld [vmem:[%s225 + $0x140] sm:$0xff]
                %248 = vst [vmem:[%s226 + $0x50] sm:$0xff] %v247
                %v249 = vld [vmem:[%s225 + $0x160] sm:$0xff]
                %250 = vst [vmem:[%s226 + $0x58] sm:$0xff] %v249
                %v251 = vld [vmem:[%s225 + $0x180] sm:$0xff]
                %252 = vst [vmem:[%s226 + $0x60] sm:$0xff] %v251
                %v253 = vld [vmem:[%s225 + $0x1a0] sm:$0xff]
                %254 = vst [vmem:[%s226 + $0x68] sm:$0xff] %v253
                %v255 = vld [vmem:[%s225 + $0x1c0] sm:$0xff]
                %256 = vst [vmem:[%s226 + $0x70] sm:$0xff] %v255
                %v257 = vld [vmem:[%s225 + $0x1e0] sm:$0xff]
                %258 = vst [vmem:[%s226 + $0x78] sm:$0xff] %v257
                %v259 = vld [vmem:[%s225 + $0x200] sm:$0xff]
                %260 = vst [vmem:[%s226 + $0x80] sm:$0xff] %v259
                %v261 = vld [vmem:[%s225 + $0x220] sm:$0xff]
                %262 = vst [vmem:[%s226 + $0x88] sm:$0xff] %v261
                %v263 = vld [vmem:[%s225 + $0x240] sm:$0xff]
                %264 = vst [vmem:[%s226 + $0x90] sm:$0xff] %v263
                %v265 = vld [vmem:[%s225 + $0x260] sm:$0xff]
                %266 = vst [vmem:[%s226 + $0x98] sm:$0xff] %v265
                %v267 = vld [vmem:[%s225 + $0x280] sm:$0xff]
                %268 = vst [vmem:[%s226 + $0xa0] sm:$0xff] %v267
                %v269 = vld [vmem:[%s225 + $0x2a0] sm:$0xff]
                %270 = vst [vmem:[%s226 + $0xa8] sm:$0xff] %v269
                %v271 = vld [vmem:[%s225 + $0x2c0] sm:$0xff]
                %272 = vst [vmem:[%s226 + $0xb0] sm:$0xff] %v271
                %v273 = vld [vmem:[%s225 + $0x2e0] sm:$0xff]
                %274 = vst [vmem:[%s226 + $0xb8] sm:$0xff] %v273
                %v275 = vld [vmem:[%s225 + $0x300] sm:$0xff]
                %276 = vst [vmem:[%s226 + $0xc0] sm:$0xff] %v275
                %v277 = vld [vmem:[%s225 + $0x320] sm:$0xff]
                %278 = vst [vmem:[%s226 + $0xc8] sm:$0xff] %v277
                %v279 = vld [vmem:[%s225 + $0x340] sm:$0xff]
                %280 = vst [vmem:[%s226 + $0xd0] sm:$0xff] %v279
                %v281 = vld [vmem:[%s225 + $0x360] sm:$0xff]
                %282 = vst [vmem:[%s226 + $0xd8] sm:$0xff] %v281
                %v283 = vld [vmem:[%s225 + $0x380] sm:$0xff]
                %284 = vst [vmem:[%s226 + $0xe0] sm:$0xff] %v283
                %v285 = vld [vmem:[%s225 + $0x3a0] sm:$0xff]
                %286 = vst [vmem:[%s226 + $0xe8] sm:$0xff] %v285
                %v287 = vld [vmem:[%s225 + $0x3c0] sm:$0xff]
                %288 = vst [vmem:[%s226 + $0xf0] sm:$0xff] %v287
                %v289 = vld [vmem:[%s225 + $0x3e0] sm:$0xff]
                %290 = vst [vmem:[%s226 + $0xf8] sm:$0xff] %v289
              $region57: #{_lambda_.1} parent=51 // loop_footer
                %s224 = sadd.s32 1, %s220
              $region58: #{_lambda_.1} parent=51 // loop_footer_branch
                %219 = sbr.rel target = $region54
              $region59: #{_lambda_.1} parent=51 // loop_exit
                _
            $region52: #{_lambda_.1} parent=43 // pred_fallthru
              _
          $region44: #{_lambda_.1} parent=39 // pred_fallthru
            _
          %367 = vnop
        $region40: #{_lambda_.1} parent=35 // pred_fallthru
          _
      $region36: #{_lambda_.1} parent=5 // pred_fallthru
        _
      %p368 = scmp.le.s32.totalorder 1, %s12
      %p369 = scmp.lt.s32.totalorder %s12, 5
      %p370 = pnand %p368, %p369
      %p371 = pneg %p370
      // Predicated region
      $region75: #{_lambda_.1} parent=5 // pred_check
        _
      $region76: #{_lambda_.1} parent=5 // pred_check_branch
        %373 = sbr.rel (%p370) target = $region78
      $region77: #{_lambda_.1} parent=5 // pred_region
        %s374 = ssub.s32 %s12, 1
        %s375 = sand.u32 %s25, 1
        %s376 = sand.u32 %s25, 1
        %s377 = smul.addr %s376, 256
        %s378 = scalar_lea.vmem [#allocation2], %s377
        // Predicated region
        $region79: #{_lambda_.1} parent=77 // pred_check
          %p379 = pneg %p38
        $region80: #{_lambda_.1} parent=77 // pred_check_branch
          %381 = sbr.rel (%p379) target = $region82
        $region81: #{_lambda_.1} parent=77 // pred_region
          _
        $region82: #{_lambda_.1} parent=77 // pred_fallthru
          _
        %s382 = sand.u32 %s25, 1
        %s383 = sand.u32 %s25, 1
        %s384 = smul.addr %s383, 256
        %s385 = scalar_lea.vmem [#allocation2], %s384
        %p386 = pneg %p38
        %p387 = pneg %p35
        %p388 = pneg %p59
        %p389 = pneg %p56
        %p390 = pneg %p80
        %p391 = pneg %p77
        %p392 = pneg %p101
        %p393 = pneg %p98
        %p394 = pneg %p122
        %p395 = pneg %p119
        %p396 = pneg %p143
        %p397 = pneg %p140
        %p398 = pneg %p169
        %p399 = pneg %p166
        %p400 = scmp.lt.s32.totalorder %s17, 3
        %s401 = scalar_select %p400, %s17, 3
        %s402 = smul.addr %s401, 8
        %s403 = scalar_lea.vmem %s6, %s402
        %p404 = scmp.lt.s32.totalorder %s17, 3
        %s405 = scalar_select %p404, %s17, 3
        %s406 = smul.addr %s405, 8
        %s407 = scalar_lea.vmem %s6, %s406
        %v409 = vld [vmem:[%s378] sm:$0xff]
        %v410 = vpack.c.bf16 %v409, %v409
        %s411 = scalar_lea.vmem %s378, 8 [#allocation2]
        %v412 = vld [vmem:[%s411] sm:$0xff]
        %v413 = vpack.c.bf16 %v412, %v412
        %s414 = scalar_lea.vmem %s378, 16 [#allocation2]
        %v415 = vld [vmem:[%s414] sm:$0xff]
        %v416 = vpack.c.bf16 %v415, %v415
        %s417 = scalar_lea.vmem %s378, 24 [#allocation2]
        %v418 = vld [vmem:[%s417] sm:$0xff]
        %v419 = vpack.c.bf16 %v418, %v418
        %s420 = scalar_lea.vmem %s378, 32 [#allocation2]
        %v421 = vld [vmem:[%s420] sm:$0xff]
        %v422 = vpack.c.bf16 %v421, %v421
        %s423 = scalar_lea.vmem %s378, 40 [#allocation2]
        %v424 = vld [vmem:[%s423] sm:$0xff]
        %v425 = vpack.c.bf16 %v424, %v424
        %s426 = scalar_lea.vmem %s378, 48 [#allocation2]
        %v427 = vld [vmem:[%s426] sm:$0xff]
        %v428 = vpack.c.bf16 %v427, %v427
        %s429 = scalar_lea.vmem %s378, 56 [#allocation2]
        %v430 = vld [vmem:[%s429] sm:$0xff]
        %v431 = vpack.c.bf16 %v430, %v430
        %s432 = scalar_lea.vmem %s378, 64 [#allocation2]
        %v433 = vld [vmem:[%s432] sm:$0xff]
        %v434 = vpack.c.bf16 %v433, %v433
        %s435 = scalar_lea.vmem %s378, 72 [#allocation2]
        %v436 = vld [vmem:[%s435] sm:$0xff]
        %v437 = vpack.c.bf16 %v436, %v436
        %s438 = scalar_lea.vmem %s378, 80 [#allocation2]
        %v439 = vld [vmem:[%s438] sm:$0xff]
        %v440 = vpack.c.bf16 %v439, %v439
        %s441 = scalar_lea.vmem %s378, 88 [#allocation2]
        %v442 = vld [vmem:[%s441] sm:$0xff]
        %v443 = vpack.c.bf16 %v442, %v442
        %s444 = scalar_lea.vmem %s378, 96 [#allocation2]
        %v445 = vld [vmem:[%s444] sm:$0xff]
        %v446 = vpack.c.bf16 %v445, %v445
        %s447 = scalar_lea.vmem %s378, 104 [#allocation2]
        %v448 = vld [vmem:[%s447] sm:$0xff]
        %v449 = vpack.c.bf16 %v448, %v448
        %s450 = scalar_lea.vmem %s378, 112 [#allocation2]
        %v451 = vld [vmem:[%s450] sm:$0xff]
        %v452 = vpack.c.bf16 %v451, %v451
        %s453 = scalar_lea.vmem %s378, 120 [#allocation2]
        %v454 = vld [vmem:[%s453] sm:$0xff]
        %v455 = vpack.c.bf16 %v454, %v454
        %s456 = scalar_lea.vmem %s378, 128 [#allocation2]
        %v457 = vld [vmem:[%s456] sm:$0xff]
        %v458 = vpack.c.bf16 %v457, %v457
        %s459 = scalar_lea.vmem %s378, 136 [#allocation2]
        %v460 = vld [vmem:[%s459] sm:$0xff]
        %v461 = vpack.c.bf16 %v460, %v460
        %s462 = scalar_lea.vmem %s378, 144 [#allocation2]
        %v463 = vld [vmem:[%s462] sm:$0xff]
        %v464 = vpack.c.bf16 %v463, %v463
        %s465 = scalar_lea.vmem %s378, 152 [#allocation2]
        %v466 = vld [vmem:[%s465] sm:$0xff]
        %v467 = vpack.c.bf16 %v466, %v466
        %s468 = scalar_lea.vmem %s378, 160 [#allocation2]
        %v469 = vld [vmem:[%s468] sm:$0xff]
        %v470 = vpack.c.bf16 %v469, %v469
        %s471 = scalar_lea.vmem %s378, 168 [#allocation2]
        %v472 = vld [vmem:[%s471] sm:$0xff]
        %v473 = vpack.c.bf16 %v472, %v472
        %s474 = scalar_lea.vmem %s378, 176 [#allocation2]
        %v475 = vld [vmem:[%s474] sm:$0xff]
        %v476 = vpack.c.bf16 %v475, %v475
        %s477 = scalar_lea.vmem %s378, 184 [#allocation2]
        %v478 = vld [vmem:[%s477] sm:$0xff]
        %v479 = vpack.c.bf16 %v478, %v478
        %s480 = scalar_lea.vmem %s378, 192 [#allocation2]
        %v481 = vld [vmem:[%s480] sm:$0xff]
        %v482 = vpack.c.bf16 %v481, %v481
        %s483 = scalar_lea.vmem %s378, 200 [#allocation2]
        %v484 = vld [vmem:[%s483] sm:$0xff]
        %v485 = vpack.c.bf16 %v484, %v484
        %s486 = scalar_lea.vmem %s378, 208 [#allocation2]
        %v487 = vld [vmem:[%s486] sm:$0xff]
        %v488 = vpack.c.bf16 %v487, %v487
        %s489 = scalar_lea.vmem %s378, 216 [#allocation2]
        %v490 = vld [vmem:[%s489] sm:$0xff]
        %v491 = vpack.c.bf16 %v490, %v490
        %s492 = scalar_lea.vmem %s378, 224 [#allocation2]
        %v493 = vld [vmem:[%s492] sm:$0xff]
        %v494 = vpack.c.bf16 %v493, %v493
        %s495 = scalar_lea.vmem %s378, 232 [#allocation2]
        %v496 = vld [vmem:[%s495] sm:$0xff]
        %v497 = vpack.c.bf16 %v496, %v496
        %s498 = scalar_lea.vmem %s378, 240 [#allocation2]
        %v499 = vld [vmem:[%s498] sm:$0xff]
        %v500 = vpack.c.bf16 %v499, %v499
        %s501 = scalar_lea.vmem %s378, 248 [#allocation2]
        %v502 = vld [vmem:[%s501] sm:$0xff]
        %v503 = vpack.c.bf16 %v502, %v502
        %v505 = vrot.slane %v413, 4
        %v507 = vrot.slane %v425, 4
        %v509 = vrot.slane %v437, 4
        %v511 = vrot.slane %v449, 4
        %v513 = vrot.slane %v461, 4
        %v515 = vrot.slane %v473, 4
        %v517 = vrot.slane %v485, 4
        %v519 = vrot.slane %v497, 4
        %vm520 = vcmask 1043456
        %v523 = vsel %vm520, 0, %v505
        %v526 = vsel %vm520, %v419, %v507
        %v529 = vsel %vm520, %v431, %v509
        %v532 = vsel %vm520, %v443, %v511
        %v535 = vsel %vm520, %v455, %v513
        %v538 = vsel %vm520, %v467, %v515
        %v541 = vsel %vm520, %v479, %v517
        %v544 = vsel %vm520, %v491, %v519
        %v545 = vld [vmem:[%s1] sm:$0xf]
        %v546 = vld [vmem:[%s1 + $0x4] sm:$0xf]
        %v547 = vld [vmem:[%s1 + $0x8] sm:$0xf]
        %v548 = vld [vmem:[%s1 + $0xc] sm:$0xf]
        %v549 = vld [vmem:[%s1 + $0x10] sm:$0xf]
        %v550 = vld [vmem:[%s1 + $0x14] sm:$0xf]
        %v551 = vld [vmem:[%s1 + $0x18] sm:$0xf]
        %v552 = vld [vmem:[%s1 + $0x1c] sm:$0xf]
        %v553 = vld [vmem:[%s1 + $0x20] sm:$0xf]
        %v554 = vld [vmem:[%s1 + $0x24] sm:$0xf]
        %v555 = vld [vmem:[%s1 + $0x28] sm:$0xf]
        %v556 = vld [vmem:[%s1 + $0x2c] sm:$0xf]
        %v558 = vrot.slane %v416, 4
        %v560 = vrot.slane %v428, 4
        %v562 = vrot.slane %v440, 4
        %v564 = vrot.slane %v452, 4
        %v566 = vrot.slane %v464, 4
        %v568 = vrot.slane %v476, 4
        %v570 = vrot.slane %v488, 4
        %v572 = vrot.slane %v500, 4
        %v575 = vsel %vm520, %v410, %v558
        %v578 = vsel %vm520, %v422, %v560
        %v581 = vsel %vm520, %v434, %v562
        %v584 = vsel %vm520, %v446, %v564
        %v587 = vsel %vm520, %v458, %v566
        %v590 = vsel %vm520, %v470, %v568
        %v593 = vsel %vm520, %v482, %v570
        %v596 = vsel %vm520, %v494, %v572
        %s597 = scalar_lea.vmem %s1, 48
        %v598 = vld [vmem:[%s597] sm:$0xf]
        %v599 = vld [vmem:[%s597 + $0x4] sm:$0xf]
        %v600 = vld [vmem:[%s597 + $0x8] sm:$0xf]
        %v601 = vld [vmem:[%s597 + $0xc] sm:$0xf]
        %v602 = vld [vmem:[%s597 + $0x10] sm:$0xf]
        %v603 = vld [vmem:[%s597 + $0x14] sm:$0xf]
        %v604 = vld [vmem:[%s597 + $0x18] sm:$0xf]
        %v605 = vld [vmem:[%s597 + $0x1c] sm:$0xf]
        %v606 = vld [vmem:[%s597 + $0x20] sm:$0xf]
        %v607 = vld [vmem:[%s597 + $0x24] sm:$0xf]
        %v608 = vld [vmem:[%s597 + $0x28] sm:$0xf]
        %v609 = vld [vmem:[%s597 + $0x2c] sm:$0xf]
        %v622 = vunpack.c.l.b16 %v598
        %v623 = vunpack.c.l.b16 %v599
        %v624 = vunpack.c.l.b16 %v600
        %v625 = vunpack.c.l.b16 %v601
        %v626 = vunpack.c.l.b16 %v602
        %v627 = vunpack.c.l.b16 %v603
        %v628 = vunpack.c.l.b16 %v604
        %v629 = vunpack.c.l.b16 %v605
        %v630 = vunpack.c.l.b16 %v606
        %v631 = vunpack.c.l.b16 %v607
        %v632 = vunpack.c.l.b16 %v608
        %v633 = vunpack.c.l.b16 %v609
        %v634 = vpack.c.b16 %v623, %v622
        %v635 = vpack.c.b16 %v625, %v624
        %v636 = vpack.c.b16 %v627, %v626
        %v637 = vpack.c.b16 %v629, %v628
        %v638 = vpack.c.b16 %v631, %v630
        %v639 = vpack.c.b16 %v633, %v632
        %vm646 = vcmask 785408
        %v647 = vsel %vm646, %v575, 0
        %v649 = vsel %vm646, %v578, 0
        %v651 = vsel %vm646, %v581, 0
        %v653 = vsel %vm646, %v584, 0
        %v655 = vsel %vm646, %v587, 0
        %v657 = vsel %vm646, %v590, 0
        %v659 = vsel %vm646, %v593, 0
        %v661 = vsel %vm646, %v596, 0
        %663 = vmatprep.subr.bf16.mxu0 0
        %664 = vmatpush1.bf16.msra.mxu0 %v634
        %665 = vmatprep.subr.bf16.mxu0 0
        %666 = vmatpush1.bf16.msra.mxu0 %v635
        %667 = vmatprep.subr.bf16.mxu0 0
        %668 = vmatpush1.bf16.msra.mxu0 %v636
        %669 = vmatprep.subr.bf16.mxu0 0
        %670 = vmatpush1.bf16.msra.mxu0 %v637
        %671 = vmatprep.subr.bf16.mxu0 0
        %672 = vmatpush1.bf16.msra.mxu0 %v638
        %673 = vmatprep.subr.bf16.mxu0 0
        %674 = vmatpush1.bf16.msra.mxu0 %v639
        %675 = vmatprep.subr.bf16.mxu0 0
        %676 = vmatpush1.bf16.msra.mxu0 0
        %677 = vmatprep.subr.bf16.mxu0 0
        %678 = vmatpush1.bf16.msra.mxu0 0
        %679 = vmatprep.subr.bf16.mxu0 0
        %680 = vmatpush1.bf16.msra.mxu0 0
        %681 = vmatprep.subr.bf16.mxu0 0
        %682 = vmatpush1.bf16.msra.mxu0 0
        %683 = vmatprep.subr.bf16.mxu0 0
        %684 = vmatpush1.bf16.msra.mxu0 0
        %685 = vmatprep.subr.bf16.mxu0 0
        %686 = vmatpush1.bf16.msra.mxu0 0
        %687 = vmatprep.subr.bf16.mxu0 0
        %688 = vmatpush1.bf16.msra.mxu0 0
        %689 = vmatprep.subr.bf16.mxu0 0
        %690 = vmatpush1.bf16.msra.mxu0 0
        %691 = vmatprep.subr.bf16.mxu0 0
        %692 = vmatpush1.bf16.msra.mxu0 0
        %693 = vmatprep.subr.bf16.mxu0 0
        %694 = vmatpush1.bf16.msra.mxu0 0
        %695 = vmatprep.mubr.bf16.mxu0 0
        %696 = vmatmul.mubr.bf16.gmra.mrb[0].mxu0 %v647
        %v697 = vpop.f32.mrb[0].mxu0
        %v698 = vadd.f32 0.0, %v697
        %v699 = vpop.f32.mrb[0].mxu0
        %v700 = vpop.f32.mrb[0].mxu0
        %v701 = vadd.f32 0.0, %v700
        %v702 = vpop.f32.mrb[0].mxu0
        %703 = vmatprep.mubr.bf16.mxu0 0
        %704 = vmatmul.mubr.bf16.gmra.mrb[0].mxu0 %v649
        %v705 = vpop.f32.mrb[0].mxu0
        %v706 = vadd.f32 0.0, %v705
        %v707 = vpop.f32.mrb[0].mxu0
        %v708 = vpop.f32.mrb[0].mxu0
        %v709 = vadd.f32 0.0, %v708
        %v710 = vpop.f32.mrb[0].mxu0
        %711 = vmatprep.mubr.bf16.mxu0 0
        %712 = vmatmul.mubr.bf16.gmra.mrb[0].mxu0 %v651
        %v713 = vpop.f32.mrb[0].mxu0
        %v714 = vadd.f32 0.0, %v713
        %v715 = vpop.f32.mrb[0].mxu0
        %v716 = vpop.f32.mrb[0].mxu0
        %v717 = vadd.f32 0.0, %v716
        %v718 = vpop.f32.mrb[0].mxu0
        %719 = vmatprep.mubr.bf16.mxu0 0
        %720 = vmatmul.mubr.bf16.gmra.mrb[0].mxu0 %v653
        %v721 = vpop.f32.mrb[0].mxu0
        %v722 = vadd.f32 0.0, %v721
        %v723 = vpop.f32.mrb[0].mxu0
        %v724 = vpop.f32.mrb[0].mxu0
        %v725 = vadd.f32 0.0, %v724
        %v726 = vpop.f32.mrb[0].mxu0
        %727 = vmatprep.mubr.bf16.mxu0 0
        %728 = vmatmul.mubr.bf16.gmra.mrb[0].mxu0 %v655
        %v729 = vpop.f32.mrb[0].mxu0
        %v730 = vadd.f32 0.0, %v729
        %v731 = vpop.f32.mrb[0].mxu0
        %v732 = vpop.f32.mrb[0].mxu0
        %v733 = vadd.f32 0.0, %v732
        %v734 = vpop.f32.mrb[0].mxu0
        %735 = vmatprep.mubr.bf16.mxu0 0
        %736 = vmatmul.mubr.bf16.gmra.mrb[0].mxu0 %v657
        %v737 = vpop.f32.mrb[0].mxu0
        %v738 = vadd.f32 0.0, %v737
        %v739 = vpop.f32.mrb[0].mxu0
        %v740 = vpop.f32.mrb[0].mxu0
        %v741 = vadd.f32 0.0, %v740
        %v742 = vpop.f32.mrb[0].mxu0
        %743 = vmatprep.mubr.bf16.mxu0 0
        %744 = vmatmul.mubr.bf16.gmra.mrb[0].mxu0 %v659
        %v745 = vpop.f32.mrb[0].mxu0
        %v746 = vadd.f32 0.0, %v745
        %v747 = vpop.f32.mrb[0].mxu0
        %v748 = vpop.f32.mrb[0].mxu0
        %v749 = vadd.f32 0.0, %v748
        %v750 = vpop.f32.mrb[0].mxu0
        %751 = vmatprep.mubr.bf16.mxu0 0
        %752 = vmatmul.mubr.bf16.gmra.mrb[0].mxu0 %v661
        %v753 = vpop.f32.mrb[0].mxu0
        %v754 = vadd.f32 0.0, %v753
        %v755 = vpop.f32.mrb[0].mxu0
        %v756 = vpop.f32.mrb[0].mxu0
        %v757 = vadd.f32 0.0, %v756
        %v758 = vpop.f32.mrb[0].mxu0
        %759 = vdwg.mxu0
        %v772 = vunpack.c.l.b16 %v545
        %v773 = vunpack.c.l.b16 %v546
        %v774 = vunpack.c.l.b16 %v547
        %v775 = vunpack.c.l.b16 %v548
        %v776 = vunpack.c.l.b16 %v549
        %v777 = vunpack.c.l.b16 %v550
        %v778 = vunpack.c.l.b16 %v551
        %v779 = vunpack.c.l.b16 %v552
        %v780 = vunpack.c.l.b16 %v553
        %v781 = vunpack.c.l.b16 %v554
        %v782 = vunpack.c.l.b16 %v555
        %v783 = vunpack.c.l.b16 %v556
        %v784 = vpack.c.b16 %v773, %v772
        %v785 = vpack.c.b16 %v775, %v774
        %v786 = vpack.c.b16 %v777, %v776
        %v787 = vpack.c.b16 %v779, %v778
        %v788 = vpack.c.b16 %v781, %v780
        %v789 = vpack.c.b16 %v783, %v782
        %v796 = vsel %vm646, %v523, 0
        %v798 = vsel %vm646, %v526, 0
        %v800 = vsel %vm646, %v529, 0
        %v802 = vsel %vm646, %v532, 0
        %v804 = vsel %vm646, %v535, 0
        %v806 = vsel %vm646, %v538, 0
        %v808 = vsel %vm646, %v541, 0
        %v810 = vsel %vm646, %v544, 0
        %812 = vmatprep.subr.bf16.mxu0 0
        %813 = vmatpush1.bf16.msra.mxu0 %v784
        %814 = vmatprep.subr.bf16.mxu0 0
        %815 = vmatpush1.bf16.msra.mxu0 %v785
        %816 = vmatprep.subr.bf16.mxu0 0
        %817 = vmatpush1.bf16.msra.mxu0 %v786
        %818 = vmatprep.subr.bf16.mxu0 0
        %819 = vmatpush1.bf16.msra.mxu0 %v787
        %820 = vmatprep.subr.bf16.mxu0 0
        %821 = vmatpush1.bf16.msra.mxu0 %v788
        %822 = vmatprep.subr.bf16.mxu0 0
        %823 = vmatpush1.bf16.msra.mxu0 %v789
        %824 = vmatprep.subr.bf16.mxu0 0
        %825 = vmatpush1.bf16.msra.mxu0 0
        %826 = vmatprep.subr.bf16.mxu0 0
        %827 = vmatpush1.bf16.msra.mxu0 0
        %828 = vmatprep.subr.bf16.mxu0 0
        %829 = vmatpush1.bf16.msra.mxu0 0
        %830 = vmatprep.subr.bf16.mxu0 0
        %831 = vmatpush1.bf16.msra.mxu0 0
        %832 = vmatprep.subr.bf16.mxu0 0
        %833 = vmatpush1.bf16.msra.mxu0 0
        %834 = vmatprep.subr.bf16.mxu0 0
        %835 = vmatpush1.bf16.msra.mxu0 0
        %836 = vmatprep.subr.bf16.mxu0 0
        %837 = vmatpush1.bf16.msra.mxu0 0
        %838 = vmatprep.subr.bf16.mxu0 0
        %839 = vmatpush1.bf16.msra.mxu0 0
        %840 = vmatprep.subr.bf16.mxu0 0
        %841 = vmatpush1.bf16.msra.mxu0 0
        %842 = vmatprep.subr.bf16.mxu0 0
        %843 = vmatpush1.bf16.msra.mxu0 0
        %844 = vmatprep.mubr.bf16.mxu0 0
        %845 = vmatmul.mubr.bf16.gmra.mrb[0].mxu0 %v796
        %v846 = vpop.f32.mrb[0].mxu0
        %v847 = vadd.f32 %v698, %v846
        %v848 = vpop.f32.mrb[0].mxu0
        %v849 = vpop.f32.mrb[0].mxu0
        %v850 = vadd.f32 %v701, %v849
        %v851 = vpop.f32.mrb[0].mxu0
        %852 = vmatprep.mubr.bf16.mxu0 0
        %853 = vmatmul.mubr.bf16.gmra.mrb[0].mxu0 %v798
        %v854 = vpop.f32.mrb[0].mxu0
        %v855 = vadd.f32 %v706, %v854
        %v856 = vpop.f32.mrb[0].mxu0
        %v857 = vpop.f32.mrb[0].mxu0
        %v858 = vadd.f32 %v709, %v857
        %v859 = vpop.f32.mrb[0].mxu0
        %860 = vmatprep.mubr.bf16.mxu0 0
        %861 = vmatmul.mubr.bf16.gmra.mrb[0].mxu0 %v800
        %v862 = vpop.f32.mrb[0].mxu0
        %v863 = vadd.f32 %v714, %v862
        %v864 = vpop.f32.mrb[0].mxu0
        %v865 = vpop.f32.mrb[0].mxu0
        %v866 = vadd.f32 %v717, %v865
        %v867 = vpop.f32.mrb[0].mxu0
        %868 = vmatprep.mubr.bf16.mxu0 0
        %869 = vmatmul.mubr.bf16.gmra.mrb[0].mxu0 %v802
        %v870 = vpop.f32.mrb[0].mxu0
        %v871 = vadd.f32 %v722, %v870
        %v872 = vpop.f32.mrb[0].mxu0
        %v873 = vpop.f32.mrb[0].mxu0
        %v874 = vadd.f32 %v725, %v873
        %v875 = vpop.f32.mrb[0].mxu0
        %876 = vmatprep.mubr.bf16.mxu0 0
        %877 = vmatmul.mubr.bf16.gmra.mrb[0].mxu0 %v804
        %v878 = vpop.f32.mrb[0].mxu0
        %v879 = vadd.f32 %v730, %v878
        %v880 = vpop.f32.mrb[0].mxu0
        %v881 = vpop.f32.mrb[0].mxu0
        %v882 = vadd.f32 %v733, %v881
        %v883 = vpop.f32.mrb[0].mxu0
        %884 = vmatprep.mubr.bf16.mxu0 0
        %885 = vmatmul.mubr.bf16.gmra.mrb[0].mxu0 %v806
        %v886 = vpop.f32.mrb[0].mxu0
        %v887 = vadd.f32 %v738, %v886
        %v888 = vpop.f32.mrb[0].mxu0
        %v889 = vpop.f32.mrb[0].mxu0
        %v890 = vadd.f32 %v741, %v889
        %v891 = vpop.f32.mrb[0].mxu0
        %892 = vmatprep.mubr.bf16.mxu0 0
        %893 = vmatmul.mubr.bf16.gmra.mrb[0].mxu0 %v808
        %v894 = vpop.f32.mrb[0].mxu0
        %v895 = vadd.f32 %v746, %v894
        %v896 = vpop.f32.mrb[0].mxu0
        %v897 = vpop.f32.mrb[0].mxu0
        %v898 = vadd.f32 %v749, %v897
        %v899 = vpop.f32.mrb[0].mxu0
        %900 = vmatprep.mubr.bf16.mxu0 0
        %901 = vmatmul.mubr.bf16.gmra.mrb[0].mxu0 %v810
        %v902 = vpop.f32.mrb[0].mxu0
        %v903 = vadd.f32 %v754, %v902
        %v904 = vpop.f32.mrb[0].mxu0
        %v905 = vpop.f32.mrb[0].mxu0
        %v906 = vadd.f32 %v757, %v905
        %v907 = vpop.f32.mrb[0].mxu0
        %908 = vdwg.mxu0
        %v910 = vrot.slane %v419, 4
        %v912 = vrot.slane %v431, 4
        %v914 = vrot.slane %v443, 4
        %v916 = vrot.slane %v455, 4
        %v918 = vrot.slane %v467, 4
        %v920 = vrot.slane %v479, 4
        %v922 = vrot.slane %v491, 4
        %v924 = vrot.slane %v503, 4
        %v927 = vsel %vm520, %v413, %v910
        %v930 = vsel %vm520, %v425, %v912
        %v933 = vsel %vm520, %v437, %v914
        %v936 = vsel %vm520, %v449, %v916
        %v939 = vsel %vm520, %v461, %v918
        %v942 = vsel %vm520, %v473, %v920
        %v945 = vsel %vm520, %v485, %v922
        %v948 = vsel %vm520, %v497, %v924
        %s949 = scalar_lea.vmem %s1, 96
        %v950 = vld [vmem:[%s949] sm:$0xf]
        %v951 = vld [vmem:[%s949 + $0x4] sm:$0xf]
        %v952 = vld [vmem:[%s949 + $0x8] sm:$0xf]
        %v953 = vld [vmem:[%s949 + $0xc] sm:$0xf]
        %v954 = vld [vmem:[%s949 + $0x10] sm:$0xf]
        %v955 = vld [vmem:[%s949 + $0x14] sm:$0xf]
        %v956 = vld [vmem:[%s949 + $0x18] sm:$0xf]
        %v957 = vld [vmem:[%s949 + $0x1c] sm:$0xf]
        %v958 = vld [vmem:[%s949 + $0x20] sm:$0xf]
        %v959 = vld [vmem:[%s949 + $0x24] sm:$0xf]
        %v960 = vld [vmem:[%s949 + $0x28] sm:$0xf]
        %v961 = vld [vmem:[%s949 + $0x2c] sm:$0xf]
        %v974 = vunpack.c.l.b16 %v950
        %v975 = vunpack.c.l.b16 %v951
        %v976 = vunpack.c.l.b16 %v952
        %v977 = vunpack.c.l.b16 %v953
        %v978 = vunpack.c.l.b16 %v954
        %v979 = vunpack.c.l.b16 %v955
        %v980 = vunpack.c.l.b16 %v956
        %v981 = vunpack.c.l.b16 %v957
        %v982 = vunpack.c.l.b16 %v958
        %v983 = vunpack.c.l.b16 %v959
        %v984 = vunpack.c.l.b16 %v960
        %v985 = vunpack.c.l.b16 %v961
        %v986 = vpack.c.b16 %v975, %v974
        %v987 = vpack.c.b16 %v977, %v976
        %v988 = vpack.c.b16 %v979, %v978
        %v989 = vpack.c.b16 %v981, %v980
        %v990 = vpack.c.b16 %v983, %v982
        %v991 = vpack.c.b16 %v985, %v984
        %v998 = vsel %vm646, %v927, 0
        %v1000 = vsel %vm646, %v930, 0
        %v1002 = vsel %vm646, %v933, 0
        %v1004 = vsel %vm646, %v936, 0
        %v1006 = vsel %vm646, %v939, 0
        %v1008 = vsel %vm646, %v942, 0
        %v1010 = vsel %vm646, %v945, 0
        %v1012 = vsel %vm646, %v948, 0
        %1014 = vmatprep.subr.bf16.mxu0 0
        %1015 = vmatpush1.bf16.msra.mxu0 %v986
        %1016 = vmatprep.subr.bf16.mxu0 0
        %1017 = vmatpush1.bf16.msra.mxu0 %v987
        %1018 = vmatprep.subr.bf16.mxu0 0
        %1019 = vmatpush1.bf16.msra.mxu0 %v988
        %1020 = vmatprep.subr.bf16.mxu0 0
        %1021 = vmatpush1.bf16.msra.mxu0 %v989
        %1022 = vmatprep.subr.bf16.mxu0 0
        %1023 = vmatpush1.bf16.msra.mxu0 %v990
        %1024 = vmatprep.subr.bf16.mxu0 0
        %1025 = vmatpush1.bf16.msra.mxu0 %v991
        %1026 = vmatprep.subr.bf16.mxu0 0
        %1027 = vmatpush1.bf16.msra.mxu0 0
        %1028 = vmatprep.subr.bf16.mxu0 0
        %1029 = vmatpush1.bf16.msra.mxu0 0
        %1030 = vmatprep.subr.bf16.mxu0 0
        %1031 = vmatpush1.bf16.msra.mxu0 0
        %1032 = vmatprep.subr.bf16.mxu0 0
        %1033 = vmatpush1.bf16.msra.mxu0 0
        %1034 = vmatprep.subr.bf16.mxu0 0
        %1035 = vmatpush1.bf16.msra.mxu0 0
        %1036 = vmatprep.subr.bf16.mxu0 0
        %1037 = vmatpush1.bf16.msra.mxu0 0
        %1038 = vmatprep.subr.bf16.mxu0 0
        %1039 = vmatpush1.bf16.msra.mxu0 0
        %1040 = vmatprep.subr.bf16.mxu0 0
        %1041 = vmatpush1.bf16.msra.mxu0 0
        %1042 = vmatprep.subr.bf16.mxu0 0
        %1043 = vmatpush1.bf16.msra.mxu0 0
        %1044 = vmatprep.subr.bf16.mxu0 0
        %1045 = vmatpush1.bf16.msra.mxu0 0
        %1046 = vmatprep.mubr.bf16.mxu0 0
        %1047 = vmatmul.mubr.bf16.gmra.mrb[0].mxu0 %v998
        %v1048 = vpop.f32.mrb[0].mxu0
        %v1049 = vadd.f32 0.0, %v1048
        %v1050 = vpop.f32.mrb[0].mxu0
        %v1051 = vpop.f32.mrb[0].mxu0
        %v1052 = vadd.f32 0.0, %v1051
        %v1053 = vpop.f32.mrb[0].mxu0
        %1054 = vmatprep.mubr.bf16.mxu0 0
        %1055 = vmatmul.mubr.bf16.gmra.mrb[0].mxu0 %v1000
        %v1056 = vpop.f32.mrb[0].mxu0
        %v1057 = vadd.f32 0.0, %v1056
        %v1058 = vpop.f32.mrb[0].mxu0
        %v1059 = vpop.f32.mrb[0].mxu0
        %v1060 = vadd.f32 0.0, %v1059
        %v1061 = vpop.f32.mrb[0].mxu0
        %1062 = vmatprep.mubr.bf16.mxu0 0
        %1063 = vmatmul.mubr.bf16.gmra.mrb[0].mxu0 %v1002
        %v1064 = vpop.f32.mrb[0].mxu0
        %v1065 = vadd.f32 0.0, %v1064
        %v1066 = vpop.f32.mrb[0].mxu0
        %v1067 = vpop.f32.mrb[0].mxu0
        %v1068 = vadd.f32 0.0, %v1067
        %v1069 = vpop.f32.mrb[0].mxu0
        %1070 = vmatprep.mubr.bf16.mxu0 0
        %1071 = vmatmul.mubr.bf16.gmra.mrb[0].mxu0 %v1004
        %v1072 = vpop.f32.mrb[0].mxu0
        %v1073 = vadd.f32 0.0, %v1072
        %v1074 = vpop.f32.mrb[0].mxu0
        %v1075 = vpop.f32.mrb[0].mxu0
        %v1076 = vadd.f32 0.0, %v1075
        %v1077 = vpop.f32.mrb[0].mxu0
        %1078 = vmatprep.mubr.bf16.mxu0 0
        %1079 = vmatmul.mubr.bf16.gmra.mrb[0].mxu0 %v1006
        %v1080 = vpop.f32.mrb[0].mxu0
        %v1081 = vadd.f32 0.0, %v1080
        %v1082 = vpop.f32.mrb[0].mxu0
        %v1083 = vpop.f32.mrb[0].mxu0
        %v1084 = vadd.f32 0.0, %v1083
        %v1085 = vpop.f32.mrb[0].mxu0
        %1086 = vmatprep.mubr.bf16.mxu0 0
        %1087 = vmatmul.mubr.bf16.gmra.mrb[0].mxu0 %v1008
        %v1088 = vpop.f32.mrb[0].mxu0
        %v1089 = vadd.f32 0.0, %v1088
        %v1090 = vpop.f32.mrb[0].mxu0
        %v1091 = vpop.f32.mrb[0].mxu0
        %v1092 = vadd.f32 0.0, %v1091
        %v1093 = vpop.f32.mrb[0].mxu0
        %1094 = vmatprep.mubr.bf16.mxu0 0
        %1095 = vmatmul.mubr.bf16.gmra.mrb[0].mxu0 %v1010
        %v1096 = vpop.f32.mrb[0].mxu0
        %v1097 = vadd.f32 0.0, %v1096
        %v1098 = vpop.f32.mrb[0].mxu0
        %v1099 = vpop.f32.mrb[0].mxu0
        %v1100 = vadd.f32 0.0, %v1099
        %v1101 = vpop.f32.mrb[0].mxu0
        %1102 = vmatprep.mubr.bf16.mxu0 0
        %1103 = vmatmul.mubr.bf16.gmra.mrb[0].mxu0 %v1012
        %v1104 = vpop.f32.mrb[0].mxu0
        %v1105 = vadd.f32 0.0, %v1104
        %v1106 = vpop.f32.mrb[0].mxu0
        %v1107 = vpop.f32.mrb[0].mxu0
        %v1108 = vadd.f32 0.0, %v1107
        %v1109 = vpop.f32.mrb[0].mxu0
        %1110 = vdwg.mxu0
        %v1111 = vadd.f32 %v847, %v1049
        %v1112 = vadd.f32 %v850, %v1052
        %v1113 = vadd.f32 %v855, %v1057
        %v1114 = vadd.f32 %v858, %v1060
        %v1115 = vadd.f32 %v863, %v1065
        %v1116 = vadd.f32 %v866, %v1068
        %v1117 = vadd.f32 %v871, %v1073
        %v1118 = vadd.f32 %v874, %v1076
        %v1119 = vadd.f32 %v879, %v1081
        %v1120 = vadd.f32 %v882, %v1084
        %v1121 = vadd.f32 %v887, %v1089
        %v1122 = vadd.f32 %v890, %v1092
        %v1123 = vadd.f32 %v895, %v1097
        %v1124 = vadd.f32 %v898, %v1100
        %v1125 = vadd.f32 %v903, %v1105
        %v1126 = vadd.f32 %v906, %v1108
        %v1128 = vrot.slane %v422, 4
        %v1130 = vrot.slane %v434, 4
        %v1132 = vrot.slane %v446, 4
        %v1134 = vrot.slane %v458, 4
        %v1136 = vrot.slane %v470, 4
        %v1138 = vrot.slane %v482, 4
        %v1140 = vrot.slane %v494, 4
        %v1143 = vsel %vm520, %v416, %v1128
        %v1146 = vsel %vm520, %v428, %v1130
        %v1149 = vsel %vm520, %v440, %v1132
        %v1152 = vsel %vm520, %v452, %v1134
        %v1155 = vsel %vm520, %v464, %v1136
        %v1158 = vsel %vm520, %v476, %v1138
        %v1161 = vsel %vm520, %v488, %v1140
        %v1163 = vsel %vm520, %v500, 0
        %s1164 = scalar_lea.vmem %s1, 144
        %v1165 = vld [vmem:[%s1164] sm:$0xf]
        %v1166 = vld [vmem:[%s1164 + $0x4] sm:$0xf]
        %v1167 = vld [vmem:[%s1164 + $0x8] sm:$0xf]
        %v1168 = vld [vmem:[%s1164 + $0xc] sm:$0xf]
        %v1169 = vld [vmem:[%s1164 + $0x10] sm:$0xf]
        %v1170 = vld [vmem:[%s1164 + $0x14] sm:$0xf]
        %v1171 = vld [vmem:[%s1164 + $0x18] sm:$0xf]
        %v1172 = vld [vmem:[%s1164 + $0x1c] sm:$0xf]
        %v1173 = vld [vmem:[%s1164 + $0x20] sm:$0xf]
        %v1174 = vld [vmem:[%s1164 + $0x24] sm:$0xf]
        %v1175 = vld [vmem:[%s1164 + $0x28] sm:$0xf]
        %v1176 = vld [vmem:[%s1164 + $0x2c] sm:$0xf]
        %v1189 = vunpack.c.l.b16 %v1165
        %v1190 = vunpack.c.l.b16 %v1166
        %v1191 = vunpack.c.l.b16 %v1167
        %v1192 = vunpack.c.l.b16 %v1168
        %v1193 = vunpack.c.l.b16 %v1169
        %v1194 = vunpack.c.l.b16 %v1170
        %v1195 = vunpack.c.l.b16 %v1171
        %v1196 = vunpack.c.l.b16 %v1172
        %v1197 = vunpack.c.l.b16 %v1173
        %v1198 = vunpack.c.l.b16 %v1174
        %v1199 = vunpack.c.l.b16 %v1175
        %v1200 = vunpack.c.l.b16 %v1176
        %v1201 = vpack.c.b16 %v1190, %v1189
        %v1202 = vpack.c.b16 %v1192, %v1191
        %v1203 = vpack.c.b16 %v1194, %v1193
        %v1204 = vpack.c.b16 %v1196, %v1195
        %v1205 = vpack.c.b16 %v1198, %v1197
        %v1206 = vpack.c.b16 %v1200, %v1199
        %v1213 = vsel %vm646, %v1143, 0
        %v1215 = vsel %vm646, %v1146, 0
        %v1217 = vsel %vm646, %v1149, 0
        %v1219 = vsel %vm646, %v1152, 0
        %v1221 = vsel %vm646, %v1155, 0
        %v1223 = vsel %vm646, %v1158, 0
        %v1225 = vsel %vm646, %v1161, 0
        %v1227 = vsel %vm646, %v1163, 0
        %1229 = vmatprep.subr.bf16.mxu0 0
        %1230 = vmatpush1.bf16.msra.mxu0 %v1201
        %1231 = vmatprep.subr.bf16.mxu0 0
        %1232 = vmatpush1.bf16.msra.mxu0 %v1202
        %1233 = vmatprep.subr.bf16.mxu0 0
        %1234 = vmatpush1.bf16.msra.mxu0 %v1203
        %1235 = vmatprep.subr.bf16.mxu0 0
        %1236 = vmatpush1.bf16.msra.mxu0 %v1204
        %1237 = vmatprep.subr.bf16.mxu0 0
        %1238 = vmatpush1.bf16.msra.mxu0 %v1205
        %1239 = vmatprep.subr.bf16.mxu0 0
        %1240 = vmatpush1.bf16.msra.mxu0 %v1206
        %1241 = vmatprep.subr.bf16.mxu0 0
        %1242 = vmatpush1.bf16.msra.mxu0 0
        %1243 = vmatprep.subr.bf16.mxu0 0
        %1244 = vmatpush1.bf16.msra.mxu0 0
        %1245 = vmatprep.subr.bf16.mxu0 0
        %1246 = vmatpush1.bf16.msra.mxu0 0
        %1247 = vmatprep.subr.bf16.mxu0 0
        %1248 = vmatpush1.bf16.msra.mxu0 0
        %1249 = vmatprep.subr.bf16.mxu0 0
        %1250 = vmatpush1.bf16.msra.mxu0 0
        %1251 = vmatprep.subr.bf16.mxu0 0
        %1252 = vmatpush1.bf16.msra.mxu0 0
        %1253 = vmatprep.subr.bf16.mxu0 0
        %1254 = vmatpush1.bf16.msra.mxu0 0
        %1255 = vmatprep.subr.bf16.mxu0 0
        %1256 = vmatpush1.bf16.msra.mxu0 0
        %1257 = vmatprep.subr.bf16.mxu0 0
        %1258 = vmatpush1.bf16.msra.mxu0 0
        %1259 = vmatprep.subr.bf16.mxu0 0
        %1260 = vmatpush1.bf16.msra.mxu0 0
        %1261 = vmatprep.mubr.bf16.mxu0 0
        %1262 = vmatmul.mubr.bf16.gmra.mrb[0].mxu0 %v1213
        %v1263 = vpop.f32.mrb[0].mxu0
        %v1264 = vadd.f32 0.0, %v1263
        %v1265 = vpop.f32.mrb[0].mxu0
        %v1266 = vpop.f32.mrb[0].mxu0
        %v1267 = vadd.f32 0.0, %v1266
        %v1268 = vpop.f32.mrb[0].mxu0
        %1269 = vmatprep.mubr.bf16.mxu0 0
        %1270 = vmatmul.mubr.bf16.gmra.mrb[0].mxu0 %v1215
        %v1271 = vpop.f32.mrb[0].mxu0
        %v1272 = vadd.f32 0.0, %v1271
        %v1273 = vpop.f32.mrb[0].mxu0
        %v1274 = vpop.f32.mrb[0].mxu0
        %v1275 = vadd.f32 0.0, %v1274
        %v1276 = vpop.f32.mrb[0].mxu0
        %1277 = vmatprep.mubr.bf16.mxu0 0
        %1278 = vmatmul.mubr.bf16.gmra.mrb[0].mxu0 %v1217
        %v1279 = vpop.f32.mrb[0].mxu0
        %v1280 = vadd.f32 0.0, %v1279
        %v1281 = vpop.f32.mrb[0].mxu0
        %v1282 = vpop.f32.mrb[0].mxu0
        %v1283 = vadd.f32 0.0, %v1282
        %v1284 = vpop.f32.mrb[0].mxu0
        %1285 = vmatprep.mubr.bf16.mxu0 0
        %1286 = vmatmul.mubr.bf16.gmra.mrb[0].mxu0 %v1219
        %v1287 = vpop.f32.mrb[0].mxu0
        %v1288 = vadd.f32 0.0, %v1287
        %v1289 = vpop.f32.mrb[0].mxu0
        %v1290 = vpop.f32.mrb[0].mxu0
        %v1291 = vadd.f32 0.0, %v1290
        %v1292 = vpop.f32.mrb[0].mxu0
        %1293 = vmatprep.mubr.bf16.mxu0 0
        %1294 = vmatmul.mubr.bf16.gmra.mrb[0].mxu0 %v1221
        %v1295 = vpop.f32.mrb[0].mxu0
        %v1296 = vadd.f32 0.0, %v1295
        %v1297 = vpop.f32.mrb[0].mxu0
        %v1298 = vpop.f32.mrb[0].mxu0
        %v1299 = vadd.f32 0.0, %v1298
        %v1300 = vpop.f32.mrb[0].mxu0
        %1301 = vmatprep.mubr.bf16.mxu0 0
        %1302 = vmatmul.mubr.bf16.gmra.mrb[0].mxu0 %v1223
        %v1303 = vpop.f32.mrb[0].mxu0
        %v1304 = vadd.f32 0.0, %v1303
        %v1305 = vpop.f32.mrb[0].mxu0
        %v1306 = vpop.f32.mrb[0].mxu0
        %v1307 = vadd.f32 0.0, %v1306
        %v1308 = vpop.f32.mrb[0].mxu0
        %1309 = vmatprep.mubr.bf16.mxu0 0
        %1310 = vmatmul.mubr.bf16.gmra.mrb[0].mxu0 %v1225
        %v1311 = vpop.f32.mrb[0].mxu0
        %v1312 = vadd.f32 0.0, %v1311
        %v1313 = vpop.f32.mrb[0].mxu0
        %v1314 = vpop.f32.mrb[0].mxu0
        %v1315 = vadd.f32 0.0, %v1314
        %v1316 = vpop.f32.mrb[0].mxu0
        %1317 = vmatprep.mubr.bf16.mxu0 0
        %1318 = vmatmul.mubr.bf16.gmra.mrb[0].mxu0 %v1227
        %v1319 = vpop.f32.mrb[0].mxu0
        %v1320 = vadd.f32 0.0, %v1319
        %v1321 = vpop.f32.mrb[0].mxu0
        %v1322 = vpop.f32.mrb[0].mxu0
        %v1323 = vadd.f32 0.0, %v1322
        %v1324 = vpop.f32.mrb[0].mxu0
        %1325 = vdwg.mxu0
        %v1326 = vadd.f32 %v1111, %v1264
        %v1327 = vadd.f32 %v1112, %v1267
        %v1328 = vadd.f32 %v1113, %v1272
        %v1329 = vadd.f32 %v1114, %v1275
        %v1330 = vadd.f32 %v1115, %v1280
        %v1331 = vadd.f32 %v1116, %v1283
        %v1332 = vadd.f32 %v1117, %v1288
        %v1333 = vadd.f32 %v1118, %v1291
        %v1334 = vadd.f32 %v1119, %v1296
        %v1335 = vadd.f32 %v1120, %v1299
        %v1336 = vadd.f32 %v1121, %v1304
        %v1337 = vadd.f32 %v1122, %v1307
        %v1338 = vadd.f32 %v1123, %v1312
        %v1339 = vadd.f32 %v1124, %v1315
        %v1340 = vadd.f32 %v1125, %v1320
        %v1341 = vadd.f32 %v1126, %v1323
        %vm1342 = vcmp.gt.f32.partialorder %v1326, 0.0
        %vm1343 = vcmp.gt.f32.partialorder %v1327, 0.0
        %vm1344 = vcmp.gt.f32.partialorder %v1328, 0.0
        %vm1345 = vcmp.gt.f32.partialorder %v1329, 0.0
        %vm1346 = vcmp.gt.f32.partialorder %v1330, 0.0
        %vm1347 = vcmp.gt.f32.partialorder %v1331, 0.0
        %vm1348 = vcmp.gt.f32.partialorder %v1332, 0.0
        %vm1349 = vcmp.gt.f32.partialorder %v1333, 0.0
        %vm1350 = vcmp.gt.f32.partialorder %v1334, 0.0
        %vm1351 = vcmp.gt.f32.partialorder %v1335, 0.0
        %vm1352 = vcmp.gt.f32.partialorder %v1336, 0.0
        %vm1353 = vcmp.gt.f32.partialorder %v1337, 0.0
        %vm1354 = vcmp.gt.f32.partialorder %v1338, 0.0
        %vm1355 = vcmp.gt.f32.partialorder %v1339, 0.0
        %vm1356 = vcmp.gt.f32.partialorder %v1340, 0.0
        %vm1357 = vcmp.gt.f32.partialorder %v1341, 0.0
        %v1358 = vmul.f32 %v1326, 0.2
        %v1359 = vmul.f32 %v1327, 0.2
        %v1360 = vmul.f32 %v1328, 0.2
        %v1361 = vmul.f32 %v1329, 0.2
        %v1362 = vmul.f32 %v1330, 0.2
        %v1363 = vmul.f32 %v1331, 0.2
        %v1364 = vmul.f32 %v1332, 0.2
        %v1365 = vmul.f32 %v1333, 0.2
        %v1366 = vmul.f32 %v1334, 0.2
        %v1367 = vmul.f32 %v1335, 0.2
        %v1368 = vmul.f32 %v1336, 0.2
        %v1369 = vmul.f32 %v1337, 0.2
        %v1370 = vmul.f32 %v1338, 0.2
        %v1371 = vmul.f32 %v1339, 0.2
        %v1372 = vmul.f32 %v1340, 0.2
        %v1373 = vmul.f32 %v1341, 0.2
        %v1374 = vsel %vm1342, %v1326, %v1358
        %v1375 = vsel %vm1343, %v1327, %v1359
        %v1376 = vsel %vm1344, %v1328, %v1360
        %v1377 = vsel %vm1345, %v1329, %v1361
        %v1378 = vsel %vm1346, %v1330, %v1362
        %v1379 = vsel %vm1347, %v1331, %v1363
        %v1380 = vsel %vm1348, %v1332, %v1364
        %v1381 = vsel %vm1349, %v1333, %v1365
        %v1382 = vsel %vm1350, %v1334, %v1366
        %v1383 = vsel %vm1351, %v1335, %v1367
        %v1384 = vsel %vm1352, %v1336, %v1368
        %v1385 = vsel %vm1353, %v1337, %v1369
        %v1386 = vsel %vm1354, %v1338, %v1370
        %v1387 = vsel %vm1355, %v1339, %v1371
        %v1388 = vsel %vm1356, %v1340, %v1372
        %v1389 = vsel %vm1357, %v1341, %v1373
        %v1390 = vpack.c.bf16 %v1375, %v1374
        %v1391 = vpack.c.bf16 %v1377, %v1376
        %v1392 = vpack.c.bf16 %v1379, %v1378
        %v1393 = vpack.c.bf16 %v1381, %v1380
        %v1394 = vpack.c.bf16 %v1383, %v1382
        %v1395 = vpack.c.bf16 %v1385, %v1384
        %v1396 = vpack.c.bf16 %v1387, %v1386
        %v1397 = vpack.c.bf16 %v1389, %v1388
        %v1399 = vrot.slane %v1391, 4
        %v1401 = vrot.slane %v1393, 4
        %v1403 = vrot.slane %v1395, 4
        %v1405 = vsel %vm520, 0, %v1390
        %v1409 = vsel %vm520, %v1399, %v1392
        %v1413 = vsel %vm520, %v1401, %v1394
        %v1417 = vsel %vm520, %v1403, %v1396
        %v1419 = vld [vmem:[%s2] sm:$0xf]
        %v1420 = vld [vmem:[%s2 + $0x4] sm:$0xf]
        %v1421 = vld [vmem:[%s2 + $0x8] sm:$0xf]
        %v1422 = vld [vmem:[%s2 + $0xc] sm:$0xf]
        %v1423 = vld [vmem:[%s2 + $0x10] sm:$0xf]
        %v1424 = vld [vmem:[%s2 + $0x14] sm:$0xf]
        %v1425 = vld [vmem:[%s2 + $0x18] sm:$0xf]
        %v1426 = vld [vmem:[%s2 + $0x1c] sm:$0xf]
        %v1427 = vld [vmem:[%s2 + $0x20] sm:$0xf]
        %v1428 = vld [vmem:[%s2 + $0x24] sm:$0xf]
        %v1429 = vld [vmem:[%s2 + $0x28] sm:$0xf]
        %v1430 = vld [vmem:[%s2 + $0x2c] sm:$0xf]
        %v1431 = vld [vmem:[%s2 + $0x30] sm:$0xf]
        %v1432 = vld [vmem:[%s2 + $0x34] sm:$0xf]
        %v1433 = vld [vmem:[%s2 + $0x38] sm:$0xf]
        %v1434 = vld [vmem:[%s2 + $0x3c] sm:$0xf]
        %v1436 = vrot.slane %v1397, 4
        %v1437 = vsel %vm520, %v1390, %v1399
        %v1439 = vsel %vm520, %v1392, %v1401
        %v1441 = vsel %vm520, %v1394, %v1403
        %v1444 = vsel %vm520, %v1396, %v1436
        %s1446 = scalar_lea.vmem %s2, 64
        %v1447 = vld [vmem:[%s1446] sm:$0xf]
        %v1448 = vld [vmem:[%s1446 + $0x4] sm:$0xf]
        %v1449 = vld [vmem:[%s1446 + $0x8] sm:$0xf]
        %v1450 = vld [vmem:[%s1446 + $0xc] sm:$0xf]
        %v1451 = vld [vmem:[%s1446 + $0x10] sm:$0xf]
        %v1452 = vld [vmem:[%s1446 + $0x14] sm:$0xf]
        %v1453 = vld [vmem:[%s1446 + $0x18] sm:$0xf]
        %v1454 = vld [vmem:[%s1446 + $0x1c] sm:$0xf]
        %v1455 = vld [vmem:[%s1446 + $0x20] sm:$0xf]
        %v1456 = vld [vmem:[%s1446 + $0x24] sm:$0xf]
        %v1457 = vld [vmem:[%s1446 + $0x28] sm:$0xf]
        %v1458 = vld [vmem:[%s1446 + $0x2c] sm:$0xf]
        %v1459 = vld [vmem:[%s1446 + $0x30] sm:$0xf]
        %v1460 = vld [vmem:[%s1446 + $0x34] sm:$0xf]
        %v1461 = vld [vmem:[%s1446 + $0x38] sm:$0xf]
        %v1462 = vld [vmem:[%s1446 + $0x3c] sm:$0xf]
        %v1479 = vunpack.c.l.b16 %v1447
        %v1480 = vunpack.c.l.b16 %v1448
        %v1481 = vunpack.c.l.b16 %v1449
        %v1482 = vunpack.c.l.b16 %v1450
        %v1483 = vunpack.c.l.b16 %v1451
        %v1484 = vunpack.c.l.b16 %v1452
        %v1485 = vunpack.c.l.b16 %v1453
        %v1486 = vunpack.c.l.b16 %v1454
        %v1487 = vunpack.c.l.b16 %v1455
        %v1488 = vunpack.c.l.b16 %v1456
        %v1489 = vunpack.c.l.b16 %v1457
        %v1490 = vunpack.c.l.b16 %v1458
        %v1491 = vunpack.c.l.b16 %v1459
        %v1492 = vunpack.c.l.b16 %v1460
        %v1493 = vunpack.c.l.b16 %v1461
        %v1494 = vunpack.c.l.b16 %v1462
        %v1495 = vpack.c.b16 %v1480, %v1479
        %v1496 = vpack.c.b16 %v1482, %v1481
        %v1497 = vpack.c.b16 %v1484, %v1483
        %v1498 = vpack.c.b16 %v1486, %v1485
        %v1499 = vpack.c.b16 %v1488, %v1487
        %v1500 = vpack.c.b16 %v1490, %v1489
        %v1501 = vpack.c.b16 %v1492, %v1491
        %v1502 = vpack.c.b16 %v1494, %v1493
        %1511 = vmatprep.subr.bf16.mxu0 0
        %1512 = vmatpush1.bf16.msra.mxu0 %v1495
        %1513 = vmatprep.subr.bf16.mxu0 0
        %1514 = vmatpush1.bf16.msra.mxu0 %v1496
        %1515 = vmatprep.subr.bf16.mxu0 0
        %1516 = vmatpush1.bf16.msra.mxu0 %v1497
        %1517 = vmatprep.subr.bf16.mxu0 0
        %1518 = vmatpush1.bf16.msra.mxu0 %v1498
        %1519 = vmatprep.subr.bf16.mxu0 0
        %1520 = vmatpush1.bf16.msra.mxu0 %v1499
        %1521 = vmatprep.subr.bf16.mxu0 0
        %1522 = vmatpush1.bf16.msra.mxu0 %v1500
        %1523 = vmatprep.subr.bf16.mxu0 0
        %1524 = vmatpush1.bf16.msra.mxu0 %v1501
        %1525 = vmatprep.subr.bf16.mxu0 0
        %1526 = vmatpush1.bf16.msra.mxu0 %v1502
        %1527 = vmatprep.subr.bf16.mxu0 0
        %1528 = vmatpush1.bf16.msra.mxu0 0
        %1529 = vmatprep.subr.bf16.mxu0 0
        %1530 = vmatpush1.bf16.msra.mxu0 0
        %1531 = vmatprep.subr.bf16.mxu0 0
        %1532 = vmatpush1.bf16.msra.mxu0 0
        %1533 = vmatprep.subr.bf16.mxu0 0
        %1534 = vmatpush1.bf16.msra.mxu0 0
        %1535 = vmatprep.subr.bf16.mxu0 0
        %1536 = vmatpush1.bf16.msra.mxu0 0
        %1537 = vmatprep.subr.bf16.mxu0 0
        %1538 = vmatpush1.bf16.msra.mxu0 0
        %1539 = vmatprep.subr.bf16.mxu0 0
        %1540 = vmatpush1.bf16.msra.mxu0 0
        %1541 = vmatprep.subr.bf16.mxu0 0
        %1542 = vmatpush1.bf16.msra.mxu0 0
        %1543 = vmatprep.mubr.bf16.mxu0 0
        %1544 = vmatmul.mubr.bf16.gmra.mrb[0].mxu0 %v1437
        %v1545 = vpop.f32.mrb[0].mxu0
        %v1546 = vadd.f32 0.0, %v1545
        %v1547 = vpop.f32.mrb[0].mxu0
        %v1548 = vpop.f32.mrb[0].mxu0
        %v1549 = vadd.f32 0.0, %v1548
        %v1550 = vpop.f32.mrb[0].mxu0
        %1551 = vmatprep.mubr.bf16.mxu0 0
        %1552 = vmatmul.mubr.bf16.gmra.mrb[0].mxu0 %v1439
        %v1553 = vpop.f32.mrb[0].mxu0
        %v1554 = vadd.f32 0.0, %v1553
        %v1555 = vpop.f32.mrb[0].mxu0
        %v1556 = vpop.f32.mrb[0].mxu0
        %v1557 = vadd.f32 0.0, %v1556
        %v1558 = vpop.f32.mrb[0].mxu0
        %1559 = vmatprep.mubr.bf16.mxu0 0
        %1560 = vmatmul.mubr.bf16.gmra.mrb[0].mxu0 %v1441
        %v1561 = vpop.f32.mrb[0].mxu0
        %v1562 = vadd.f32 0.0, %v1561
        %v1563 = vpop.f32.mrb[0].mxu0
        %v1564 = vpop.f32.mrb[0].mxu0
        %v1565 = vadd.f32 0.0, %v1564
        %v1566 = vpop.f32.mrb[0].mxu0
        %1567 = vmatprep.mubr.bf16.mxu0 0
        %1568 = vmatmul.mubr.bf16.gmra.mrb[0].mxu0 %v1444
        %v1569 = vpop.f32.mrb[0].mxu0
        %v1570 = vadd.f32 0.0, %v1569
        %v1571 = vpop.f32.mrb[0].mxu0
        %v1572 = vpop.f32.mrb[0].mxu0
        %v1573 = vadd.f32 0.0, %v1572
        %v1574 = vpop.f32.mrb[0].mxu0
        %1575 = vdwg.mxu0
        %v1592 = vunpack.c.l.b16 %v1419
        %v1593 = vunpack.c.l.b16 %v1420
        %v1594 = vunpack.c.l.b16 %v1421
        %v1595 = vunpack.c.l.b16 %v1422
        %v1596 = vunpack.c.l.b16 %v1423
        %v1597 = vunpack.c.l.b16 %v1424
        %v1598 = vunpack.c.l.b16 %v1425
        %v1599 = vunpack.c.l.b16 %v1426
        %v1600 = vunpack.c.l.b16 %v1427
        %v1601 = vunpack.c.l.b16 %v1428
        %v1602 = vunpack.c.l.b16 %v1429
        %v1603 = vunpack.c.l.b16 %v1430
        %v1604 = vunpack.c.l.b16 %v1431
        %v1605 = vunpack.c.l.b16 %v1432
        %v1606 = vunpack.c.l.b16 %v1433
        %v1607 = vunpack.c.l.b16 %v1434
        %v1608 = vpack.c.b16 %v1593, %v1592
        %v1609 = vpack.c.b16 %v1595, %v1594
        %v1610 = vpack.c.b16 %v1597, %v1596
        %v1611 = vpack.c.b16 %v1599, %v1598
        %v1612 = vpack.c.b16 %v1601, %v1600
        %v1613 = vpack.c.b16 %v1603, %v1602
        %v1614 = vpack.c.b16 %v1605, %v1604
        %v1615 = vpack.c.b16 %v1607, %v1606
        %1624 = vmatprep.subr.bf16.mxu0 0
        %1625 = vmatpush1.bf16.msra.mxu0 %v1608
        %1626 = vmatprep.subr.bf16.mxu0 0
        %1627 = vmatpush1.bf16.msra.mxu0 %v1609
        %1628 = vmatprep.subr.bf16.mxu0 0
        %1629 = vmatpush1.bf16.msra.mxu0 %v1610
        %1630 = vmatprep.subr.bf16.mxu0 0
        %1631 = vmatpush1.bf16.msra.mxu0 %v1611
        %1632 = vmatprep.subr.bf16.mxu0 0
        %1633 = vmatpush1.bf16.msra.mxu0 %v1612
        %1634 = vmatprep.subr.bf16.mxu0 0
        %1635 = vmatpush1.bf16.msra.mxu0 %v1613
        %1636 = vmatprep.subr.bf16.mxu0 0
        %1637 = vmatpush1.bf16.msra.mxu0 %v1614
        %1638 = vmatprep.subr.bf16.mxu0 0
        %1639 = vmatpush1.bf16.msra.mxu0 %v1615
        %1640 = vmatprep.subr.bf16.mxu0 0
        %1641 = vmatpush1.bf16.msra.mxu0 0
        %1642 = vmatprep.subr.bf16.mxu0 0
        %1643 = vmatpush1.bf16.msra.mxu0 0
        %1644 = vmatprep.subr.bf16.mxu0 0
        %1645 = vmatpush1.bf16.msra.mxu0 0
        %1646 = vmatprep.subr.bf16.mxu0 0
        %1647 = vmatpush1.bf16.msra.mxu0 0
        %1648 = vmatprep.subr.bf16.mxu0 0
        %1649 = vmatpush1.bf16.msra.mxu0 0
        %1650 = vmatprep.subr.bf16.mxu0 0
        %1651 = vmatpush1.bf16.msra.mxu0 0
        %1652 = vmatprep.subr.bf16.mxu0 0
        %1653 = vmatpush1.bf16.msra.mxu0 0
        %1654 = vmatprep.subr.bf16.mxu0 0
        %1655 = vmatpush1.bf16.msra.mxu0 0
        %1656 = vmatprep.mubr.bf16.mxu0 0
        %1657 = vmatmul.mubr.bf16.gmra.mrb[0].mxu0 %v1405
        %v1658 = vpop.f32.mrb[0].mxu0
        %v1659 = vadd.f32 %v1546, %v1658
        %v1660 = vpop.f32.mrb[0].mxu0
        %v1661 = vpop.f32.mrb[0].mxu0
        %v1662 = vadd.f32 %v1549, %v1661
        %v1663 = vpop.f32.mrb[0].mxu0
        %1664 = vmatprep.mubr.bf16.mxu0 0
        %1665 = vmatmul.mubr.bf16.gmra.mrb[0].mxu0 %v1409
        %v1666 = vpop.f32.mrb[0].mxu0
        %v1667 = vadd.f32 %v1554, %v1666
        %v1668 = vpop.f32.mrb[0].mxu0
        %v1669 = vpop.f32.mrb[0].mxu0
        %v1670 = vadd.f32 %v1557, %v1669
        %v1671 = vpop.f32.mrb[0].mxu0
        %1672 = vmatprep.mubr.bf16.mxu0 0
        %1673 = vmatmul.mubr.bf16.gmra.mrb[0].mxu0 %v1413
        %v1674 = vpop.f32.mrb[0].mxu0
        %v1675 = vadd.f32 %v1562, %v1674
        %v1676 = vpop.f32.mrb[0].mxu0
        %v1677 = vpop.f32.mrb[0].mxu0
        %v1678 = vadd.f32 %v1565, %v1677
        %v1679 = vpop.f32.mrb[0].mxu0
        %1680 = vmatprep.mubr.bf16.mxu0 0
        %1681 = vmatmul.mubr.bf16.gmra.mrb[0].mxu0 %v1417
        %v1682 = vpop.f32.mrb[0].mxu0
        %v1683 = vadd.f32 %v1570, %v1682
        %v1684 = vpop.f32.mrb[0].mxu0
        %v1685 = vpop.f32.mrb[0].mxu0
        %v1686 = vadd.f32 %v1573, %v1685
        %v1687 = vpop.f32.mrb[0].mxu0
        %1688 = vdwg.mxu0
        %v1690 = vrot.slane %v1390, 4
        %v1692 = vrot.slane %v1392, 4
        %v1694 = vrot.slane %v1394, 4
        %v1696 = vrot.slane %v1396, 4
        %v1699 = vsel %vm520, %v1690, %v1391
        %v1703 = vsel %vm520, %v1692, %v1393
        %v1707 = vsel %vm520, %v1694, %v1395
        %v1711 = vsel %vm520, %v1696, %v1397
        %s1713 = scalar_lea.vmem %s2, 128
        %v1714 = vld [vmem:[%s1713] sm:$0xf]
        %v1715 = vld [vmem:[%s1713 + $0x4] sm:$0xf]
        %v1716 = vld [vmem:[%s1713 + $0x8] sm:$0xf]
        %v1717 = vld [vmem:[%s1713 + $0xc] sm:$0xf]
        %v1718 = vld [vmem:[%s1713 + $0x10] sm:$0xf]
        %v1719 = vld [vmem:[%s1713 + $0x14] sm:$0xf]
        %v1720 = vld [vmem:[%s1713 + $0x18] sm:$0xf]
        %v1721 = vld [vmem:[%s1713 + $0x1c] sm:$0xf]
        %v1722 = vld [vmem:[%s1713 + $0x20] sm:$0xf]
        %v1723 = vld [vmem:[%s1713 + $0x24] sm:$0xf]
        %v1724 = vld [vmem:[%s1713 + $0x28] sm:$0xf]
        %v1725 = vld [vmem:[%s1713 + $0x2c] sm:$0xf]
        %v1726 = vld [vmem:[%s1713 + $0x30] sm:$0xf]
        %v1727 = vld [vmem:[%s1713 + $0x34] sm:$0xf]
        %v1728 = vld [vmem:[%s1713 + $0x38] sm:$0xf]
        %v1729 = vld [vmem:[%s1713 + $0x3c] sm:$0xf]
        %v1746 = vunpack.c.l.b16 %v1714
        %v1747 = vunpack.c.l.b16 %v1715
        %v1748 = vunpack.c.l.b16 %v1716
        %v1749 = vunpack.c.l.b16 %v1717
        %v1750 = vunpack.c.l.b16 %v1718
        %v1751 = vunpack.c.l.b16 %v1719
        %v1752 = vunpack.c.l.b16 %v1720
        %v1753 = vunpack.c.l.b16 %v1721
        %v1754 = vunpack.c.l.b16 %v1722
        %v1755 = vunpack.c.l.b16 %v1723
        %v1756 = vunpack.c.l.b16 %v1724
        %v1757 = vunpack.c.l.b16 %v1725
        %v1758 = vunpack.c.l.b16 %v1726
        %v1759 = vunpack.c.l.b16 %v1727
        %v1760 = vunpack.c.l.b16 %v1728
        %v1761 = vunpack.c.l.b16 %v1729
        %v1762 = vpack.c.b16 %v1747, %v1746
        %v1763 = vpack.c.b16 %v1749, %v1748
        %v1764 = vpack.c.b16 %v1751, %v1750
        %v1765 = vpack.c.b16 %v1753, %v1752
        %v1766 = vpack.c.b16 %v1755, %v1754
        %v1767 = vpack.c.b16 %v1757, %v1756
        %v1768 = vpack.c.b16 %v1759, %v1758
        %v1769 = vpack.c.b16 %v1761, %v1760
        %1778 = vmatprep.subr.bf16.mxu0 0
        %1779 = vmatpush1.bf16.msra.mxu0 %v1762
        %1780 = vmatprep.subr.bf16.mxu0 0
        %1781 = vmatpush1.bf16.msra.mxu0 %v1763
        %1782 = vmatprep.subr.bf16.mxu0 0
        %1783 = vmatpush1.bf16.msra.mxu0 %v1764
        %1784 = vmatprep.subr.bf16.mxu0 0
        %1785 = vmatpush1.bf16.msra.mxu0 %v1765
        %1786 = vmatprep.subr.bf16.mxu0 0
        %1787 = vmatpush1.bf16.msra.mxu0 %v1766
        %1788 = vmatprep.subr.bf16.mxu0 0
        %1789 = vmatpush1.bf16.msra.mxu0 %v1767
        %1790 = vmatprep.subr.bf16.mxu0 0
        %1791 = vmatpush1.bf16.msra.mxu0 %v1768
        %1792 = vmatprep.subr.bf16.mxu0 0
        %1793 = vmatpush1.bf16.msra.mxu0 %v1769
        %1794 = vmatprep.subr.bf16.mxu0 0
        %1795 = vmatpush1.bf16.msra.mxu0 0
        %1796 = vmatprep.subr.bf16.mxu0 0
        %1797 = vmatpush1.bf16.msra.mxu0 0
        %1798 = vmatprep.subr.bf16.mxu0 0
        %1799 = vmatpush1.bf16.msra.mxu0 0
        %1800 = vmatprep.subr.bf16.mxu0 0
        %1801 = vmatpush1.bf16.msra.mxu0 0
        %1802 = vmatprep.subr.bf16.mxu0 0
        %1803 = vmatpush1.bf16.msra.mxu0 0
        %1804 = vmatprep.subr.bf16.mxu0 0
        %1805 = vmatpush1.bf16.msra.mxu0 0
        %1806 = vmatprep.subr.bf16.mxu0 0
        %1807 = vmatpush1.bf16.msra.mxu0 0
        %1808 = vmatprep.subr.bf16.mxu0 0
        %1809 = vmatpush1.bf16.msra.mxu0 0
        %1810 = vmatprep.mubr.bf16.mxu0 0
        %1811 = vmatmul.mubr.bf16.gmra.mrb[0].mxu0 %v1699
        %v1812 = vpop.f32.mrb[0].mxu0
        %v1813 = vadd.f32 0.0, %v1812
        %v1814 = vpop.f32.mrb[0].mxu0
        %v1815 = vpop.f32.mrb[0].mxu0
        %v1816 = vadd.f32 0.0, %v1815
        %v1817 = vpop.f32.mrb[0].mxu0
        %1818 = vmatprep.mubr.bf16.mxu0 0
        %1819 = vmatmul.mubr.bf16.gmra.mrb[0].mxu0 %v1703
        %v1820 = vpop.f32.mrb[0].mxu0
        %v1821 = vadd.f32 0.0, %v1820
        %v1822 = vpop.f32.mrb[0].mxu0
        %v1823 = vpop.f32.mrb[0].mxu0
        %v1824 = vadd.f32 0.0, %v1823
        %v1825 = vpop.f32.mrb[0].mxu0
        %1826 = vmatprep.mubr.bf16.mxu0 0
        %1827 = vmatmul.mubr.bf16.gmra.mrb[0].mxu0 %v1707
        %v1828 = vpop.f32.mrb[0].mxu0
        %v1829 = vadd.f32 0.0, %v1828
        %v1830 = vpop.f32.mrb[0].mxu0
        %v1831 = vpop.f32.mrb[0].mxu0
        %v1832 = vadd.f32 0.0, %v1831
        %v1833 = vpop.f32.mrb[0].mxu0
        %1834 = vmatprep.mubr.bf16.mxu0 0
        %1835 = vmatmul.mubr.bf16.gmra.mrb[0].mxu0 %v1711
        %v1836 = vpop.f32.mrb[0].mxu0
        %v1837 = vadd.f32 0.0, %v1836
        %v1838 = vpop.f32.mrb[0].mxu0
        %v1839 = vpop.f32.mrb[0].mxu0
        %v1840 = vadd.f32 0.0, %v1839
        %v1841 = vpop.f32.mrb[0].mxu0
        %1842 = vdwg.mxu0
        %v1843 = vadd.f32 %v1659, %v1813
        %v1844 = vadd.f32 %v1662, %v1816
        %v1845 = vadd.f32 %v1667, %v1821
        %v1846 = vadd.f32 %v1670, %v1824
        %v1847 = vadd.f32 %v1675, %v1829
        %v1848 = vadd.f32 %v1678, %v1832
        %v1849 = vadd.f32 %v1683, %v1837
        %v1850 = vadd.f32 %v1686, %v1840
        %v1851 = vsel %vm520, %v1391, %v1692
        %v1853 = vsel %vm520, %v1393, %v1694
        %v1855 = vsel %vm520, %v1395, %v1696
        %v1857 = vsel %vm520, %v1397, 0
        %s1859 = scalar_lea.vmem %s2, 192
        %v1860 = vld [vmem:[%s1859] sm:$0xf]
        %v1861 = vld [vmem:[%s1859 + $0x4] sm:$0xf]
        %v1862 = vld [vmem:[%s1859 + $0x8] sm:$0xf]
        %v1863 = vld [vmem:[%s1859 + $0xc] sm:$0xf]
        %v1864 = vld [vmem:[%s1859 + $0x10] sm:$0xf]
        %v1865 = vld [vmem:[%s1859 + $0x14] sm:$0xf]
        %v1866 = vld [vmem:[%s1859 + $0x18] sm:$0xf]
        %v1867 = vld [vmem:[%s1859 + $0x1c] sm:$0xf]
        %v1868 = vld [vmem:[%s1859 + $0x20] sm:$0xf]
        %v1869 = vld [vmem:[%s1859 + $0x24] sm:$0xf]
        %v1870 = vld [vmem:[%s1859 + $0x28] sm:$0xf]
        %v1871 = vld [vmem:[%s1859 + $0x2c] sm:$0xf]
        %v1872 = vld [vmem:[%s1859 + $0x30] sm:$0xf]
        %v1873 = vld [vmem:[%s1859 + $0x34] sm:$0xf]
        %v1874 = vld [vmem:[%s1859 + $0x38] sm:$0xf]
        %v1875 = vld [vmem:[%s1859 + $0x3c] sm:$0xf]
        %v1892 = vunpack.c.l.b16 %v1860
        %v1893 = vunpack.c.l.b16 %v1861
        %v1894 = vunpack.c.l.b16 %v1862
        %v1895 = vunpack.c.l.b16 %v1863
        %v1896 = vunpack.c.l.b16 %v1864
        %v1897 = vunpack.c.l.b16 %v1865
        %v1898 = vunpack.c.l.b16 %v1866
        %v1899 = vunpack.c.l.b16 %v1867
        %v1900 = vunpack.c.l.b16 %v1868
        %v1901 = vunpack.c.l.b16 %v1869
        %v1902 = vunpack.c.l.b16 %v1870
        %v1903 = vunpack.c.l.b16 %v1871
        %v1904 = vunpack.c.l.b16 %v1872
        %v1905 = vunpack.c.l.b16 %v1873
        %v1906 = vunpack.c.l.b16 %v1874
        %v1907 = vunpack.c.l.b16 %v1875
        %v1908 = vpack.c.b16 %v1893, %v1892
        %v1909 = vpack.c.b16 %v1895, %v1894
        %v1910 = vpack.c.b16 %v1897, %v1896
        %v1911 = vpack.c.b16 %v1899, %v1898
        %v1912 = vpack.c.b16 %v1901, %v1900
        %v1913 = vpack.c.b16 %v1903, %v1902
        %v1914 = vpack.c.b16 %v1905, %v1904
        %v1915 = vpack.c.b16 %v1907, %v1906
        %1924 = vmatprep.subr.bf16.mxu0 0
        %1925 = vmatpush1.bf16.msra.mxu0 %v1908
        %1926 = vmatprep.subr.bf16.mxu0 0
        %1927 = vmatpush1.bf16.msra.mxu0 %v1909
        %1928 = vmatprep.subr.bf16.mxu0 0
        %1929 = vmatpush1.bf16.msra.mxu0 %v1910
        %1930 = vmatprep.subr.bf16.mxu0 0
        %1931 = vmatpush1.bf16.msra.mxu0 %v1911
        %1932 = vmatprep.subr.bf16.mxu0 0
        %1933 = vmatpush1.bf16.msra.mxu0 %v1912
        %1934 = vmatprep.subr.bf16.mxu0 0
        %1935 = vmatpush1.bf16.msra.mxu0 %v1913
        %1936 = vmatprep.subr.bf16.mxu0 0
        %1937 = vmatpush1.bf16.msra.mxu0 %v1914
        %1938 = vmatprep.subr.bf16.mxu0 0
        %1939 = vmatpush1.bf16.msra.mxu0 %v1915
        %1940 = vmatprep.subr.bf16.mxu0 0
        %1941 = vmatpush1.bf16.msra.mxu0 0
        %1942 = vmatprep.subr.bf16.mxu0 0
        %1943 = vmatpush1.bf16.msra.mxu0 0
        %1944 = vmatprep.subr.bf16.mxu0 0
        %1945 = vmatpush1.bf16.msra.mxu0 0
        %1946 = vmatprep.subr.bf16.mxu0 0
        %1947 = vmatpush1.bf16.msra.mxu0 0
        %1948 = vmatprep.subr.bf16.mxu0 0
        %1949 = vmatpush1.bf16.msra.mxu0 0
        %1950 = vmatprep.subr.bf16.mxu0 0
        %1951 = vmatpush1.bf16.msra.mxu0 0
        %1952 = vmatprep.subr.bf16.mxu0 0
        %1953 = vmatpush1.bf16.msra.mxu0 0
        %1954 = vmatprep.subr.bf16.mxu0 0
        %1955 = vmatpush1.bf16.msra.mxu0 0
        %1956 = vmatprep.mubr.bf16.mxu0 0
        %1957 = vmatmul.mubr.bf16.gmra.mrb[0].mxu0 %v1851
        %v1958 = vpop.f32.mrb[0].mxu0
        %v1959 = vadd.f32 0.0, %v1958
        %v1960 = vpop.f32.mrb[0].mxu0
        %v1961 = vpop.f32.mrb[0].mxu0
        %v1962 = vadd.f32 0.0, %v1961
        %v1963 = vpop.f32.mrb[0].mxu0
        %1964 = vmatprep.mubr.bf16.mxu0 0
        %1965 = vmatmul.mubr.bf16.gmra.mrb[0].mxu0 %v1853
        %v1966 = vpop.f32.mrb[0].mxu0
        %v1967 = vadd.f32 0.0, %v1966
        %v1968 = vpop.f32.mrb[0].mxu0
        %v1969 = vpop.f32.mrb[0].mxu0
        %v1970 = vadd.f32 0.0, %v1969
        %v1971 = vpop.f32.mrb[0].mxu0
        %1972 = vmatprep.mubr.bf16.mxu0 0
        %1973 = vmatmul.mubr.bf16.gmra.mrb[0].mxu0 %v1855
        %v1974 = vpop.f32.mrb[0].mxu0
        %v1975 = vadd.f32 0.0, %v1974
        %v1976 = vpop.f32.mrb[0].mxu0
        %v1977 = vpop.f32.mrb[0].mxu0
        %v1978 = vadd.f32 0.0, %v1977
        %v1979 = vpop.f32.mrb[0].mxu0
        %1980 = vmatprep.mubr.bf16.mxu0 0
        %1981 = vmatmul.mubr.bf16.gmra.mrb[0].mxu0 %v1857
        %v1982 = vpop.f32.mrb[0].mxu0
        %v1983 = vadd.f32 0.0, %v1982
        %v1984 = vpop.f32.mrb[0].mxu0
        %v1985 = vpop.f32.mrb[0].mxu0
        %v1986 = vadd.f32 0.0, %v1985
        %v1987 = vpop.f32.mrb[0].mxu0
        %1988 = vdwg.mxu0
        %v1989 = vadd.f32 %v1843, %v1959
        %v1990 = vadd.f32 %v1844, %v1962
        %v1991 = vadd.f32 %v1845, %v1967
        %v1992 = vadd.f32 %v1846, %v1970
        %v1993 = vadd.f32 %v1847, %v1975
        %v1994 = vadd.f32 %v1848, %v1978
        %v1995 = vadd.f32 %v1849, %v1983
        %v1996 = vadd.f32 %v1850, %v1986
        %vm1997 = vcmp.gt.f32.partialorder %v1989, 0.0
        %vm1998 = vcmp.gt.f32.partialorder %v1990, 0.0
        %vm1999 = vcmp.gt.f32.partialorder %v1991, 0.0
        %vm2000 = vcmp.gt.f32.partialorder %v1992, 0.0
        %vm2001 = vcmp.gt.f32.partialorder %v1993, 0.0
        %vm2002 = vcmp.gt.f32.partialorder %v1994, 0.0
        %vm2003 = vcmp.gt.f32.partialorder %v1995, 0.0
        %vm2004 = vcmp.gt.f32.partialorder %v1996, 0.0
        %v2005 = vmul.f32 %v1989, 0.2
        %v2006 = vmul.f32 %v1990, 0.2
        %v2007 = vmul.f32 %v1991, 0.2
        %v2008 = vmul.f32 %v1992, 0.2
        %v2009 = vmul.f32 %v1993, 0.2
        %v2010 = vmul.f32 %v1994, 0.2
        %v2011 = vmul.f32 %v1995, 0.2
        %v2012 = vmul.f32 %v1996, 0.2
        %v2013 = vsel %vm1997, %v1989, %v2005
        %v2014 = vsel %vm1998, %v1990, %v2006
        %v2015 = vsel %vm1999, %v1991, %v2007
        %v2016 = vsel %vm2000, %v1992, %v2008
        %v2017 = vsel %vm2001, %v1993, %v2009
        %v2018 = vsel %vm2002, %v1994, %v2010
        %v2019 = vsel %vm2003, %v1995, %v2011
        %v2020 = vsel %vm2004, %v1996, %v2012
        %v2021 = vpack.c.bf16 %v2014, %v2013
        %v2022 = vpack.c.bf16 %v2016, %v2015
        %v2023 = vpack.c.bf16 %v2018, %v2017
        %v2024 = vpack.c.bf16 %v2020, %v2019
        %v2026 = vrot.slane %v2022, 4
        %v2028 = vsel %vm520, 0, %v2021
        %v2032 = vsel %vm520, %v2026, %v2023
        %v2034 = vld [vmem:[%s3] sm:$0xf]
        %v2035 = vld [vmem:[%s3 + $0x4] sm:$0xf]
        %v2036 = vld [vmem:[%s3 + $0x8] sm:$0xf]
        %v2037 = vld [vmem:[%s3 + $0xc] sm:$0xf]
        %v2038 = vld [vmem:[%s3 + $0x10] sm:$0xf]
        %v2039 = vld [vmem:[%s3 + $0x14] sm:$0xf]
        %v2040 = vld [vmem:[%s3 + $0x18] sm:$0xf]
        %v2041 = vld [vmem:[%s3 + $0x1c] sm:$0xf]
        %v2042 = vld [vmem:[%s3 + $0x20] sm:$0xf]
        %v2043 = vld [vmem:[%s3 + $0x24] sm:$0xf]
        %v2044 = vld [vmem:[%s3 + $0x28] sm:$0xf]
        %v2045 = vld [vmem:[%s3 + $0x2c] sm:$0xf]
        %v2046 = vld [vmem:[%s3 + $0x30] sm:$0xf]
        %v2047 = vld [vmem:[%s3 + $0x34] sm:$0xf]
        %v2048 = vld [vmem:[%s3 + $0x38] sm:$0xf]
        %v2049 = vld [vmem:[%s3 + $0x3c] sm:$0xf]
        %v2051 = vrot.slane %v2024, 4
        %v2052 = vsel %vm520, %v2021, %v2026
        %v2055 = vsel %vm520, %v2023, %v2051
        %s2057 = scalar_lea.vmem %s3, 64
        %v2058 = vld [vmem:[%s2057] sm:$0xf]
        %v2059 = vld [vmem:[%s2057 + $0x4] sm:$0xf]
        %v2060 = vld [vmem:[%s2057 + $0x8] sm:$0xf]
        %v2061 = vld [vmem:[%s2057 + $0xc] sm:$0xf]
        %v2062 = vld [vmem:[%s2057 + $0x10] sm:$0xf]
        %v2063 = vld [vmem:[%s2057 + $0x14] sm:$0xf]
        %v2064 = vld [vmem:[%s2057 + $0x18] sm:$0xf]
        %v2065 = vld [vmem:[%s2057 + $0x1c] sm:$0xf]
        %v2066 = vld [vmem:[%s2057 + $0x20] sm:$0xf]
        %v2067 = vld [vmem:[%s2057 + $0x24] sm:$0xf]
        %v2068 = vld [vmem:[%s2057 + $0x28] sm:$0xf]
        %v2069 = vld [vmem:[%s2057 + $0x2c] sm:$0xf]
        %v2070 = vld [vmem:[%s2057 + $0x30] sm:$0xf]
        %v2071 = vld [vmem:[%s2057 + $0x34] sm:$0xf]
        %v2072 = vld [vmem:[%s2057 + $0x38] sm:$0xf]
        %v2073 = vld [vmem:[%s2057 + $0x3c] sm:$0xf]
        %v2090 = vunpack.c.l.b16 %v2058
        %v2091 = vunpack.c.l.b16 %v2059
        %v2092 = vunpack.c.l.b16 %v2060
        %v2093 = vunpack.c.l.b16 %v2061
        %v2094 = vunpack.c.l.b16 %v2062
        %v2095 = vunpack.c.l.b16 %v2063
        %v2096 = vunpack.c.l.b16 %v2064
        %v2097 = vunpack.c.l.b16 %v2065
        %v2098 = vunpack.c.l.b16 %v2066
        %v2099 = vunpack.c.l.b16 %v2067
        %v2100 = vunpack.c.l.b16 %v2068
        %v2101 = vunpack.c.l.b16 %v2069
        %v2102 = vunpack.c.l.b16 %v2070
        %v2103 = vunpack.c.l.b16 %v2071
        %v2104 = vunpack.c.l.b16 %v2072
        %v2105 = vunpack.c.l.b16 %v2073
        %v2106 = vpack.c.b16 %v2091, %v2090
        %v2107 = vpack.c.b16 %v2093, %v2092
        %v2108 = vpack.c.b16 %v2095, %v2094
        %v2109 = vpack.c.b16 %v2097, %v2096
        %v2110 = vpack.c.b16 %v2099, %v2098
        %v2111 = vpack.c.b16 %v2101, %v2100
        %v2112 = vpack.c.b16 %v2103, %v2102
        %v2113 = vpack.c.b16 %v2105, %v2104
        %2122 = vmatprep.subr.bf16.mxu0 0
        %2123 = vmatpush1.bf16.msra.mxu0 %v2106
        %2124 = vmatprep.subr.bf16.mxu0 0
        %2125 = vmatpush1.bf16.msra.mxu0 %v2107
        %2126 = vmatprep.subr.bf16.mxu0 0
        %2127 = vmatpush1.bf16.msra.mxu0 %v2108
        %2128 = vmatprep.subr.bf16.mxu0 0
        %2129 = vmatpush1.bf16.msra.mxu0 %v2109
        %2130 = vmatprep.subr.bf16.mxu0 0
        %2131 = vmatpush1.bf16.msra.mxu0 %v2110
        %2132 = vmatprep.subr.bf16.mxu0 0
        %2133 = vmatpush1.bf16.msra.mxu0 %v2111
        %2134 = vmatprep.subr.bf16.mxu0 0
        %2135 = vmatpush1.bf16.msra.mxu0 %v2112
        %2136 = vmatprep.subr.bf16.mxu0 0
        %2137 = vmatpush1.bf16.msra.mxu0 %v2113
        %2138 = vmatprep.subr.bf16.mxu0 0
        %2139 = vmatpush1.bf16.msra.mxu0 0
        %2140 = vmatprep.subr.bf16.mxu0 0
        %2141 = vmatpush1.bf16.msra.mxu0 0
        %2142 = vmatprep.subr.bf16.mxu0 0
        %2143 = vmatpush1.bf16.msra.mxu0 0
        %2144 = vmatprep.subr.bf16.mxu0 0
        %2145 = vmatpush1.bf16.msra.mxu0 0
        %2146 = vmatprep.subr.bf16.mxu0 0
        %2147 = vmatpush1.bf16.msra.mxu0 0
        %2148 = vmatprep.subr.bf16.mxu0 0
        %2149 = vmatpush1.bf16.msra.mxu0 0
        %2150 = vmatprep.subr.bf16.mxu0 0
        %2151 = vmatpush1.bf16.msra.mxu0 0
        %2152 = vmatprep.subr.bf16.mxu0 0
        %2153 = vmatpush1.bf16.msra.mxu0 0
        %2154 = vmatprep.mubr.bf16.mxu0 0
        %2155 = vmatmul.mubr.bf16.gmra.mrb[0].mxu0 %v2052
        %v2156 = vpop.f32.mrb[0].mxu0
        %v2157 = vadd.f32 0.0, %v2156
        %v2158 = vpop.f32.mrb[0].mxu0
        %v2159 = vpop.f32.mrb[0].mxu0
        %v2160 = vadd.f32 0.0, %v2159
        %v2161 = vpop.f32.mrb[0].mxu0
        %2162 = vmatprep.mubr.bf16.mxu0 0
        %2163 = vmatmul.mubr.bf16.gmra.mrb[0].mxu0 %v2055
        %v2164 = vpop.f32.mrb[0].mxu0
        %v2165 = vadd.f32 0.0, %v2164
        %v2166 = vpop.f32.mrb[0].mxu0
        %v2167 = vpop.f32.mrb[0].mxu0
        %v2168 = vadd.f32 0.0, %v2167
        %v2169 = vpop.f32.mrb[0].mxu0
        %2170 = vdwg.mxu0
        %v2187 = vunpack.c.l.b16 %v2034
        %v2188 = vunpack.c.l.b16 %v2035
        %v2189 = vunpack.c.l.b16 %v2036
        %v2190 = vunpack.c.l.b16 %v2037
        %v2191 = vunpack.c.l.b16 %v2038
        %v2192 = vunpack.c.l.b16 %v2039
        %v2193 = vunpack.c.l.b16 %v2040
        %v2194 = vunpack.c.l.b16 %v2041
        %v2195 = vunpack.c.l.b16 %v2042
        %v2196 = vunpack.c.l.b16 %v2043
        %v2197 = vunpack.c.l.b16 %v2044
        %v2198 = vunpack.c.l.b16 %v2045
        %v2199 = vunpack.c.l.b16 %v2046
        %v2200 = vunpack.c.l.b16 %v2047
        %v2201 = vunpack.c.l.b16 %v2048
        %v2202 = vunpack.c.l.b16 %v2049
        %v2203 = vpack.c.b16 %v2188, %v2187
        %v2204 = vpack.c.b16 %v2190, %v2189
        %v2205 = vpack.c.b16 %v2192, %v2191
        %v2206 = vpack.c.b16 %v2194, %v2193
        %v2207 = vpack.c.b16 %v2196, %v2195
        %v2208 = vpack.c.b16 %v2198, %v2197
        %v2209 = vpack.c.b16 %v2200, %v2199
        %v2210 = vpack.c.b16 %v2202, %v2201
        %2219 = vmatprep.subr.bf16.mxu0 0
        %2220 = vmatpush1.bf16.msra.mxu0 %v2203
        %2221 = vmatprep.subr.bf16.mxu0 0
        %2222 = vmatpush1.bf16.msra.mxu0 %v2204
        %2223 = vmatprep.subr.bf16.mxu0 0
        %2224 = vmatpush1.bf16.msra.mxu0 %v2205
        %2225 = vmatprep.subr.bf16.mxu0 0
        %2226 = vmatpush1.bf16.msra.mxu0 %v2206
        %2227 = vmatprep.subr.bf16.mxu0 0
        %2228 = vmatpush1.bf16.msra.mxu0 %v2207
        %2229 = vmatprep.subr.bf16.mxu0 0
        %2230 = vmatpush1.bf16.msra.mxu0 %v2208
        %2231 = vmatprep.subr.bf16.mxu0 0
        %2232 = vmatpush1.bf16.msra.mxu0 %v2209
        %2233 = vmatprep.subr.bf16.mxu0 0
        %2234 = vmatpush1.bf16.msra.mxu0 %v2210
        %2235 = vmatprep.subr.bf16.mxu0 0
        %2236 = vmatpush1.bf16.msra.mxu0 0
        %2237 = vmatprep.subr.bf16.mxu0 0
        %2238 = vmatpush1.bf16.msra.mxu0 0
        %2239 = vmatprep.subr.bf16.mxu0 0
        %2240 = vmatpush1.bf16.msra.mxu0 0
        %2241 = vmatprep.subr.bf16.mxu0 0
        %2242 = vmatpush1.bf16.msra.mxu0 0
        %2243 = vmatprep.subr.bf16.mxu0 0
        %2244 = vmatpush1.bf16.msra.mxu0 0
        %2245 = vmatprep.subr.bf16.mxu0 0
        %2246 = vmatpush1.bf16.msra.mxu0 0
        %2247 = vmatprep.subr.bf16.mxu0 0
        %2248 = vmatpush1.bf16.msra.mxu0 0
        %2249 = vmatprep.subr.bf16.mxu0 0
        %2250 = vmatpush1.bf16.msra.mxu0 0
        %2251 = vmatprep.mubr.bf16.mxu0 0
        %2252 = vmatmul.mubr.bf16.gmra.mrb[0].mxu0 %v2028
        %v2253 = vpop.f32.mrb[0].mxu0
        %v2254 = vadd.f32 %v2157, %v2253
        %v2255 = vpop.f32.mrb[0].mxu0
        %v2256 = vpop.f32.mrb[0].mxu0
        %v2257 = vadd.f32 %v2160, %v2256
        %v2258 = vpop.f32.mrb[0].mxu0
        %2259 = vmatprep.mubr.bf16.mxu0 0
        %2260 = vmatmul.mubr.bf16.gmra.mrb[0].mxu0 %v2032
        %v2261 = vpop.f32.mrb[0].mxu0
        %v2262 = vadd.f32 %v2165, %v2261
        %v2263 = vpop.f32.mrb[0].mxu0
        %v2264 = vpop.f32.mrb[0].mxu0
        %v2265 = vadd.f32 %v2168, %v2264
        %v2266 = vpop.f32.mrb[0].mxu0
        %2267 = vdwg.mxu0
        %v2269 = vrot.slane %v2021, 4
        %v2271 = vrot.slane %v2023, 4
        %v2274 = vsel %vm520, %v2269, %v2022
        %v2278 = vsel %vm520, %v2271, %v2024
        %s2280 = scalar_lea.vmem %s3, 128
        %v2281 = vld [vmem:[%s2280] sm:$0xf]
        %v2282 = vld [vmem:[%s2280 + $0x4] sm:$0xf]
        %v2283 = vld [vmem:[%s2280 + $0x8] sm:$0xf]
        %v2284 = vld [vmem:[%s2280 + $0xc] sm:$0xf]
        %v2285 = vld [vmem:[%s2280 + $0x10] sm:$0xf]
        %v2286 = vld [vmem:[%s2280 + $0x14] sm:$0xf]
        %v2287 = vld [vmem:[%s2280 + $0x18] sm:$0xf]
        %v2288 = vld [vmem:[%s2280 + $0x1c] sm:$0xf]
        %v2289 = vld [vmem:[%s2280 + $0x20] sm:$0xf]
        %v2290 = vld [vmem:[%s2280 + $0x24] sm:$0xf]
        %v2291 = vld [vmem:[%s2280 + $0x28] sm:$0xf]
        %v2292 = vld [vmem:[%s2280 + $0x2c] sm:$0xf]
        %v2293 = vld [vmem:[%s2280 + $0x30] sm:$0xf]
        %v2294 = vld [vmem:[%s2280 + $0x34] sm:$0xf]
        %v2295 = vld [vmem:[%s2280 + $0x38] sm:$0xf]
        %v2296 = vld [vmem:[%s2280 + $0x3c] sm:$0xf]
        %v2313 = vunpack.c.l.b16 %v2281
        %v2314 = vunpack.c.l.b16 %v2282
        %v2315 = vunpack.c.l.b16 %v2283
        %v2316 = vunpack.c.l.b16 %v2284
        %v2317 = vunpack.c.l.b16 %v2285
        %v2318 = vunpack.c.l.b16 %v2286
        %v2319 = vunpack.c.l.b16 %v2287
        %v2320 = vunpack.c.l.b16 %v2288
        %v2321 = vunpack.c.l.b16 %v2289
        %v2322 = vunpack.c.l.b16 %v2290
        %v2323 = vunpack.c.l.b16 %v2291
        %v2324 = vunpack.c.l.b16 %v2292
        %v2325 = vunpack.c.l.b16 %v2293
        %v2326 = vunpack.c.l.b16 %v2294
        %v2327 = vunpack.c.l.b16 %v2295
        %v2328 = vunpack.c.l.b16 %v2296
        %v2329 = vpack.c.b16 %v2314, %v2313
        %v2330 = vpack.c.b16 %v2316, %v2315
        %v2331 = vpack.c.b16 %v2318, %v2317
        %v2332 = vpack.c.b16 %v2320, %v2319
        %v2333 = vpack.c.b16 %v2322, %v2321
        %v2334 = vpack.c.b16 %v2324, %v2323
        %v2335 = vpack.c.b16 %v2326, %v2325
        %v2336 = vpack.c.b16 %v2328, %v2327
        %2345 = vmatprep.subr.bf16.mxu0 0
        %2346 = vmatpush1.bf16.msra.mxu0 %v2329
        %2347 = vmatprep.subr.bf16.mxu0 0
        %2348 = vmatpush1.bf16.msra.mxu0 %v2330
        %2349 = vmatprep.subr.bf16.mxu0 0
        %2350 = vmatpush1.bf16.msra.mxu0 %v2331
        %2351 = vmatprep.subr.bf16.mxu0 0
        %2352 = vmatpush1.bf16.msra.mxu0 %v2332
        %2353 = vmatprep.subr.bf16.mxu0 0
        %2354 = vmatpush1.bf16.msra.mxu0 %v2333
        %2355 = vmatprep.subr.bf16.mxu0 0
        %2356 = vmatpush1.bf16.msra.mxu0 %v2334
        %2357 = vmatprep.subr.bf16.mxu0 0
        %2358 = vmatpush1.bf16.msra.mxu0 %v2335
        %2359 = vmatprep.subr.bf16.mxu0 0
        %2360 = vmatpush1.bf16.msra.mxu0 %v2336
        %2361 = vmatprep.subr.bf16.mxu0 0
        %2362 = vmatpush1.bf16.msra.mxu0 0
        %2363 = vmatprep.subr.bf16.mxu0 0
        %2364 = vmatpush1.bf16.msra.mxu0 0
        %2365 = vmatprep.subr.bf16.mxu0 0
        %2366 = vmatpush1.bf16.msra.mxu0 0
        %2367 = vmatprep.subr.bf16.mxu0 0
        %2368 = vmatpush1.bf16.msra.mxu0 0
        %2369 = vmatprep.subr.bf16.mxu0 0
        %2370 = vmatpush1.bf16.msra.mxu0 0
        %2371 = vmatprep.subr.bf16.mxu0 0
        %2372 = vmatpush1.bf16.msra.mxu0 0
        %2373 = vmatprep.subr.bf16.mxu0 0
        %2374 = vmatpush1.bf16.msra.mxu0 0
        %2375 = vmatprep.subr.bf16.mxu0 0
        %2376 = vmatpush1.bf16.msra.mxu0 0
        %2377 = vmatprep.mubr.bf16.mxu0 0
        %2378 = vmatmul.mubr.bf16.gmra.mrb[0].mxu0 %v2274
        %v2379 = vpop.f32.mrb[0].mxu0
        %v2380 = vadd.f32 0.0, %v2379
        %v2381 = vpop.f32.mrb[0].mxu0
        %v2382 = vpop.f32.mrb[0].mxu0
        %v2383 = vadd.f32 0.0, %v2382
        %v2384 = vpop.f32.mrb[0].mxu0
        %2385 = vmatprep.mubr.bf16.mxu0 0
        %2386 = vmatmul.mubr.bf16.gmra.mrb[0].mxu0 %v2278
        %v2387 = vpop.f32.mrb[0].mxu0
        %v2388 = vadd.f32 0.0, %v2387
        %v2389 = vpop.f32.mrb[0].mxu0
        %v2390 = vpop.f32.mrb[0].mxu0
        %v2391 = vadd.f32 0.0, %v2390
        %v2392 = vpop.f32.mrb[0].mxu0
        %2393 = vdwg.mxu0
        %v2394 = vadd.f32 %v2254, %v2380
        %v2395 = vadd.f32 %v2257, %v2383
        %v2396 = vadd.f32 %v2262, %v2388
        %v2397 = vadd.f32 %v2265, %v2391
        %v2398 = vsel %vm520, %v2022, %v2271
        %v2400 = vsel %vm520, %v2024, 0
        %s2402 = scalar_lea.vmem %s3, 192
        %v2403 = vld [vmem:[%s2402] sm:$0xf]
        %v2404 = vld [vmem:[%s2402 + $0x4] sm:$0xf]
        %v2405 = vld [vmem:[%s2402 + $0x8] sm:$0xf]
        %v2406 = vld [vmem:[%s2402 + $0xc] sm:$0xf]
        %v2407 = vld [vmem:[%s2402 + $0x10] sm:$0xf]
        %v2408 = vld [vmem:[%s2402 + $0x14] sm:$0xf]
        %v2409 = vld [vmem:[%s2402 + $0x18] sm:$0xf]
        %v2410 = vld [vmem:[%s2402 + $0x1c] sm:$0xf]
        %v2411 = vld [vmem:[%s2402 + $0x20] sm:$0xf]
        %v2412 = vld [vmem:[%s2402 + $0x24] sm:$0xf]
        %v2413 = vld [vmem:[%s2402 + $0x28] sm:$0xf]
        %v2414 = vld [vmem:[%s2402 + $0x2c] sm:$0xf]
        %v2415 = vld [vmem:[%s2402 + $0x30] sm:$0xf]
        %v2416 = vld [vmem:[%s2402 + $0x34] sm:$0xf]
        %v2417 = vld [vmem:[%s2402 + $0x38] sm:$0xf]
        %v2418 = vld [vmem:[%s2402 + $0x3c] sm:$0xf]
        %v2435 = vunpack.c.l.b16 %v2403
        %v2436 = vunpack.c.l.b16 %v2404
        %v2437 = vunpack.c.l.b16 %v2405
        %v2438 = vunpack.c.l.b16 %v2406
        %v2439 = vunpack.c.l.b16 %v2407
        %v2440 = vunpack.c.l.b16 %v2408
        %v2441 = vunpack.c.l.b16 %v2409
        %v2442 = vunpack.c.l.b16 %v2410
        %v2443 = vunpack.c.l.b16 %v2411
        %v2444 = vunpack.c.l.b16 %v2412
        %v2445 = vunpack.c.l.b16 %v2413
        %v2446 = vunpack.c.l.b16 %v2414
        %v2447 = vunpack.c.l.b16 %v2415
        %v2448 = vunpack.c.l.b16 %v2416
        %v2449 = vunpack.c.l.b16 %v2417
        %v2450 = vunpack.c.l.b16 %v2418
        %v2451 = vpack.c.b16 %v2436, %v2435
        %v2452 = vpack.c.b16 %v2438, %v2437
        %v2453 = vpack.c.b16 %v2440, %v2439
        %v2454 = vpack.c.b16 %v2442, %v2441
        %v2455 = vpack.c.b16 %v2444, %v2443
        %v2456 = vpack.c.b16 %v2446, %v2445
        %v2457 = vpack.c.b16 %v2448, %v2447
        %v2458 = vpack.c.b16 %v2450, %v2449
        %2467 = vmatprep.subr.bf16.mxu0 0
        %2468 = vmatpush1.bf16.msra.mxu0 %v2451
        %2469 = vmatprep.subr.bf16.mxu0 0
        %2470 = vmatpush1.bf16.msra.mxu0 %v2452
        %2471 = vmatprep.subr.bf16.mxu0 0
        %2472 = vmatpush1.bf16.msra.mxu0 %v2453
        %2473 = vmatprep.subr.bf16.mxu0 0
        %2474 = vmatpush1.bf16.msra.mxu0 %v2454
        %2475 = vmatprep.subr.bf16.mxu0 0
        %2476 = vmatpush1.bf16.msra.mxu0 %v2455
        %2477 = vmatprep.subr.bf16.mxu0 0
        %2478 = vmatpush1.bf16.msra.mxu0 %v2456
        %2479 = vmatprep.subr.bf16.mxu0 0
        %2480 = vmatpush1.bf16.msra.mxu0 %v2457
        %2481 = vmatprep.subr.bf16.mxu0 0
        %2482 = vmatpush1.bf16.msra.mxu0 %v2458
        %2483 = vmatprep.subr.bf16.mxu0 0
        %2484 = vmatpush1.bf16.msra.mxu0 0
        %2485 = vmatprep.subr.bf16.mxu0 0
        %2486 = vmatpush1.bf16.msra.mxu0 0
        %2487 = vmatprep.subr.bf16.mxu0 0
        %2488 = vmatpush1.bf16.msra.mxu0 0
        %2489 = vmatprep.subr.bf16.mxu0 0
        %2490 = vmatpush1.bf16.msra.mxu0 0
        %2491 = vmatprep.subr.bf16.mxu0 0
        %2492 = vmatpush1.bf16.msra.mxu0 0
        %2493 = vmatprep.subr.bf16.mxu0 0
        %2494 = vmatpush1.bf16.msra.mxu0 0
        %2495 = vmatprep.subr.bf16.mxu0 0
        %2496 = vmatpush1.bf16.msra.mxu0 0
        %2497 = vmatprep.subr.bf16.mxu0 0
        %2498 = vmatpush1.bf16.msra.mxu0 0
        %2499 = vmatprep.mubr.bf16.mxu0 0
        %2500 = vmatmul.mubr.bf16.gmra.mrb[0].mxu0 %v2398
        %v2501 = vpop.f32.mrb[0].mxu0
        %v2502 = vadd.f32 0.0, %v2501
        %v2503 = vpop.f32.mrb[0].mxu0
        %v2504 = vpop.f32.mrb[0].mxu0
        %v2505 = vadd.f32 0.0, %v2504
        %v2506 = vpop.f32.mrb[0].mxu0
        %2507 = vmatprep.mubr.bf16.mxu0 0
        %2508 = vmatmul.mubr.bf16.gmra.mrb[0].mxu0 %v2400
        %v2509 = vpop.f32.mrb[0].mxu0
        %v2510 = vadd.f32 0.0, %v2509
        %v2511 = vpop.f32.mrb[0].mxu0
        %v2512 = vpop.f32.mrb[0].mxu0
        %v2513 = vadd.f32 0.0, %v2512
        %v2514 = vpop.f32.mrb[0].mxu0
        %2515 = vdwg.mxu0
        %v2516 = vadd.f32 %v2394, %v2502
        %v2517 = vadd.f32 %v2395, %v2505
        %v2518 = vadd.f32 %v2396, %v2510
        %v2519 = vadd.f32 %v2397, %v2513
        %vm2520 = vcmp.gt.f32.partialorder %v2516, 0.0
        %vm2521 = vcmp.gt.f32.partialorder %v2517, 0.0
        %vm2522 = vcmp.gt.f32.partialorder %v2518, 0.0
        %vm2523 = vcmp.gt.f32.partialorder %v2519, 0.0
        %v2524 = vmul.f32 %v2516, 0.2
        %v2525 = vmul.f32 %v2517, 0.2
        %v2526 = vmul.f32 %v2518, 0.2
        %v2527 = vmul.f32 %v2519, 0.2
        %v2528 = vsel %vm2520, %v2516, %v2524
        %v2529 = vsel %vm2521, %v2517, %v2525
        %v2530 = vsel %vm2522, %v2518, %v2526
        %v2531 = vsel %vm2523, %v2519, %v2527
        %v2532 = vpack.c.bf16 %v2529, %v2528
        %v2533 = vpack.c.bf16 %v2531, %v2530
        %v2535 = vsel %vm520, 0, %v2532
        %v2537 = vld [vmem:[%s4] sm:$0xf]
        %v2538 = vld [vmem:[%s4 + $0x4] sm:$0xf]
        %v2539 = vld [vmem:[%s4 + $0x8] sm:$0xf]
        %v2540 = vld [vmem:[%s4 + $0xc] sm:$0xf]
        %v2541 = vld [vmem:[%s4 + $0x10] sm:$0xf]
        %v2542 = vld [vmem:[%s4 + $0x14] sm:$0xf]
        %v2543 = vld [vmem:[%s4 + $0x18] sm:$0xf]
        %v2544 = vld [vmem:[%s4 + $0x1c] sm:$0xf]
        %v2545 = vld [vmem:[%s4 + $0x20] sm:$0xf]
        %v2546 = vld [vmem:[%s4 + $0x24] sm:$0xf]
        %v2547 = vld [vmem:[%s4 + $0x28] sm:$0xf]
        %v2548 = vld [vmem:[%s4 + $0x2c] sm:$0xf]
        %v2549 = vld [vmem:[%s4 + $0x30] sm:$0xf]
        %v2550 = vld [vmem:[%s4 + $0x34] sm:$0xf]
        %v2551 = vld [vmem:[%s4 + $0x38] sm:$0xf]
        %v2552 = vld [vmem:[%s4 + $0x3c] sm:$0xf]
        %v2554 = vrot.slane %v2533, 4
        %v2556 = vsel %vm520, %v2532, %v2554
        %s2558 = scalar_lea.vmem %s4, 64
        %v2559 = vld [vmem:[%s2558] sm:$0xf]
        %v2560 = vld [vmem:[%s2558 + $0x4] sm:$0xf]
        %v2561 = vld [vmem:[%s2558 + $0x8] sm:$0xf]
        %v2562 = vld [vmem:[%s2558 + $0xc] sm:$0xf]
        %v2563 = vld [vmem:[%s2558 + $0x10] sm:$0xf]
        %v2564 = vld [vmem:[%s2558 + $0x14] sm:$0xf]
        %v2565 = vld [vmem:[%s2558 + $0x18] sm:$0xf]
        %v2566 = vld [vmem:[%s2558 + $0x1c] sm:$0xf]
        %v2567 = vld [vmem:[%s2558 + $0x20] sm:$0xf]
        %v2568 = vld [vmem:[%s2558 + $0x24] sm:$0xf]
        %v2569 = vld [vmem:[%s2558 + $0x28] sm:$0xf]
        %v2570 = vld [vmem:[%s2558 + $0x2c] sm:$0xf]
        %v2571 = vld [vmem:[%s2558 + $0x30] sm:$0xf]
        %v2572 = vld [vmem:[%s2558 + $0x34] sm:$0xf]
        %v2573 = vld [vmem:[%s2558 + $0x38] sm:$0xf]
        %v2574 = vld [vmem:[%s2558 + $0x3c] sm:$0xf]
        %v2591 = vunpack.c.l.b16 %v2559
        %v2592 = vunpack.c.l.b16 %v2560
        %v2593 = vunpack.c.l.b16 %v2561
        %v2594 = vunpack.c.l.b16 %v2562
        %v2595 = vunpack.c.l.b16 %v2563
        %v2596 = vunpack.c.l.b16 %v2564
        %v2597 = vunpack.c.l.b16 %v2565
        %v2598 = vunpack.c.l.b16 %v2566
        %v2599 = vunpack.c.l.b16 %v2567
        %v2600 = vunpack.c.l.b16 %v2568
        %v2601 = vunpack.c.l.b16 %v2569
        %v2602 = vunpack.c.l.b16 %v2570
        %v2603 = vunpack.c.l.b16 %v2571
        %v2604 = vunpack.c.l.b16 %v2572
        %v2605 = vunpack.c.l.b16 %v2573
        %v2606 = vunpack.c.l.b16 %v2574
        %v2607 = vpack.c.b16 %v2592, %v2591
        %v2608 = vpack.c.b16 %v2594, %v2593
        %v2609 = vpack.c.b16 %v2596, %v2595
        %v2610 = vpack.c.b16 %v2598, %v2597
        %v2611 = vpack.c.b16 %v2600, %v2599
        %v2612 = vpack.c.b16 %v2602, %v2601
        %v2613 = vpack.c.b16 %v2604, %v2603
        %v2614 = vpack.c.b16 %v2606, %v2605
        %2623 = vmatprep.subr.bf16.mxu0 0
        %2624 = vmatpush1.bf16.msra.mxu0 %v2607
        %2625 = vmatprep.subr.bf16.mxu0 0
        %2626 = vmatpush1.bf16.msra.mxu0 %v2608
        %2627 = vmatprep.subr.bf16.mxu0 0
        %2628 = vmatpush1.bf16.msra.mxu0 %v2609
        %2629 = vmatprep.subr.bf16.mxu0 0
        %2630 = vmatpush1.bf16.msra.mxu0 %v2610
        %2631 = vmatprep.subr.bf16.mxu0 0
        %2632 = vmatpush1.bf16.msra.mxu0 %v2611
        %2633 = vmatprep.subr.bf16.mxu0 0
        %2634 = vmatpush1.bf16.msra.mxu0 %v2612
        %2635 = vmatprep.subr.bf16.mxu0 0
        %2636 = vmatpush1.bf16.msra.mxu0 %v2613
        %2637 = vmatprep.subr.bf16.mxu0 0
        %2638 = vmatpush1.bf16.msra.mxu0 %v2614
        %2639 = vmatprep.subr.bf16.mxu0 0
        %2640 = vmatpush1.bf16.msra.mxu0 0
        %2641 = vmatprep.subr.bf16.mxu0 0
        %2642 = vmatpush1.bf16.msra.mxu0 0
        %2643 = vmatprep.subr.bf16.mxu0 0
        %2644 = vmatpush1.bf16.msra.mxu0 0
        %2645 = vmatprep.subr.bf16.mxu0 0
        %2646 = vmatpush1.bf16.msra.mxu0 0
        %2647 = vmatprep.subr.bf16.mxu0 0
        %2648 = vmatpush1.bf16.msra.mxu0 0
        %2649 = vmatprep.subr.bf16.mxu0 0
        %2650 = vmatpush1.bf16.msra.mxu0 0
        %2651 = vmatprep.subr.bf16.mxu0 0
        %2652 = vmatpush1.bf16.msra.mxu0 0
        %2653 = vmatprep.subr.bf16.mxu0 0
        %2654 = vmatpush1.bf16.msra.mxu0 0
        %2655 = vmatprep.mubr.bf16.mxu0 0
        %2656 = vmatmul.mubr.bf16.gmra.mrb[0].mxu0 %v2556
        %v2657 = vpop.f32.mrb[0].mxu0
        %v2658 = vadd.f32 0.0, %v2657
        %v2659 = vpop.f32.mrb[0].mxu0
        %v2660 = vpop.f32.mrb[0].mxu0
        %v2661 = vadd.f32 0.0, %v2660
        %v2662 = vpop.f32.mrb[0].mxu0
        %2663 = vdwg.mxu0
        %v2680 = vunpack.c.l.b16 %v2537
        %v2681 = vunpack.c.l.b16 %v2538
        %v2682 = vunpack.c.l.b16 %v2539
        %v2683 = vunpack.c.l.b16 %v2540
        %v2684 = vunpack.c.l.b16 %v2541
        %v2685 = vunpack.c.l.b16 %v2542
        %v2686 = vunpack.c.l.b16 %v2543
        %v2687 = vunpack.c.l.b16 %v2544
        %v2688 = vunpack.c.l.b16 %v2545
        %v2689 = vunpack.c.l.b16 %v2546
        %v2690 = vunpack.c.l.b16 %v2547
        %v2691 = vunpack.c.l.b16 %v2548
        %v2692 = vunpack.c.l.b16 %v2549
        %v2693 = vunpack.c.l.b16 %v2550
        %v2694 = vunpack.c.l.b16 %v2551
        %v2695 = vunpack.c.l.b16 %v2552
        %v2696 = vpack.c.b16 %v2681, %v2680
        %v2697 = vpack.c.b16 %v2683, %v2682
        %v2698 = vpack.c.b16 %v2685, %v2684
        %v2699 = vpack.c.b16 %v2687, %v2686
        %v2700 = vpack.c.b16 %v2689, %v2688
        %v2701 = vpack.c.b16 %v2691, %v2690
        %v2702 = vpack.c.b16 %v2693, %v2692
        %v2703 = vpack.c.b16 %v2695, %v2694
        %2712 = vmatprep.subr.bf16.mxu0 0
        %2713 = vmatpush1.bf16.msra.mxu0 %v2696
        %2714 = vmatprep.subr.bf16.mxu0 0
        %2715 = vmatpush1.bf16.msra.mxu0 %v2697
        %2716 = vmatprep.subr.bf16.mxu0 0
        %2717 = vmatpush1.bf16.msra.mxu0 %v2698
        %2718 = vmatprep.subr.bf16.mxu0 0
        %2719 = vmatpush1.bf16.msra.mxu0 %v2699
        %2720 = vmatprep.subr.bf16.mxu0 0
        %2721 = vmatpush1.bf16.msra.mxu0 %v2700
        %2722 = vmatprep.subr.bf16.mxu0 0
        %2723 = vmatpush1.bf16.msra.mxu0 %v2701
        %2724 = vmatprep.subr.bf16.mxu0 0
        %2725 = vmatpush1.bf16.msra.mxu0 %v2702
        %2726 = vmatprep.subr.bf16.mxu0 0
        %2727 = vmatpush1.bf16.msra.mxu0 %v2703
        %2728 = vmatprep.subr.bf16.mxu0 0
        %2729 = vmatpush1.bf16.msra.mxu0 0
        %2730 = vmatprep.subr.bf16.mxu0 0
        %2731 = vmatpush1.bf16.msra.mxu0 0
        %2732 = vmatprep.subr.bf16.mxu0 0
        %2733 = vmatpush1.bf16.msra.mxu0 0
        %2734 = vmatprep.subr.bf16.mxu0 0
        %2735 = vmatpush1.bf16.msra.mxu0 0
        %2736 = vmatprep.subr.bf16.mxu0 0
        %2737 = vmatpush1.bf16.msra.mxu0 0
        %2738 = vmatprep.subr.bf16.mxu0 0
        %2739 = vmatpush1.bf16.msra.mxu0 0
        %2740 = vmatprep.subr.bf16.mxu0 0
        %2741 = vmatpush1.bf16.msra.mxu0 0
        %2742 = vmatprep.subr.bf16.mxu0 0
        %2743 = vmatpush1.bf16.msra.mxu0 0
        %2744 = vmatprep.mubr.bf16.mxu0 0
        %2745 = vmatmul.mubr.bf16.gmra.mrb[0].mxu0 %v2535
        %v2746 = vpop.f32.mrb[0].mxu0
        %v2747 = vadd.f32 %v2658, %v2746
        %v2748 = vpop.f32.mrb[0].mxu0
        %v2749 = vpop.f32.mrb[0].mxu0
        %v2750 = vadd.f32 %v2661, %v2749
        %v2751 = vpop.f32.mrb[0].mxu0
        %2752 = vdwg.mxu0
        %v2754 = vrot.slane %v2532, 4
        %v2757 = vsel %vm520, %v2754, %v2533
        %s2759 = scalar_lea.vmem %s4, 128
        %v2760 = vld [vmem:[%s2759] sm:$0xf]
        %v2761 = vld [vmem:[%s2759 + $0x4] sm:$0xf]
        %v2762 = vld [vmem:[%s2759 + $0x8] sm:$0xf]
        %v2763 = vld [vmem:[%s2759 + $0xc] sm:$0xf]
        %v2764 = vld [vmem:[%s2759 + $0x10] sm:$0xf]
        %v2765 = vld [vmem:[%s2759 + $0x14] sm:$0xf]
        %v2766 = vld [vmem:[%s2759 + $0x18] sm:$0xf]
        %v2767 = vld [vmem:[%s2759 + $0x1c] sm:$0xf]
        %v2768 = vld [vmem:[%s2759 + $0x20] sm:$0xf]
        %v2769 = vld [vmem:[%s2759 + $0x24] sm:$0xf]
        %v2770 = vld [vmem:[%s2759 + $0x28] sm:$0xf]
        %v2771 = vld [vmem:[%s2759 + $0x2c] sm:$0xf]
        %v2772 = vld [vmem:[%s2759 + $0x30] sm:$0xf]
        %v2773 = vld [vmem:[%s2759 + $0x34] sm:$0xf]
        %v2774 = vld [vmem:[%s2759 + $0x38] sm:$0xf]
        %v2775 = vld [vmem:[%s2759 + $0x3c] sm:$0xf]
        %v2792 = vunpack.c.l.b16 %v2760
        %v2793 = vunpack.c.l.b16 %v2761
        %v2794 = vunpack.c.l.b16 %v2762
        %v2795 = vunpack.c.l.b16 %v2763
        %v2796 = vunpack.c.l.b16 %v2764
        %v2797 = vunpack.c.l.b16 %v2765
        %v2798 = vunpack.c.l.b16 %v2766
        %v2799 = vunpack.c.l.b16 %v2767
        %v2800 = vunpack.c.l.b16 %v2768
        %v2801 = vunpack.c.l.b16 %v2769
        %v2802 = vunpack.c.l.b16 %v2770
        %v2803 = vunpack.c.l.b16 %v2771
        %v2804 = vunpack.c.l.b16 %v2772
        %v2805 = vunpack.c.l.b16 %v2773
        %v2806 = vunpack.c.l.b16 %v2774
        %v2807 = vunpack.c.l.b16 %v2775
        %v2808 = vpack.c.b16 %v2793, %v2792
        %v2809 = vpack.c.b16 %v2795, %v2794
        %v2810 = vpack.c.b16 %v2797, %v2796
        %v2811 = vpack.c.b16 %v2799, %v2798
        %v2812 = vpack.c.b16 %v2801, %v2800
        %v2813 = vpack.c.b16 %v2803, %v2802
        %v2814 = vpack.c.b16 %v2805, %v2804
        %v2815 = vpack.c.b16 %v2807, %v2806
        %2824 = vmatprep.subr.bf16.mxu0 0
        %2825 = vmatpush1.bf16.msra.mxu0 %v2808
        %2826 = vmatprep.subr.bf16.mxu0 0
        %2827 = vmatpush1.bf16.msra.mxu0 %v2809
        %2828 = vmatprep.subr.bf16.mxu0 0
        %2829 = vmatpush1.bf16.msra.mxu0 %v2810
        %2830 = vmatprep.subr.bf16.mxu0 0
        %2831 = vmatpush1.bf16.msra.mxu0 %v2811
        %2832 = vmatprep.subr.bf16.mxu0 0
        %2833 = vmatpush1.bf16.msra.mxu0 %v2812
        %2834 = vmatprep.subr.bf16.mxu0 0
        %2835 = vmatpush1.bf16.msra.mxu0 %v2813
        %2836 = vmatprep.subr.bf16.mxu0 0
        %2837 = vmatpush1.bf16.msra.mxu0 %v2814
        %2838 = vmatprep.subr.bf16.mxu0 0
        %2839 = vmatpush1.bf16.msra.mxu0 %v2815
        %2840 = vmatprep.subr.bf16.mxu0 0
        %2841 = vmatpush1.bf16.msra.mxu0 0
        %2842 = vmatprep.subr.bf16.mxu0 0
        %2843 = vmatpush1.bf16.msra.mxu0 0
        %2844 = vmatprep.subr.bf16.mxu0 0
        %2845 = vmatpush1.bf16.msra.mxu0 0
        %2846 = vmatprep.subr.bf16.mxu0 0
        %2847 = vmatpush1.bf16.msra.mxu0 0
        %2848 = vmatprep.subr.bf16.mxu0 0
        %2849 = vmatpush1.bf16.msra.mxu0 0
        %2850 = vmatprep.subr.bf16.mxu0 0
        %2851 = vmatpush1.bf16.msra.mxu0 0
        %2852 = vmatprep.subr.bf16.mxu0 0
        %2853 = vmatpush1.bf16.msra.mxu0 0
        %2854 = vmatprep.subr.bf16.mxu0 0
        %2855 = vmatpush1.bf16.msra.mxu0 0
        %2856 = vmatprep.mubr.bf16.mxu0 0
        %2857 = vmatmul.mubr.bf16.gmra.mrb[0].mxu0 %v2757
        %v2858 = vpop.f32.mrb[0].mxu0
        %v2859 = vadd.f32 0.0, %v2858
        %v2860 = vpop.f32.mrb[0].mxu0
        %v2861 = vpop.f32.mrb[0].mxu0
        %v2862 = vadd.f32 0.0, %v2861
        %v2863 = vpop.f32.mrb[0].mxu0
        %2864 = vdwg.mxu0
        %v2865 = vadd.f32 %v2747, %v2859
        %v2866 = vadd.f32 %v2750, %v2862
        %v2867 = vsel %vm520, %v2533, 0
        %s2869 = scalar_lea.vmem %s4, 192
        %v2870 = vld [vmem:[%s2869] sm:$0xf]
        %v2871 = vld [vmem:[%s2869 + $0x4] sm:$0xf]
        %v2872 = vld [vmem:[%s2869 + $0x8] sm:$0xf]
        %v2873 = vld [vmem:[%s2869 + $0xc] sm:$0xf]
        %v2874 = vld [vmem:[%s2869 + $0x10] sm:$0xf]
        %v2875 = vld [vmem:[%s2869 + $0x14] sm:$0xf]
        %v2876 = vld [vmem:[%s2869 + $0x18] sm:$0xf]
        %v2877 = vld [vmem:[%s2869 + $0x1c] sm:$0xf]
        %v2878 = vld [vmem:[%s2869 + $0x20] sm:$0xf]
        %v2879 = vld [vmem:[%s2869 + $0x24] sm:$0xf]
        %v2880 = vld [vmem:[%s2869 + $0x28] sm:$0xf]
        %v2881 = vld [vmem:[%s2869 + $0x2c] sm:$0xf]
        %v2882 = vld [vmem:[%s2869 + $0x30] sm:$0xf]
        %v2883 = vld [vmem:[%s2869 + $0x34] sm:$0xf]
        %v2884 = vld [vmem:[%s2869 + $0x38] sm:$0xf]
        %v2885 = vld [vmem:[%s2869 + $0x3c] sm:$0xf]
        %v2902 = vunpack.c.l.b16 %v2870
        %v2903 = vunpack.c.l.b16 %v2871
        %v2904 = vunpack.c.l.b16 %v2872
        %v2905 = vunpack.c.l.b16 %v2873
        %v2906 = vunpack.c.l.b16 %v2874
        %v2907 = vunpack.c.l.b16 %v2875
        %v2908 = vunpack.c.l.b16 %v2876
        %v2909 = vunpack.c.l.b16 %v2877
        %v2910 = vunpack.c.l.b16 %v2878
        %v2911 = vunpack.c.l.b16 %v2879
        %v2912 = vunpack.c.l.b16 %v2880
        %v2913 = vunpack.c.l.b16 %v2881
        %v2914 = vunpack.c.l.b16 %v2882
        %v2915 = vunpack.c.l.b16 %v2883
        %v2916 = vunpack.c.l.b16 %v2884
        %v2917 = vunpack.c.l.b16 %v2885
        %v2918 = vpack.c.b16 %v2903, %v2902
        %v2919 = vpack.c.b16 %v2905, %v2904
        %v2920 = vpack.c.b16 %v2907, %v2906
        %v2921 = vpack.c.b16 %v2909, %v2908
        %v2922 = vpack.c.b16 %v2911, %v2910
        %v2923 = vpack.c.b16 %v2913, %v2912
        %v2924 = vpack.c.b16 %v2915, %v2914
        %v2925 = vpack.c.b16 %v2917, %v2916
        %2934 = vmatprep.subr.bf16.mxu0 0
        %2935 = vmatpush1.bf16.msra.mxu0 %v2918
        %2936 = vmatprep.subr.bf16.mxu0 0
        %2937 = vmatpush1.bf16.msra.mxu0 %v2919
        %2938 = vmatprep.subr.bf16.mxu0 0
        %2939 = vmatpush1.bf16.msra.mxu0 %v2920
        %2940 = vmatprep.subr.bf16.mxu0 0
        %2941 = vmatpush1.bf16.msra.mxu0 %v2921
        %2942 = vmatprep.subr.bf16.mxu0 0
        %2943 = vmatpush1.bf16.msra.mxu0 %v2922
        %2944 = vmatprep.subr.bf16.mxu0 0
        %2945 = vmatpush1.bf16.msra.mxu0 %v2923
        %2946 = vmatprep.subr.bf16.mxu0 0
        %2947 = vmatpush1.bf16.msra.mxu0 %v2924
        %2948 = vmatprep.subr.bf16.mxu0 0
        %2949 = vmatpush1.bf16.msra.mxu0 %v2925
        %2950 = vmatprep.subr.bf16.mxu0 0
        %2951 = vmatpush1.bf16.msra.mxu0 0
        %2952 = vmatprep.subr.bf16.mxu0 0
        %2953 = vmatpush1.bf16.msra.mxu0 0
        %2954 = vmatprep.subr.bf16.mxu0 0
        %2955 = vmatpush1.bf16.msra.mxu0 0
        %2956 = vmatprep.subr.bf16.mxu0 0
        %2957 = vmatpush1.bf16.msra.mxu0 0
        %2958 = vmatprep.subr.bf16.mxu0 0
        %2959 = vmatpush1.bf16.msra.mxu0 0
        %2960 = vmatprep.subr.bf16.mxu0 0
        %2961 = vmatpush1.bf16.msra.mxu0 0
        %2962 = vmatprep.subr.bf16.mxu0 0
        %2963 = vmatpush1.bf16.msra.mxu0 0
        %2964 = vmatprep.subr.bf16.mxu0 0
        %2965 = vmatpush1.bf16.msra.mxu0 0
        %2966 = vmatprep.mubr.bf16.mxu0 0
        %2967 = vmatmul.mubr.bf16.gmra.mrb[0].mxu0 %v2867
        %v2968 = vpop.f32.mrb[0].mxu0
        %v2969 = vadd.f32 0.0, %v2968
        %v2970 = vpop.f32.mrb[0].mxu0
        %v2971 = vpop.f32.mrb[0].mxu0
        %v2972 = vadd.f32 0.0, %v2971
        %v2973 = vpop.f32.mrb[0].mxu0
        %2974 = vdwg.mxu0
        %v2975 = vadd.f32 %v2865, %v2969
        %v2976 = vadd.f32 %v2866, %v2972
        %vm2977 = vcmp.gt.f32.partialorder %v2975, 0.0
        %vm2978 = vcmp.gt.f32.partialorder %v2976, 0.0
        %v2979 = vmul.f32 %v2975, 0.2
        %v2980 = vmul.f32 %v2976, 0.2
        %v2981 = vsel %vm2977, %v2975, %v2979
        %v2982 = vsel %vm2978, %v2976, %v2980
        %v2983 = vpack.c.bf16 %v2982, %v2981
        %s2984 = scalar_lea.vmem %s5, 64
        %v2985 = vld [vmem:[%s2984] sm:$0xf]
        %v2986 = vld [vmem:[%s2984 + $0x4] sm:$0xf]
        %v2987 = vld [vmem:[%s2984 + $0x8] sm:$0xf]
        %v2988 = vld [vmem:[%s2984 + $0xc] sm:$0xf]
        %v2989 = vld [vmem:[%s2984 + $0x10] sm:$0xf]
        %v2990 = vld [vmem:[%s2984 + $0x14] sm:$0xf]
        %v2991 = vld [vmem:[%s2984 + $0x18] sm:$0xf]
        %v2992 = vld [vmem:[%s2984 + $0x1c] sm:$0xf]
        %v2993 = vld [vmem:[%s2984 + $0x20] sm:$0xf]
        %v2994 = vld [vmem:[%s2984 + $0x24] sm:$0xf]
        %v2995 = vld [vmem:[%s2984 + $0x28] sm:$0xf]
        %v2996 = vld [vmem:[%s2984 + $0x2c] sm:$0xf]
        %v2997 = vld [vmem:[%s2984 + $0x30] sm:$0xf]
        %v2998 = vld [vmem:[%s2984 + $0x34] sm:$0xf]
        %v2999 = vld [vmem:[%s2984 + $0x38] sm:$0xf]
        %v3000 = vld [vmem:[%s2984 + $0x3c] sm:$0xf]
        %s3001 = scalar_lea.vmem %s5, 128
        %v3002 = vld [vmem:[%s3001] sm:$0xf]
        %v3003 = vld [vmem:[%s3001 + $0x4] sm:$0xf]
        %v3004 = vld [vmem:[%s3001 + $0x8] sm:$0xf]
        %v3005 = vld [vmem:[%s3001 + $0xc] sm:$0xf]
        %v3006 = vld [vmem:[%s3001 + $0x10] sm:$0xf]
        %v3007 = vld [vmem:[%s3001 + $0x14] sm:$0xf]
        %v3008 = vld [vmem:[%s3001 + $0x18] sm:$0xf]
        %v3009 = vld [vmem:[%s3001 + $0x1c] sm:$0xf]
        %v3010 = vld [vmem:[%s3001 + $0x20] sm:$0xf]
        %v3011 = vld [vmem:[%s3001 + $0x24] sm:$0xf]
        %v3012 = vld [vmem:[%s3001 + $0x28] sm:$0xf]
        %v3013 = vld [vmem:[%s3001 + $0x2c] sm:$0xf]
        %v3014 = vld [vmem:[%s3001 + $0x30] sm:$0xf]
        %v3015 = vld [vmem:[%s3001 + $0x34] sm:$0xf]
        %v3016 = vld [vmem:[%s3001 + $0x38] sm:$0xf]
        %v3017 = vld [vmem:[%s3001 + $0x3c] sm:$0xf]
        %v3019 = vrot.slane %v2983, 4
        %v3037 = vunpack.c.l.b16 %v3002
        %v3038 = vunpack.c.l.b16 %v3003
        %v3039 = vunpack.c.l.b16 %v3004
        %v3040 = vunpack.c.l.b16 %v3005
        %v3041 = vunpack.c.l.b16 %v3006
        %v3042 = vunpack.c.l.b16 %v3007
        %v3043 = vunpack.c.l.b16 %v3008
        %v3044 = vunpack.c.l.b16 %v3009
        %v3045 = vunpack.c.l.b16 %v3010
        %v3046 = vunpack.c.l.b16 %v3011
        %v3047 = vunpack.c.l.b16 %v3012
        %v3048 = vunpack.c.l.b16 %v3013
        %v3049 = vunpack.c.l.b16 %v3014
        %v3050 = vunpack.c.l.b16 %v3015
        %v3051 = vunpack.c.l.b16 %v3016
        %v3052 = vunpack.c.l.b16 %v3017
        %v3053 = vpack.c.b16 %v3038, %v3037
        %v3054 = vpack.c.b16 %v3040, %v3039
        %v3055 = vpack.c.b16 %v3042, %v3041
        %v3056 = vpack.c.b16 %v3044, %v3043
        %v3057 = vpack.c.b16 %v3046, %v3045
        %v3058 = vpack.c.b16 %v3048, %v3047
        %v3059 = vpack.c.b16 %v3050, %v3049
        %v3060 = vpack.c.b16 %v3052, %v3051
        %3069 = vmatprep.subr.bf16.mxu0 0
        %3070 = vmatpush1.bf16.msra.mxu0 %v3053
        %3071 = vmatprep.subr.bf16.mxu0 0
        %3072 = vmatpush1.bf16.msra.mxu0 %v3054
        %3073 = vmatprep.subr.bf16.mxu0 0
        %3074 = vmatpush1.bf16.msra.mxu0 %v3055
        %3075 = vmatprep.subr.bf16.mxu0 0
        %3076 = vmatpush1.bf16.msra.mxu0 %v3056
        %3077 = vmatprep.subr.bf16.mxu0 0
        %3078 = vmatpush1.bf16.msra.mxu0 %v3057
        %3079 = vmatprep.subr.bf16.mxu0 0
        %3080 = vmatpush1.bf16.msra.mxu0 %v3058
        %3081 = vmatprep.subr.bf16.mxu0 0
        %3082 = vmatpush1.bf16.msra.mxu0 %v3059
        %3083 = vmatprep.subr.bf16.mxu0 0
        %3084 = vmatpush1.bf16.msra.mxu0 %v3060
        %3085 = vmatprep.subr.bf16.mxu0 0
        %3086 = vmatpush1.bf16.msra.mxu0 0
        %3087 = vmatprep.subr.bf16.mxu0 0
        %3088 = vmatpush1.bf16.msra.mxu0 0
        %3089 = vmatprep.subr.bf16.mxu0 0
        %3090 = vmatpush1.bf16.msra.mxu0 0
        %3091 = vmatprep.subr.bf16.mxu0 0
        %3092 = vmatpush1.bf16.msra.mxu0 0
        %3093 = vmatprep.subr.bf16.mxu0 0
        %3094 = vmatpush1.bf16.msra.mxu0 0
        %3095 = vmatprep.subr.bf16.mxu0 0
        %3096 = vmatpush1.bf16.msra.mxu0 0
        %3097 = vmatprep.subr.bf16.mxu0 0
        %3098 = vmatpush1.bf16.msra.mxu0 0
        %3099 = vmatprep.subr.bf16.mxu0 0
        %3100 = vmatpush1.bf16.msra.mxu0 0
        %3101 = vmatprep.mubr.bf16.mxu0 0
        %3102 = vmatmul.mubr.bf16.gmra.mrb[0].mxu0 %v3019
        %v3103 = vpop.f32.mrb[0].mxu0
        %v3104 = vadd.f32 0.0, %v3103
        %v3105 = vpop.f32.mrb[0].mxu0
        %v3106 = vpop.f32.mrb[0].mxu0
        %v3107 = vpop.f32.mrb[0].mxu0
        %3108 = vdwg.mxu0
        %v3125 = vunpack.c.l.b16 %v2985
        %v3126 = vunpack.c.l.b16 %v2986
        %v3127 = vunpack.c.l.b16 %v2987
        %v3128 = vunpack.c.l.b16 %v2988
        %v3129 = vunpack.c.l.b16 %v2989
        %v3130 = vunpack.c.l.b16 %v2990
        %v3131 = vunpack.c.l.b16 %v2991
        %v3132 = vunpack.c.l.b16 %v2992
        %v3133 = vunpack.c.l.b16 %v2993
        %v3134 = vunpack.c.l.b16 %v2994
        %v3135 = vunpack.c.l.b16 %v2995
        %v3136 = vunpack.c.l.b16 %v2996
        %v3137 = vunpack.c.l.b16 %v2997
        %v3138 = vunpack.c.l.b16 %v2998
        %v3139 = vunpack.c.l.b16 %v2999
        %v3140 = vunpack.c.l.b16 %v3000
        %v3141 = vpack.c.b16 %v3126, %v3125
        %v3142 = vpack.c.b16 %v3128, %v3127
        %v3143 = vpack.c.b16 %v3130, %v3129
        %v3144 = vpack.c.b16 %v3132, %v3131
        %v3145 = vpack.c.b16 %v3134, %v3133
        %v3146 = vpack.c.b16 %v3136, %v3135
        %v3147 = vpack.c.b16 %v3138, %v3137
        %v3148 = vpack.c.b16 %v3140, %v3139
        %3157 = vmatprep.subr.bf16.mxu0 0
        %3158 = vmatpush1.bf16.msra.mxu0 %v3141
        %3159 = vmatprep.subr.bf16.mxu0 0
        %3160 = vmatpush1.bf16.msra.mxu0 %v3142
        %3161 = vmatprep.subr.bf16.mxu0 0
        %3162 = vmatpush1.bf16.msra.mxu0 %v3143
        %3163 = vmatprep.subr.bf16.mxu0 0
        %3164 = vmatpush1.bf16.msra.mxu0 %v3144
        %3165 = vmatprep.subr.bf16.mxu0 0
        %3166 = vmatpush1.bf16.msra.mxu0 %v3145
        %3167 = vmatprep.subr.bf16.mxu0 0
        %3168 = vmatpush1.bf16.msra.mxu0 %v3146
        %3169 = vmatprep.subr.bf16.mxu0 0
        %3170 = vmatpush1.bf16.msra.mxu0 %v3147
        %3171 = vmatprep.subr.bf16.mxu0 0
        %3172 = vmatpush1.bf16.msra.mxu0 %v3148
        %3173 = vmatprep.subr.bf16.mxu0 0
        %3174 = vmatpush1.bf16.msra.mxu0 0
        %3175 = vmatprep.subr.bf16.mxu0 0
        %3176 = vmatpush1.bf16.msra.mxu0 0
        %3177 = vmatprep.subr.bf16.mxu0 0
        %3178 = vmatpush1.bf16.msra.mxu0 0
        %3179 = vmatprep.subr.bf16.mxu0 0
        %3180 = vmatpush1.bf16.msra.mxu0 0
        %3181 = vmatprep.subr.bf16.mxu0 0
        %3182 = vmatpush1.bf16.msra.mxu0 0
        %3183 = vmatprep.subr.bf16.mxu0 0
        %3184 = vmatpush1.bf16.msra.mxu0 0
        %3185 = vmatprep.subr.bf16.mxu0 0
        %3186 = vmatpush1.bf16.msra.mxu0 0
        %3187 = vmatprep.subr.bf16.mxu0 0
        %3188 = vmatpush1.bf16.msra.mxu0 0
        %3189 = vmatprep.mubr.bf16.mxu0 0
        %3190 = vmatmul.mubr.bf16.gmra.mrb[0].mxu0 %v2983
        %v3191 = vpop.f32.mrb[0].mxu0
        %v3192 = vadd.f32 %v3104, %v3191
        %v3193 = vpop.f32.mrb[0].mxu0
        %v3194 = vpop.f32.mrb[0].mxu0
        %v3195 = vpop.f32.mrb[0].mxu0
        %3196 = vdwg.mxu0
        %vm3197 = vcmask 7168
        %3198 = vst.msk [vmem:[%s407] sm:$0xff] %vm3197, %v3192
        %p3199 = scmp.lt.s32.totalorder %s17, 3
        %s3200 = scalar_select %p3199, %s17, 3
        %s3201 = smul.addr %s3200, 8
        %s3202 = scalar_lea.vmem %s6, %s3201
        // Predicated region
        $region83: #{_lambda_.1} parent=77 // pred_check
          %p3203 = pneg %p166
        $region84: #{_lambda_.1} parent=77 // pred_check_branch
          %3205 = sbr.rel (%p3203) target = $region86
        $region85: #{_lambda_.1} parent=77 // pred_region
          _
        $region86: #{_lambda_.1} parent=77 // pred_fallthru
          _
      $region78: #{_lambda_.1} parent=5 // pred_fallthru
        _
      %p3206 = scmp.le.s32.totalorder 2, %s12
      // Predicated region
      $region87: #{_lambda_.1} parent=5 // pred_check
        %p3207 = pneg %p3206
      $region88: #{_lambda_.1} parent=5 // pred_check_branch
        %3209 = sbr.rel (%p3207) target = $region90
      $region89: #{_lambda_.1} parent=5 // pred_region
        %s3210 = ssub.s32 %s12, 2
        // Predicated region
        $region91: #{_lambda_.1} parent=89 // pred_check
          %p3211 = pneg %p172
        $region92: #{_lambda_.1} parent=89 // pred_check_branch
          %3213 = sbr.rel (%p3211) target = $region94
        $region93: #{_lambda_.1} parent=89 // pred_region
          %p3214 = scmp.lt.s32.totalorder %s18, 3
          %s3215 = scalar_select %p3214, %s18, 3
          %s3216 = smul.addr %s3215, 8
          %s3217 = scalar_lea.vmem %s6, %s3216
        $region94: #{_lambda_.1} parent=89 // pred_fallthru
          _
      $region90: #{_lambda_.1} parent=5 // pred_fallthru
        _
    $region6: #{_lambda_.1} parent=1 // loop_footer
      %s16 = sadd.s32 1, %s12
    $region7: #{_lambda_.1} parent=1 // loop_footer_branch
      %11 = sbr.rel target = $region3
    $region8: #{_lambda_.1} parent=1 // loop_exit
      _

</llo_original>
